<compile_context>
chip_gen: v5e
topology: v5e:2x2
jax: 0.10.0
libtpu: 0.0.40
codegen_flags: <defaults>
</compile_context>

<pallas_src>
import math

import numpy as np

import jax
import jax.numpy as jnp
from jax.experimental import pallas as pl
from jax.experimental.pallas import tpu as pltpu

# ----------------------------- model config --------------------------------
D_MODEL = 32          # in_channels == config.d_model
FFN_DIM = 64          # model_channels == ffn dim
EMB_DIM = 16          # embedding_dim (!= in_channels => all projections active)
NUM_HEADS = 2
HEAD_DIM = D_MODEL // NUM_HEADS
ENC_LAYERS = 2
DEC_LAYERS = 2
VOCAB = 50
MAX_POS = 64
EMBED_SCALE = 1.0     # bart-base: scale_embedding=False
LN_EPS = 1e-5
NEG = -1e9
LANES = 128


# ----------------------------- packed weight layout --------------------------
# Every weight matrix (kin, kout) occupies `kin` rows starting at an 8-aligned
# row offset; every bias / LN vector occupies 1 row.  Lanes are padded to 128.


def _layout_entries():
    e = []

    def lin(name, kin, kout):
        e.append((name + ".w", kin, kout))
        e.append((name + ".b", 1, kout))

    def ln(name):
        e.append((name + ".g", 1, D_MODEL))
        e.append((name + ".b", 1, D_MODEL))

    lin("time1", D_MODEL, D_MODEL)
    lin("time2", D_MODEL, D_MODEL)
    lin("updec1", 2 * EMB_DIM, D_MODEL)
    lin("updec2", D_MODEL, D_MODEL)
    lin("upenc1", EMB_DIM, D_MODEL)
    lin("upenc2", D_MODEL, D_MODEL)
    lin("down1", D_MODEL, D_MODEL)
    lin("down2", D_MODEL, EMB_DIM)          # lanes zero-padded to 128 in the buffer
    ln("ln_out")
    ln("enc_ln_emb")
    ln("dec_ln_emb")
    for i in range(ENC_LAYERS):
        p = f"enc{i}."
        lin(p + "qkv", D_MODEL, 3 * D_MODEL)
        lin(p + "out", D_MODEL, D_MODEL)
        ln(p + "ln1")
        lin(p + "fc1", D_MODEL, FFN_DIM)
        lin(p + "fc2", FFN_DIM, D_MODEL)
        ln(p + "ln2")
    for i in range(DEC_LAYERS):
        p = f"dec{i}."
        lin(p + "sqkv", D_MODEL, 3 * D_MODEL)
        lin(p + "sout", D_MODEL, D_MODEL)
        ln(p + "ln1")
        lin(p + "cq", D_MODEL, D_MODEL)
        lin(p + "ckv", D_MODEL, 2 * D_MODEL)
        lin(p + "cout", D_MODEL, D_MODEL)
        ln(p + "ln2")
        lin(p + "fc1", D_MODEL, FFN_DIM)
        lin(p + "fc2", FFN_DIM, D_MODEL)
        ln(p + "ln3")
    return e


LAYOUT = _layout_entries()


def _compute_offsets(layout):
    offs, shapes = {}, {}
    off = 0
    for name, r, c in layout:
        if r > 1 and off % 8:          # keep matrix starts sublane(8)-aligned
            off += 8 - (off % 8)
        offs[name] = off
        shapes[name] = (r, c)
        off += r
    total = off + ((-off) % 8)
    return offs, shapes, total


OFFSETS, SHAPES, TOTAL_ROWS = _compute_offsets(LAYOUT)


def pack_params(flat_params):
    """Pack all kernel-resident params into one (TOTAL_ROWS, 128) f32 buffer."""
    buf = np.zeros((TOTAL_ROWS, LANES), np.float32)
    for name, r, c in LAYOUT:
        buf[OFFSETS[name]:OFFSETS[name] + r, :c] = np.asarray(flat_params[name],
                                                              np.float32)
    return jnp.asarray(buf)


# ----------------------------- fused Pallas kernel --------------------------


def _fused_forward_kernel(w_ref, tsin_ref, dec_ref, tok_ref, epos_ref, dpos_ref,
                          encb_ref, selfb_ref, crossb_ref, out_ref):
    """Single invocation: whole forward pass over the packed (B*S, D) batch."""
    inv_sqrt2 = 1.0 / math.sqrt(2.0)
    scale = HEAD_DIM ** -0.5

    def par(name, full_lanes=False):
        off = OFFSETS[name]
        r, c = SHAPES[name]
        if full_lanes:
            return w_ref[off:off + r, :]
        return w_ref[off:off + r, :c]

    def linear(x, name, act=None, full_lanes=False):
        y = (jnp.dot(x, par(name + ".w", full_lanes),
                     preferred_element_type=jnp.float32)
             + par(name + ".b", full_lanes))
        if act == "tanh":
            y = jnp.tanh(y)
        elif act == "silu":
            y = y * jax.nn.sigmoid(y)
        elif act == "gelu":                # exact (erf) GELU, as in HF BART
            y = 0.5 * y * (1.0 + jax.lax.erf(y * inv_sqrt2))
        return y

    def layer_norm(x, name):
        # mean and E[x^2] in one pass; var = E[x^2] - mu^2
        mu = jnp.mean(x, axis=-1, keepdims=True)
        msq = jnp.mean(x * x, axis=-1, keepdims=True)
        inv = jax.lax.rsqrt(msq - mu * mu + LN_EPS)
        return (x - mu) * inv * par(name + ".g") + par(name + ".b")

    def softmax_rows(s):
        s = s - jnp.max(s, axis=-1, keepdims=True)
        e = jnp.exp(s)
        return e * pl.reciprocal(jnp.sum(e, axis=-1, keepdims=True), approx=True)

    def heads_attend(get_qkv, bias):
        # Per-head attention; head outputs concatenated lane-contiguously so a
        # single out-projection matmul suffices.
        ctx = []
        for h in range(NUM_HEADS):
            qh, kh, vh = get_qkv(h)
            s = jax.lax.dot_general(qh, kh, (((1,), (1,)), ((), ())),
                                    preferred_element_type=jnp.float32)
            pr = softmax_rows(s * scale + bias)
            ctx.append(jnp.dot(pr, vh, preferred_element_type=jnp.float32))
        return jnp.concatenate(ctx, axis=-1)                   # (N, D_MODEL)

    def self_attention(x, qkv_name, out_name, bias):
        qkv = linear(x, qkv_name)                              # (N, 3*D)
        def get(h):                                            # one slice per tensor
            lo = h * HEAD_DIM
            return (qkv[:, lo:lo + HEAD_DIM],
                    qkv[:, D_MODEL + lo:D_MODEL + lo + HEAD_DIM],
                    qkv[:, 2 * D_MODEL + lo:2 * D_MODEL + lo + HEAD_DIM])
        ctx = heads_attend(get, bias)
        return (jnp.dot(ctx, par(out_name + ".w"),
                        preferred_element_type=jnp.float32) + par(out_name + ".b"))

    def cross_attention(xq, xkv, prefix, bias):
        q = linear(xq, prefix + "cq")                          # (Nd, D)
        kv = linear(xkv, prefix + "ckv")                       # (Ne, 2*D)
        def get(h):
            lo = h * HEAD_DIM
            return (q[:, lo:lo + HEAD_DIM],
                    kv[:, lo:lo + HEAD_DIM],
                    kv[:, D_MODEL + lo:D_MODEL + lo + HEAD_DIM])
        ctx = heads_attend(get, bias)
        return (jnp.dot(ctx, par(prefix + "cout.w"),
                        preferred_element_type=jnp.float32) + par(prefix + "cout.b"))

    # ---- time embedding: Linear -> SiLU -> Linear (sinusoid pre-broadcast) --
    emb = linear(linear(tsin_ref[...], "time1", "silu"), "time2")    # (Nd, D)

    # ---- decoder-side input up-projection (+ time emb) + module-level LN ----
    x = linear(linear(dec_ref[...], "updec1", "tanh"), "updec2") + emb
    emb_inputs = layer_norm(x, "ln_out")

    # ---- encoder-side input up-projection -----------------------------------
    xe = linear(linear(tok_ref[...], "upenc1", "tanh"), "upenc2")
    h = layer_norm(xe + epos_ref[...], "enc_ln_emb")

    # ---- BART encoder (post-LN) ---------------------------------------------
    enc_bias = encb_ref[...]                                    # (Ne, Ne)
    for i in range(ENC_LAYERS):
        p = f"enc{i}."
        h = layer_norm(h + self_attention(h, p + "qkv", p + "out", enc_bias),
                       p + "ln1")
        f = linear(linear(h, p + "fc1", "gelu"), p + "fc2")
        h = layer_norm(h + f, p + "ln2")
    enc_hidden = h

    # ---- BART decoder (post-LN) ---------------------------------------------
    h = layer_norm(emb_inputs + dpos_ref[...], "dec_ln_emb")
    self_bias = selfb_ref[...]                                  # (Nd, Nd)
    cross_bias = crossb_ref[...]                                # (Nd, Ne)
    for i in range(DEC_LAYERS):
        p = f"dec{i}."
        h = layer_norm(h + self_attention(h, p + "sqkv", p + "sout", self_bias),
                       p + "ln1")
        h = layer_norm(h + cross_attention(h, enc_hidden, p, cross_bias),
                       p + "ln2")
        f = linear(linear(h, p + "fc1", "gelu"), p + "fc2")
        h = layer_norm(h + f, p + "ln3")

    # ---- output down-projection; down2 lanes zero-padded to 128 => lane-dense
    y = linear(linear(h, "down1", "tanh"), "down2", full_lanes=True)  # (Nd, 128)
    out_ref[...] = y.astype(out_ref.dtype)


# ----------------------------- wrapper ---------------------------------------


def timestep_embedding(timesteps, dim, max_period=10000):
    half = dim // 2
    freqs = jnp.exp(-math.log(max_period) *
                    jnp.arange(half, dtype=jnp.float32) / half)
    args = timesteps.astype(jnp.float32)[:, None] * freqs[None, :]
    return jnp.concatenate([jnp.cos(args), jnp.sin(args)], axis=-1)


def forward(wbuf, embed_tokens, enc_pos, dec_pos, input_ids, timesteps,
            attention_mask, decoder_inputs_embeds, decoder_attention_mask,
            self_conditions):
    B, S_dec, _ = decoder_inputs_embeds.shape
    S_enc = input_ids.shape[1]
    Nd, Ne = B * S_dec, B * S_enc

    # Tiny XLA-side prep: sinusoid (pre-broadcast to one row per decoder token),
    # concat + embedding gather + pos-embedding tiling (offset 2, as BART),
    # and the packed-batch additive biases.
    t_sin = timestep_embedding(timesteps, D_MODEL)                       # (B, D)
    t_sin = jnp.broadcast_to(t_sin[:, None, :],
                             (B, S_dec, D_MODEL)).reshape(Nd, D_MODEL)

    dec_in = jnp.concatenate([decoder_inputs_embeds, self_conditions],
                             axis=-1).reshape(Nd, 2 * EMB_DIM)
    tok = (embed_tokens[input_ids] * EMBED_SCALE).reshape(Ne, EMB_DIM)

    epos = jnp.tile(enc_pos[2:2 + S_enc], (B, 1))                        # (Ne, D)
    dpos = jnp.tile(dec_pos[2:2 + S_dec], (B, 1))                        # (Nd, D)

    # Packed-batch attention biases: NEG on cross-batch pairs and padded keys,
    # causal within each decoder segment.
    bid_e = jnp.repeat(jnp.arange(B), S_enc)
    bid_d = jnp.repeat(jnp.arange(B), S_dec)
    kmask_e = attention_mask.reshape(Ne) > 0
    kmask_d = decoder_attention_mask.reshape(Nd) > 0
    pos_d = jnp.tile(jnp.arange(S_dec), B)

    same_ee = bid_e[:, None] == bid_e[None, :]
    same_dd = bid_d[:, None] == bid_d[None, :]
    same_de = bid_d[:, None] == bid_e[None, :]
    causal = pos_d[:, None] >= pos_d[None, :]

    enc_bias = jnp.where(same_ee & kmask_e[None, :], 0.0, NEG).astype(jnp.float32)
    self_bias = jnp.where(same_dd & causal & kmask_d[None, :],
                          0.0, NEG).astype(jnp.float32)
    cross_bias = jnp.where(same_de & kmask_e[None, :], 0.0, NEG).astype(jnp.float32)

    out = pl.pallas_call(
        _fused_forward_kernel,
        out_shape=jax.ShapeDtypeStruct((Nd, LANES), jnp.float32),
        compiler_params=pltpu.CompilerParams(vmem_limit_bytes=32 * 1024 * 1024),
    )(wbuf, t_sin, dec_in, tok, epos, dpos, enc_bias, self_bias, cross_bias)

    return out[:, :EMB_DIM].reshape(B, S_dec, EMB_DIM)


# ----------------------------- deterministic init ---------------------------


def init_params(key):
    keys = iter(jax.random.split(key, 4 * len(LAYOUT)))
    p = {}
    for name, r, c in LAYOUT:
        if name.endswith(".w"):
            p[name] = 0.02 * jax.random.normal(next(keys), (r, c), jnp.float32)
        elif name.endswith(".g"):
            p[name] = jnp.ones((r, c), jnp.float32)
        else:  # linear / LayerNorm biases
            p[name] = jnp.zeros((r, c), jnp.float32)
    p["embed_tokens"] = 0.02 * jax.random.normal(next(keys), (VOCAB, EMB_DIM),
                                                 jnp.float32)
    p["enc_pos"] = 0.02 * jax.random.normal(next(keys), (MAX_POS + 2, D_MODEL),
                                            jnp.float32)
    p["dec_pos"] = 0.02 * jax.random.normal(next(keys), (MAX_POS + 2, D_MODEL),
                                            jnp.float32)
    return p


# ----------------------------- main -----------------------------------------

if __name__ == "__main__":
    params = init_params(jax.random.PRNGKey(0))
    wbuf = pack_params(params)          # one packed weight buffer, one DMA

    B, S_ENC, S_DEC = 2, 8, 8
    k1, k2, k3 = jax.random.split(jax.random.PRNGKey(0), 3)
    input_ids = jax.random.randint(k1, (B, S_ENC), 0, VOCAB, dtype=jnp.int32)
    attention_mask = jnp.array([[1] * S_ENC, [1] * (S_ENC - 2) + [0, 0]], jnp.int32)
    timesteps = jnp.array([3, 7], jnp.int32)
    decoder_inputs_embeds = jax.random.normal(k2, (B, S_DEC, EMB_DIM), jnp.float32)
    self_conditions = jax.random.normal(k3, (B, S_DEC, EMB_DIM), jnp.float32)
    decoder_attention_mask = jnp.ones((B, S_DEC), jnp.int32)

    fwd = jax.jit(forward)
    out = fwd(wbuf, params["embed_tokens"], params["enc_pos"], params["dec_pos"],
              input_ids, timesteps, attention_mask, decoder_inputs_embeds,
              decoder_attention_mask, self_conditions)
    jax.block_until_ready(out)
    assert out.shape == (B, S_DEC, EMB_DIM), out.shape
    assert bool(jnp.all(jnp.isfinite(out)))
    print("KERNEL_OK")
</pallas_src>

<mosaic_0001>
module attributes {stable_mosaic.version = 11 : i64} {
  func.func @_fused_forward_kernel(%arg0: memref<1312x128xf32, #tpu.memory_space<vmem>>, %arg1: memref<16x32xf32, #tpu.memory_space<vmem>>, %arg2: memref<16x32xf32, #tpu.memory_space<vmem>>, %arg3: memref<16x16xf32, #tpu.memory_space<vmem>>, %arg4: memref<16x32xf32, #tpu.memory_space<vmem>>, %arg5: memref<16x32xf32, #tpu.memory_space<vmem>>, %arg6: memref<16x16xf32, #tpu.memory_space<vmem>>, %arg7: memref<16x16xf32, #tpu.memory_space<vmem>>, %arg8: memref<16x16xf32, #tpu.memory_space<vmem>>, %arg9: memref<16x128xf32, #tpu.memory_space<vmem>>) attributes {dimension_semantics = [], scalar_prefetch = 0 : i64, scratch_operands = 0 : i64, tpu.core_type = #tpu.core_type<tc>} {
    %c0 = arith.constant 0 : index
    %c0_0 = arith.constant 0 : index
    %0 = vector.load %arg1[%c0, %c0_0] : memref<16x32xf32, #tpu.memory_space<vmem>>, vector<16x32xf32>
    %c0_1 = arith.constant 0 : index
    %c0_2 = arith.constant 0 : index
    %1 = vector.load %arg0[%c0_1, %c0_2] : memref<1312x128xf32, #tpu.memory_space<vmem>>, vector<32x32xf32>
    %cst = arith.constant dense<0.000000e+00> : vector<16x32xf32>
    %2 = tpu.matmul %0, %1, %cst {dimension_numbers = #tpu.dot_dimension_numbers<[1], [0], [0], [1], [0, 0, 1, 1], [], []>} : vector<16x32xf32>, vector<32x32xf32>, vector<16x32xf32> -> vector<16x32xf32>
    %c32 = arith.constant 32 : index
    %c0_3 = arith.constant 0 : index
    %3 = vector.load %arg0[%c32, %c0_3] : memref<1312x128xf32, #tpu.memory_space<vmem>>, vector<1x32xf32>
    %4 = vector.broadcast %3 : vector<1x32xf32> to vector<16x32xf32>
    %5 = arith.addf %2, %4 : vector<16x32xf32>
    %6 = arith.negf %5 : vector<16x32xf32>
    %7 = math.exp %6 : vector<16x32xf32>
    %cst_4 = arith.constant 1.000000e+00 : f32
    %8 = vector.broadcast %cst_4 : f32 to vector<16x32xf32>
    %9 = arith.addf %8, %7 : vector<16x32xf32>
    %10 = arith.divf %8, %9 : vector<16x32xf32>
    %11 = arith.mulf %5, %10 : vector<16x32xf32>
    %c40 = arith.constant 40 : index
    %c0_5 = arith.constant 0 : index
    %12 = vector.load %arg0[%c40, %c0_5] : memref<1312x128xf32, #tpu.memory_space<vmem>>, vector<32x32xf32>
    %cst_6 = arith.constant dense<0.000000e+00> : vector<16x32xf32>
    %13 = tpu.matmul %11, %12, %cst_6 {dimension_numbers = #tpu.dot_dimension_numbers<[1], [0], [0], [1], [0, 0, 1, 1], [], []>} : vector<16x32xf32>, vector<32x32xf32>, vector<16x32xf32> -> vector<16x32xf32>
    %c72 = arith.constant 72 : index
    %c0_7 = arith.constant 0 : index
    %14 = vector.load %arg0[%c72, %c0_7] : memref<1312x128xf32, #tpu.memory_space<vmem>>, vector<1x32xf32>
    %15 = vector.broadcast %14 : vector<1x32xf32> to vector<16x32xf32>
    %16 = arith.addf %13, %15 : vector<16x32xf32>
    %c0_8 = arith.constant 0 : index
    %c0_9 = arith.constant 0 : index
    %17 = vector.load %arg2[%c0_8, %c0_9] : memref<16x32xf32, #tpu.memory_space<vmem>>, vector<16x32xf32>
    %c80 = arith.constant 80 : index
    %c0_10 = arith.constant 0 : index
    %18 = vector.load %arg0[%c80, %c0_10] : memref<1312x128xf32, #tpu.memory_space<vmem>>, vector<32x32xf32>
    %cst_11 = arith.constant dense<0.000000e+00> : vector<16x32xf32>
    %19 = tpu.matmul %17, %18, %cst_11 {dimension_numbers = #tpu.dot_dimension_numbers<[1], [0], [0], [1], [0, 0, 1, 1], [], []>} : vector<16x32xf32>, vector<32x32xf32>, vector<16x32xf32> -> vector<16x32xf32>
    %c112 = arith.constant 112 : index
    %c0_12 = arith.constant 0 : index
    %20 = vector.load %arg0[%c112, %c0_12] : memref<1312x128xf32, #tpu.memory_space<vmem>>, vector<1x32xf32>
    %21 = vector.broadcast %20 : vector<1x32xf32> to vector<16x32xf32>
    %22 = arith.addf %19, %21 : vector<16x32xf32>
    %23 = math.tanh %22 : vector<16x32xf32>
    %c120 = arith.constant 120 : index
    %c0_13 = arith.constant 0 : index
    %24 = vector.load %arg0[%c120, %c0_13] : memref<1312x128xf32, #tpu.memory_space<vmem>>, vector<32x32xf32>
    %cst_14 = arith.constant dense<0.000000e+00> : vector<16x32xf32>
    %25 = tpu.matmul %23, %24, %cst_14 {dimension_numbers = #tpu.dot_dimension_numbers<[1], [0], [0], [1], [0, 0, 1, 1], [], []>} : vector<16x32xf32>, vector<32x32xf32>, vector<16x32xf32> -> vector<16x32xf32>
    %c152 = arith.constant 152 : index
    %c0_15 = arith.constant 0 : index
    %26 = vector.load %arg0[%c152, %c0_15] : memref<1312x128xf32, #tpu.memory_space<vmem>>, vector<1x32xf32>
    %27 = vector.broadcast %26 : vector<1x32xf32> to vector<16x32xf32>
    %28 = arith.addf %25, %27 : vector<16x32xf32>
    %29 = arith.addf %28, %16 : vector<16x32xf32>
    %cst_16 = arith.constant dense<0.000000e+00> : vector<16xf32>
    %30 = vector.multi_reduction <add>, %29, %cst_16 [1] : vector<16x32xf32> to vector<16xf32>
    %31 = vector.shape_cast %30 : vector<16xf32> to vector<16x1xf32>
    %cst_17 = arith.constant 3.200000e+01 : f32
    %32 = vector.broadcast %cst_17 : f32 to vector<16x1xf32>
    %33 = arith.divf %31, %32 : vector<16x1xf32>
    %34 = arith.mulf %29, %29 : vector<16x32xf32>
    %cst_18 = arith.constant dense<0.000000e+00> : vector<16xf32>
    %35 = vector.multi_reduction <add>, %34, %cst_18 [1] : vector<16x32xf32> to vector<16xf32>
    %36 = vector.shape_cast %35 : vector<16xf32> to vector<16x1xf32>
    %cst_19 = arith.constant 3.200000e+01 : f32
    %37 = vector.broadcast %cst_19 : f32 to vector<16x1xf32>
    %38 = arith.divf %36, %37 : vector<16x1xf32>
    %39 = arith.mulf %33, %33 : vector<16x1xf32>
    %40 = arith.subf %38, %39 : vector<16x1xf32>
    %cst_20 = arith.constant 9.99999974E-6 : f32
    %41 = vector.broadcast %cst_20 : f32 to vector<16x1xf32>
    %42 = arith.addf %40, %41 : vector<16x1xf32>
    %43 = math.rsqrt %42 : vector<16x1xf32>
    %44 = vector.broadcast %33 : vector<16x1xf32> to vector<16x32xf32>
    %45 = arith.subf %29, %44 : vector<16x32xf32>
    %46 = vector.broadcast %43 : vector<16x1xf32> to vector<16x32xf32>
    %47 = arith.mulf %45, %46 : vector<16x32xf32>
    %c297 = arith.constant 297 : index
    %c0_21 = arith.constant 0 : index
    %48 = vector.load %arg0[%c297, %c0_21] : memref<1312x128xf32, #tpu.memory_space<vmem>>, vector<1x32xf32>
    %49 = vector.broadcast %48 : vector<1x32xf32> to vector<16x32xf32>
    %50 = arith.mulf %47, %49 : vector<16x32xf32>
    %c298 = arith.constant 298 : index
    %c0_22 = arith.constant 0 : index
    %51 = vector.load %arg0[%c298, %c0_22] : memref<1312x128xf32, #tpu.memory_space<vmem>>, vector<1x32xf32>
    %52 = vector.broadcast %51 : vector<1x32xf32> to vector<16x32xf32>
    %53 = arith.addf %50, %52 : vector<16x32xf32>
    %c0_23 = arith.constant 0 : index
    %c0_24 = arith.constant 0 : index
    %54 = vector.load %arg3[%c0_23, %c0_24] : memref<16x16xf32, #tpu.memory_space<vmem>>, vector<16x16xf32>
    %c160 = arith.constant 160 : index
    %c0_25 = arith.constant 0 : index
    %55 = vector.load %arg0[%c160, %c0_25] : memref<1312x128xf32, #tpu.memory_space<vmem>>, vector<16x32xf32>
    %cst_26 = arith.constant dense<0.000000e+00> : vector<16x32xf32>
    %56 = tpu.matmul %54, %55, %cst_26 {dimension_numbers = #tpu.dot_dimension_numbers<[1], [0], [0], [1], [0, 0, 1, 1], [], []>} : vector<16x16xf32>, vector<16x32xf32>, vector<16x32xf32> -> vector<16x32xf32>
    %c176 = arith.constant 176 : index
    %c0_27 = arith.constant 0 : index
    %57 = vector.load %arg0[%c176, %c0_27] : memref<1312x128xf32, #tpu.memory_space<vmem>>, vector<1x32xf32>
    %58 = vector.broadcast %57 : vector<1x32xf32> to vector<16x32xf32>
    %59 = arith.addf %56, %58 : vector<16x32xf32>
    %60 = math.tanh %59 : vector<16x32xf32>
    %c184 = arith.constant 184 : index
    %c0_28 = arith.constant 0 : index
    %61 = vector.load %arg0[%c184, %c0_28] : memref<1312x128xf32, #tpu.memory_space<vmem>>, vector<32x32xf32>
    %cst_29 = arith.constant dense<0.000000e+00> : vector<16x32xf32>
    %62 = tpu.matmul %60, %61, %cst_29 {dimension_numbers = #tpu.dot_dimension_numbers<[1], [0], [0], [1], [0, 0, 1, 1], [], []>} : vector<16x32xf32>, vector<32x32xf32>, vector<16x32xf32> -> vector<16x32xf32>
    %c216 = arith.constant 216 : index
    %c0_30 = arith.constant 0 : index
    %63 = vector.load %arg0[%c216, %c0_30] : memref<1312x128xf32, #tpu.memory_space<vmem>>, vector<1x32xf32>
    %64 = vector.broadcast %63 : vector<1x32xf32> to vector<16x32xf32>
    %65 = arith.addf %62, %64 : vector<16x32xf32>
    %c0_31 = arith.constant 0 : index
    %c0_32 = arith.constant 0 : index
    %66 = vector.load %arg4[%c0_31, %c0_32] : memref<16x32xf32, #tpu.memory_space<vmem>>, vector<16x32xf32>
    %67 = arith.addf %65, %66 : vector<16x32xf32>
    %cst_33 = arith.constant dense<0.000000e+00> : vector<16xf32>
    %68 = vector.multi_reduction <add>, %67, %cst_33 [1] : vector<16x32xf32> to vector<16xf32>
    %69 = vector.shape_cast %68 : vector<16xf32> to vector<16x1xf32>
    %cst_34 = arith.constant 3.200000e+01 : f32
    %70 = vector.broadcast %cst_34 : f32 to vector<16x1xf32>
    %71 = arith.divf %69, %70 : vector<16x1xf32>
    %72 = arith.mulf %67, %67 : vector<16x32xf32>
    %cst_35 = arith.constant dense<0.000000e+00> : vector<16xf32>
    %73 = vector.multi_reduction <add>, %72, %cst_35 [1] : vector<16x32xf32> to vector<16xf32>
    %74 = vector.shape_cast %73 : vector<16xf32> to vector<16x1xf32>
    %cst_36 = arith.constant 3.200000e+01 : f32
    %75 = vector.broadcast %cst_36 : f32 to vector<16x1xf32>
    %76 = arith.divf %74, %75 : vector<16x1xf32>
    %77 = arith.mulf %71, %71 : vector<16x1xf32>
    %78 = arith.subf %76, %77 : vector<16x1xf32>
    %cst_37 = arith.constant 9.99999974E-6 : f32
    %79 = vector.broadcast %cst_37 : f32 to vector<16x1xf32>
    %80 = arith.addf %78, %79 : vector<16x1xf32>
    %81 = math.rsqrt %80 : vector<16x1xf32>
    %82 = vector.broadcast %71 : vector<16x1xf32> to vector<16x32xf32>
    %83 = arith.subf %67, %82 : vector<16x32xf32>
    %84 = vector.broadcast %81 : vector<16x1xf32> to vector<16x32xf32>
    %85 = arith.mulf %83, %84 : vector<16x32xf32>
    %c299 = arith.constant 299 : index
    %c0_38 = arith.constant 0 : index
    %86 = vector.load %arg0[%c299, %c0_38] : memref<1312x128xf32, #tpu.memory_space<vmem>>, vector<1x32xf32>
    %87 = vector.broadcast %86 : vector<1x32xf32> to vector<16x32xf32>
    %88 = arith.mulf %85, %87 : vector<16x32xf32>
    %c300 = arith.constant 300 : index
    %c0_39 = arith.constant 0 : index
    %89 = vector.load %arg0[%c300, %c0_39] : memref<1312x128xf32, #tpu.memory_space<vmem>>, vector<1x32xf32>
    %90 = vector.broadcast %89 : vector<1x32xf32> to vector<16x32xf32>
    %91 = arith.addf %88, %90 : vector<16x32xf32>
    %c0_40 = arith.constant 0 : index
    %c0_41 = arith.constant 0 : index
    %92 = vector.load %arg6[%c0_40, %c0_41] : memref<16x16xf32, #tpu.memory_space<vmem>>, vector<16x16xf32>
    %c304 = arith.constant 304 : index
    %c0_42 = arith.constant 0 : index
    %93 = vector.load %arg0[%c304, %c0_42] : memref<1312x128xf32, #tpu.memory_space<vmem>>, vector<32x96xf32>
    %cst_43 = arith.constant dense<0.000000e+00> : vector<16x96xf32>
    %94 = tpu.matmul %91, %93, %cst_43 {dimension_numbers = #tpu.dot_dimension_numbers<[1], [0], [0], [1], [0, 0, 1, 1], [], []>} : vector<16x32xf32>, vector<32x96xf32>, vector<16x96xf32> -> vector<16x96xf32>
    %c336 = arith.constant 336 : index
    %c0_44 = arith.constant 0 : index
    %95 = vector.load %arg0[%c336, %c0_44] : memref<1312x128xf32, #tpu.memory_space<vmem>>, vector<1x96xf32>
    %96 = vector.broadcast %95 : vector<1x96xf32> to vector<16x96xf32>
    %97 = arith.addf %94, %96 : vector<16x96xf32>
    %98 = vector.extract_strided_slice %97 {offsets = [0, 0], sizes = [16, 16], strides = [1, 1]} : vector<16x96xf32> to vector<16x16xf32>
    %99 = vector.extract_strided_slice %97 {offsets = [0, 32], sizes = [16, 16], strides = [1, 1]} : vector<16x96xf32> to vector<16x16xf32>
    %100 = vector.extract_strided_slice %97 {offsets = [0, 64], sizes = [16, 16], strides = [1, 1]} : vector<16x96xf32> to vector<16x16xf32>
    %cst_45 = arith.constant dense<0.000000e+00> : vector<16x16xf32>
    %101 = tpu.matmul %98, %99, %cst_45 {dimension_numbers = #tpu.dot_dimension_numbers<[1], [1], [0], [0], [0, 0, 1, 0], [], []>} : vector<16x16xf32>, vector<16x16xf32>, vector<16x16xf32> -> vector<16x16xf32>
    %cst_46 = arith.constant 2.500000e-01 : f32
    %102 = vector.broadcast %cst_46 : f32 to vector<16x16xf32>
    %103 = arith.mulf %101, %102 : vector<16x16xf32>
    %104 = arith.addf %103, %92 : vector<16x16xf32>
    %cst_47 = arith.constant dense<0xFF800000> : vector<16xf32>
    %105 = vector.multi_reduction <maximumf>, %104, %cst_47 [1] : vector<16x16xf32> to vector<16xf32>
    %106 = vector.shape_cast %105 : vector<16xf32> to vector<16x1xf32>
    %107 = vector.broadcast %106 : vector<16x1xf32> to vector<16x16xf32>
    %108 = arith.subf %104, %107 : vector<16x16xf32>
    %109 = math.exp %108 : vector<16x16xf32>
    %cst_48 = arith.constant dense<0.000000e+00> : vector<16xf32>
    %110 = vector.multi_reduction <add>, %109, %cst_48 [1] : vector<16x16xf32> to vector<16xf32>
    %111 = vector.shape_cast %110 : vector<16xf32> to vector<16x1xf32>
    %112 = tpu.reciprocal %111 {approx = true} : vector<16x1xf32> -> vector<16x1xf32>
    %113 = vector.broadcast %112 : vector<16x1xf32> to vector<16x16xf32>
    %114 = arith.mulf %109, %113 : vector<16x16xf32>
    %cst_49 = arith.constant dense<0.000000e+00> : vector<16x16xf32>
    %115 = tpu.matmul %114, %100, %cst_49 {dimension_numbers = #tpu.dot_dimension_numbers<[1], [0], [0], [1], [0, 0, 1, 1], [], []>} : vector<16x16xf32>, vector<16x16xf32>, vector<16x16xf32> -> vector<16x16xf32>
    %116 = vector.extract_strided_slice %97 {offsets = [0, 16], sizes = [16, 16], strides = [1, 1]} : vector<16x96xf32> to vector<16x16xf32>
    %117 = vector.extract_strided_slice %97 {offsets = [0, 48], sizes = [16, 16], strides = [1, 1]} : vector<16x96xf32> to vector<16x16xf32>
    %118 = vector.extract_strided_slice %97 {offsets = [0, 80], sizes = [16, 16], strides = [1, 1]} : vector<16x96xf32> to vector<16x16xf32>
    %cst_50 = arith.constant dense<0.000000e+00> : vector<16x16xf32>
    %119 = tpu.matmul %116, %117, %cst_50 {dimension_numbers = #tpu.dot_dimension_numbers<[1], [1], [0], [0], [0, 0, 1, 0], [], []>} : vector<16x16xf32>, vector<16x16xf32>, vector<16x16xf32> -> vector<16x16xf32>
    %cst_51 = arith.constant 2.500000e-01 : f32
    %120 = vector.broadcast %cst_51 : f32 to vector<16x16xf32>
    %121 = arith.mulf %119, %120 : vector<16x16xf32>
    %122 = arith.addf %121, %92 : vector<16x16xf32>
    %cst_52 = arith.constant dense<0xFF800000> : vector<16xf32>
    %123 = vector.multi_reduction <maximumf>, %122, %cst_52 [1] : vector<16x16xf32> to vector<16xf32>
    %124 = vector.shape_cast %123 : vector<16xf32> to vector<16x1xf32>
    %125 = vector.broadcast %124 : vector<16x1xf32> to vector<16x16xf32>
    %126 = arith.subf %122, %125 : vector<16x16xf32>
    %127 = math.exp %126 : vector<16x16xf32>
    %cst_53 = arith.constant dense<0.000000e+00> : vector<16xf32>
    %128 = vector.multi_reduction <add>, %127, %cst_53 [1] : vector<16x16xf32> to vector<16xf32>
    %129 = vector.shape_cast %128 : vector<16xf32> to vector<16x1xf32>
    %130 = tpu.reciprocal %129 {approx = true} : vector<16x1xf32> -> vector<16x1xf32>
    %131 = vector.broadcast %130 : vector<16x1xf32> to vector<16x16xf32>
    %132 = arith.mulf %127, %131 : vector<16x16xf32>
    %cst_54 = arith.constant dense<0.000000e+00> : vector<16x16xf32>
    %133 = tpu.matmul %132, %118, %cst_54 {dimension_numbers = #tpu.dot_dimension_numbers<[1], [0], [0], [1], [0, 0, 1, 1], [], []>} : vector<16x16xf32>, vector<16x16xf32>, vector<16x16xf32> -> vector<16x16xf32>
    %134 = tpu.concatenate %115, %133 in 1 : vector<16x16xf32>, vector<16x16xf32> -> vector<16x32xf32>
    %c344 = arith.constant 344 : index
    %c0_55 = arith.constant 0 : index
    %135 = vector.load %arg0[%c344, %c0_55] : memref<1312x128xf32, #tpu.memory_space<vmem>>, vector<32x32xf32>
    %cst_56 = arith.constant dense<0.000000e+00> : vector<16x32xf32>
    %136 = tpu.matmul %134, %135, %cst_56 {dimension_numbers = #tpu.dot_dimension_numbers<[1], [0], [0], [1], [0, 0, 1, 1], [], []>} : vector<16x32xf32>, vector<32x32xf32>, vector<16x32xf32> -> vector<16x32xf32>
    %c376 = arith.constant 376 : index
    %c0_57 = arith.constant 0 : index
    %137 = vector.load %arg0[%c376, %c0_57] : memref<1312x128xf32, #tpu.memory_space<vmem>>, vector<1x32xf32>
    %138 = vector.broadcast %137 : vector<1x32xf32> to vector<16x32xf32>
    %139 = arith.addf %136, %138 : vector<16x32xf32>
    %140 = arith.addf %91, %139 : vector<16x32xf32>
    %cst_58 = arith.constant dense<0.000000e+00> : vector<16xf32>
    %141 = vector.multi_reduction <add>, %140, %cst_58 [1] : vector<16x32xf32> to vector<16xf32>
    %142 = vector.shape_cast %141 : vector<16xf32> to vector<16x1xf32>
    %cst_59 = arith.constant 3.200000e+01 : f32
    %143 = vector.broadcast %cst_59 : f32 to vector<16x1xf32>
    %144 = arith.divf %142, %143 : vector<16x1xf32>
    %145 = arith.mulf %140, %140 : vector<16x32xf32>
    %cst_60 = arith.constant dense<0.000000e+00> : vector<16xf32>
    %146 = vector.multi_reduction <add>, %145, %cst_60 [1] : vector<16x32xf32> to vector<16xf32>
    %147 = vector.shape_cast %146 : vector<16xf32> to vector<16x1xf32>
    %cst_61 = arith.constant 3.200000e+01 : f32
    %148 = vector.broadcast %cst_61 : f32 to vector<16x1xf32>
    %149 = arith.divf %147, %148 : vector<16x1xf32>
    %150 = arith.mulf %144, %144 : vector<16x1xf32>
    %151 = arith.subf %149, %150 : vector<16x1xf32>
    %cst_62 = arith.constant 9.99999974E-6 : f32
    %152 = vector.broadcast %cst_62 : f32 to vector<16x1xf32>
    %153 = arith.addf %151, %152 : vector<16x1xf32>
    %154 = math.rsqrt %153 : vector<16x1xf32>
    %155 = vector.broadcast %144 : vector<16x1xf32> to vector<16x32xf32>
    %156 = arith.subf %140, %155 : vector<16x32xf32>
    %157 = vector.broadcast %154 : vector<16x1xf32> to vector<16x32xf32>
    %158 = arith.mulf %156, %157 : vector<16x32xf32>
    %c377 = arith.constant 377 : index
    %c0_63 = arith.constant 0 : index
    %159 = vector.load %arg0[%c377, %c0_63] : memref<1312x128xf32, #tpu.memory_space<vmem>>, vector<1x32xf32>
    %160 = vector.broadcast %159 : vector<1x32xf32> to vector<16x32xf32>
    %161 = arith.mulf %158, %160 : vector<16x32xf32>
    %c378 = arith.constant 378 : index
    %c0_64 = arith.constant 0 : index
    %162 = vector.load %arg0[%c378, %c0_64] : memref<1312x128xf32, #tpu.memory_space<vmem>>, vector<1x32xf32>
    %163 = vector.broadcast %162 : vector<1x32xf32> to vector<16x32xf32>
    %164 = arith.addf %161, %163 : vector<16x32xf32>
    %c384 = arith.constant 384 : index
    %c0_65 = arith.constant 0 : index
    %165 = vector.load %arg0[%c384, %c0_65] : memref<1312x128xf32, #tpu.memory_space<vmem>>, vector<32x64xf32>
    %cst_66 = arith.constant dense<0.000000e+00> : vector<16x64xf32>
    %166 = tpu.matmul %164, %165, %cst_66 {dimension_numbers = #tpu.dot_dimension_numbers<[1], [0], [0], [1], [0, 0, 1, 1], [], []>} : vector<16x32xf32>, vector<32x64xf32>, vector<16x64xf32> -> vector<16x64xf32>
    %c416 = arith.constant 416 : index
    %c0_67 = arith.constant 0 : index
    %167 = vector.load %arg0[%c416, %c0_67] : memref<1312x128xf32, #tpu.memory_space<vmem>>, vector<1x64xf32>
    %168 = vector.broadcast %167 : vector<1x64xf32> to vector<16x64xf32>
    %169 = arith.addf %166, %168 : vector<16x64xf32>
    %cst_68 = arith.constant 5.000000e-01 : f32
    %170 = vector.broadcast %cst_68 : f32 to vector<16x64xf32>
    %171 = arith.mulf %170, %169 : vector<16x64xf32>
    %cst_69 = arith.constant 0.707106769 : f32
    %172 = vector.broadcast %cst_69 : f32 to vector<16x64xf32>
    %173 = arith.mulf %169, %172 : vector<16x64xf32>
    %174 = math.erf %173 : vector<16x64xf32>
    %cst_70 = arith.constant 1.000000e+00 : f32
    %175 = vector.broadcast %cst_70 : f32 to vector<16x64xf32>
    %176 = arith.addf %175, %174 : vector<16x64xf32>
    %177 = arith.mulf %171, %176 : vector<16x64xf32>
    %c424 = arith.constant 424 : index
    %c0_71 = arith.constant 0 : index
    %178 = vector.load %arg0[%c424, %c0_71] : memref<1312x128xf32, #tpu.memory_space<vmem>>, vector<64x32xf32>
    %cst_72 = arith.constant dense<0.000000e+00> : vector<16x32xf32>
    %179 = tpu.matmul %177, %178, %cst_72 {dimension_numbers = #tpu.dot_dimension_numbers<[1], [0], [0], [1], [0, 0, 1, 1], [], []>} : vector<16x64xf32>, vector<64x32xf32>, vector<16x32xf32> -> vector<16x32xf32>
    %c488 = arith.constant 488 : index
    %c0_73 = arith.constant 0 : index
    %180 = vector.load %arg0[%c488, %c0_73] : memref<1312x128xf32, #tpu.memory_space<vmem>>, vector<1x32xf32>
    %181 = vector.broadcast %180 : vector<1x32xf32> to vector<16x32xf32>
    %182 = arith.addf %179, %181 : vector<16x32xf32>
    %183 = arith.addf %164, %182 : vector<16x32xf32>
    %cst_74 = arith.constant dense<0.000000e+00> : vector<16xf32>
    %184 = vector.multi_reduction <add>, %183, %cst_74 [1] : vector<16x32xf32> to vector<16xf32>
    %185 = vector.shape_cast %184 : vector<16xf32> to vector<16x1xf32>
    %cst_75 = arith.constant 3.200000e+01 : f32
    %186 = vector.broadcast %cst_75 : f32 to vector<16x1xf32>
    %187 = arith.divf %185, %186 : vector<16x1xf32>
    %188 = arith.mulf %183, %183 : vector<16x32xf32>
    %cst_76 = arith.constant dense<0.000000e+00> : vector<16xf32>
    %189 = vector.multi_reduction <add>, %188, %cst_76 [1] : vector<16x32xf32> to vector<16xf32>
    %190 = vector.shape_cast %189 : vector<16xf32> to vector<16x1xf32>
    %cst_77 = arith.constant 3.200000e+01 : f32
    %191 = vector.broadcast %cst_77 : f32 to vector<16x1xf32>
    %192 = arith.divf %190, %191 : vector<16x1xf32>
    %193 = arith.mulf %187, %187 : vector<16x1xf32>
    %194 = arith.subf %192, %193 : vector<16x1xf32>
    %cst_78 = arith.constant 9.99999974E-6 : f32
    %195 = vector.broadcast %cst_78 : f32 to vector<16x1xf32>
    %196 = arith.addf %194, %195 : vector<16x1xf32>
    %197 = math.rsqrt %196 : vector<16x1xf32>
    %198 = vector.broadcast %187 : vector<16x1xf32> to vector<16x32xf32>
    %199 = arith.subf %183, %198 : vector<16x32xf32>
    %200 = vector.broadcast %197 : vector<16x1xf32> to vector<16x32xf32>
    %201 = arith.mulf %199, %200 : vector<16x32xf32>
    %c489 = arith.constant 489 : index
    %c0_79 = arith.constant 0 : index
    %202 = vector.load %arg0[%c489, %c0_79] : memref<1312x128xf32, #tpu.memory_space<vmem>>, vector<1x32xf32>
    %203 = vector.broadcast %202 : vector<1x32xf32> to vector<16x32xf32>
    %204 = arith.mulf %201, %203 : vector<16x32xf32>
    %c490 = arith.constant 490 : index
    %c0_80 = arith.constant 0 : index
    %205 = vector.load %arg0[%c490, %c0_80] : memref<1312x128xf32, #tpu.memory_space<vmem>>, vector<1x32xf32>
    %206 = vector.broadcast %205 : vector<1x32xf32> to vector<16x32xf32>
    %207 = arith.addf %204, %206 : vector<16x32xf32>
    %c496 = arith.constant 496 : index
    %c0_81 = arith.constant 0 : index
    %208 = vector.load %arg0[%c496, %c0_81] : memref<1312x128xf32, #tpu.memory_space<vmem>>, vector<32x96xf32>
    %cst_82 = arith.constant dense<0.000000e+00> : vector<16x96xf32>
    %209 = tpu.matmul %207, %208, %cst_82 {dimension_numbers = #tpu.dot_dimension_numbers<[1], [0], [0], [1], [0, 0, 1, 1], [], []>} : vector<16x32xf32>, vector<32x96xf32>, vector<16x96xf32> -> vector<16x96xf32>
    %c528 = arith.constant 528 : index
    %c0_83 = arith.constant 0 : index
    %210 = vector.load %arg0[%c528, %c0_83] : memref<1312x128xf32, #tpu.memory_space<vmem>>, vector<1x96xf32>
    %211 = vector.broadcast %210 : vector<1x96xf32> to vector<16x96xf32>
    %212 = arith.addf %209, %211 : vector<16x96xf32>
    %213 = vector.extract_strided_slice %212 {offsets = [0, 0], sizes = [16, 16], strides = [1, 1]} : vector<16x96xf32> to vector<16x16xf32>
    %214 = vector.extract_strided_slice %212 {offsets = [0, 32], sizes = [16, 16], strides = [1, 1]} : vector<16x96xf32> to vector<16x16xf32>
    %215 = vector.extract_strided_slice %212 {offsets = [0, 64], sizes = [16, 16], strides = [1, 1]} : vector<16x96xf32> to vector<16x16xf32>
    %cst_84 = arith.constant dense<0.000000e+00> : vector<16x16xf32>
    %216 = tpu.matmul %213, %214, %cst_84 {dimension_numbers = #tpu.dot_dimension_numbers<[1], [1], [0], [0], [0, 0, 1, 0], [], []>} : vector<16x16xf32>, vector<16x16xf32>, vector<16x16xf32> -> vector<16x16xf32>
    %cst_85 = arith.constant 2.500000e-01 : f32
    %217 = vector.broadcast %cst_85 : f32 to vector<16x16xf32>
    %218 = arith.mulf %216, %217 : vector<16x16xf32>
    %219 = arith.addf %218, %92 : vector<16x16xf32>
    %cst_86 = arith.constant dense<0xFF800000> : vector<16xf32>
    %220 = vector.multi_reduction <maximumf>, %219, %cst_86 [1] : vector<16x16xf32> to vector<16xf32>
    %221 = vector.shape_cast %220 : vector<16xf32> to vector<16x1xf32>
    %222 = vector.broadcast %221 : vector<16x1xf32> to vector<16x16xf32>
    %223 = arith.subf %219, %222 : vector<16x16xf32>
    %224 = math.exp %223 : vector<16x16xf32>
    %cst_87 = arith.constant dense<0.000000e+00> : vector<16xf32>
    %225 = vector.multi_reduction <add>, %224, %cst_87 [1] : vector<16x16xf32> to vector<16xf32>
    %226 = vector.shape_cast %225 : vector<16xf32> to vector<16x1xf32>
    %227 = tpu.reciprocal %226 {approx = true} : vector<16x1xf32> -> vector<16x1xf32>
    %228 = vector.broadcast %227 : vector<16x1xf32> to vector<16x16xf32>
    %229 = arith.mulf %224, %228 : vector<16x16xf32>
    %cst_88 = arith.constant dense<0.000000e+00> : vector<16x16xf32>
    %230 = tpu.matmul %229, %215, %cst_88 {dimension_numbers = #tpu.dot_dimension_numbers<[1], [0], [0], [1], [0, 0, 1, 1], [], []>} : vector<16x16xf32>, vector<16x16xf32>, vector<16x16xf32> -> vector<16x16xf32>
    %231 = vector.extract_strided_slice %212 {offsets = [0, 16], sizes = [16, 16], strides = [1, 1]} : vector<16x96xf32> to vector<16x16xf32>
    %232 = vector.extract_strided_slice %212 {offsets = [0, 48], sizes = [16, 16], strides = [1, 1]} : vector<16x96xf32> to vector<16x16xf32>
    %233 = vector.extract_strided_slice %212 {offsets = [0, 80], sizes = [16, 16], strides = [1, 1]} : vector<16x96xf32> to vector<16x16xf32>
    %cst_89 = arith.constant dense<0.000000e+00> : vector<16x16xf32>
    %234 = tpu.matmul %231, %232, %cst_89 {dimension_numbers = #tpu.dot_dimension_numbers<[1], [1], [0], [0], [0, 0, 1, 0], [], []>} : vector<16x16xf32>, vector<16x16xf32>, vector<16x16xf32> -> vector<16x16xf32>
    %cst_90 = arith.constant 2.500000e-01 : f32
    %235 = vector.broadcast %cst_90 : f32 to vector<16x16xf32>
    %236 = arith.mulf %234, %235 : vector<16x16xf32>
    %237 = arith.addf %236, %92 : vector<16x16xf32>
    %cst_91 = arith.constant dense<0xFF800000> : vector<16xf32>
    %238 = vector.multi_reduction <maximumf>, %237, %cst_91 [1] : vector<16x16xf32> to vector<16xf32>
    %239 = vector.shape_cast %238 : vector<16xf32> to vector<16x1xf32>
    %240 = vector.broadcast %239 : vector<16x1xf32> to vector<16x16xf32>
    %241 = arith.subf %237, %240 : vector<16x16xf32>
    %242 = math.exp %241 : vector<16x16xf32>
    %cst_92 = arith.constant dense<0.000000e+00> : vector<16xf32>
    %243 = vector.multi_reduction <add>, %242, %cst_92 [1] : vector<16x16xf32> to vector<16xf32>
    %244 = vector.shape_cast %243 : vector<16xf32> to vector<16x1xf32>
    %245 = tpu.reciprocal %244 {approx = true} : vector<16x1xf32> -> vector<16x1xf32>
    %246 = vector.broadcast %245 : vector<16x1xf32> to vector<16x16xf32>
    %247 = arith.mulf %242, %246 : vector<16x16xf32>
    %cst_93 = arith.constant dense<0.000000e+00> : vector<16x16xf32>
    %248 = tpu.matmul %247, %233, %cst_93 {dimension_numbers = #tpu.dot_dimension_numbers<[1], [0], [0], [1], [0, 0, 1, 1], [], []>} : vector<16x16xf32>, vector<16x16xf32>, vector<16x16xf32> -> vector<16x16xf32>
    %249 = tpu.concatenate %230, %248 in 1 : vector<16x16xf32>, vector<16x16xf32> -> vector<16x32xf32>
    %c536 = arith.constant 536 : index
    %c0_94 = arith.constant 0 : index
    %250 = vector.load %arg0[%c536, %c0_94] : memref<1312x128xf32, #tpu.memory_space<vmem>>, vector<32x32xf32>
    %cst_95 = arith.constant dense<0.000000e+00> : vector<16x32xf32>
    %251 = tpu.matmul %249, %250, %cst_95 {dimension_numbers = #tpu.dot_dimension_numbers<[1], [0], [0], [1], [0, 0, 1, 1], [], []>} : vector<16x32xf32>, vector<32x32xf32>, vector<16x32xf32> -> vector<16x32xf32>
    %c568 = arith.constant 568 : index
    %c0_96 = arith.constant 0 : index
    %252 = vector.load %arg0[%c568, %c0_96] : memref<1312x128xf32, #tpu.memory_space<vmem>>, vector<1x32xf32>
    %253 = vector.broadcast %252 : vector<1x32xf32> to vector<16x32xf32>
    %254 = arith.addf %251, %253 : vector<16x32xf32>
    %255 = arith.addf %207, %254 : vector<16x32xf32>
    %cst_97 = arith.constant dense<0.000000e+00> : vector<16xf32>
    %256 = vector.multi_reduction <add>, %255, %cst_97 [1] : vector<16x32xf32> to vector<16xf32>
    %257 = vector.shape_cast %256 : vector<16xf32> to vector<16x1xf32>
    %cst_98 = arith.constant 3.200000e+01 : f32
    %258 = vector.broadcast %cst_98 : f32 to vector<16x1xf32>
    %259 = arith.divf %257, %258 : vector<16x1xf32>
    %260 = arith.mulf %255, %255 : vector<16x32xf32>
    %cst_99 = arith.constant dense<0.000000e+00> : vector<16xf32>
    %261 = vector.multi_reduction <add>, %260, %cst_99 [1] : vector<16x32xf32> to vector<16xf32>
    %262 = vector.shape_cast %261 : vector<16xf32> to vector<16x1xf32>
    %cst_100 = arith.constant 3.200000e+01 : f32
    %263 = vector.broadcast %cst_100 : f32 to vector<16x1xf32>
    %264 = arith.divf %262, %263 : vector<16x1xf32>
    %265 = arith.mulf %259, %259 : vector<16x1xf32>
    %266 = arith.subf %264, %265 : vector<16x1xf32>
    %cst_101 = arith.constant 9.99999974E-6 : f32
    %267 = vector.broadcast %cst_101 : f32 to vector<16x1xf32>
    %268 = arith.addf %266, %267 : vector<16x1xf32>
    %269 = math.rsqrt %268 : vector<16x1xf32>
    %270 = vector.broadcast %259 : vector<16x1xf32> to vector<16x32xf32>
    %271 = arith.subf %255, %270 : vector<16x32xf32>
    %272 = vector.broadcast %269 : vector<16x1xf32> to vector<16x32xf32>
    %273 = arith.mulf %271, %272 : vector<16x32xf32>
    %c569 = arith.constant 569 : index
    %c0_102 = arith.constant 0 : index
    %274 = vector.load %arg0[%c569, %c0_102] : memref<1312x128xf32, #tpu.memory_space<vmem>>, vector<1x32xf32>
    %275 = vector.broadcast %274 : vector<1x32xf32> to vector<16x32xf32>
    %276 = arith.mulf %273, %275 : vector<16x32xf32>
    %c570 = arith.constant 570 : index
    %c0_103 = arith.constant 0 : index
    %277 = vector.load %arg0[%c570, %c0_103] : memref<1312x128xf32, #tpu.memory_space<vmem>>, vector<1x32xf32>
    %278 = vector.broadcast %277 : vector<1x32xf32> to vector<16x32xf32>
    %279 = arith.addf %276, %278 : vector<16x32xf32>
    %c576 = arith.constant 576 : index
    %c0_104 = arith.constant 0 : index
    %280 = vector.load %arg0[%c576, %c0_104] : memref<1312x128xf32, #tpu.memory_space<vmem>>, vector<32x64xf32>
    %cst_105 = arith.constant dense<0.000000e+00> : vector<16x64xf32>
    %281 = tpu.matmul %279, %280, %cst_105 {dimension_numbers = #tpu.dot_dimension_numbers<[1], [0], [0], [1], [0, 0, 1, 1], [], []>} : vector<16x32xf32>, vector<32x64xf32>, vector<16x64xf32> -> vector<16x64xf32>
    %c608 = arith.constant 608 : index
    %c0_106 = arith.constant 0 : index
    %282 = vector.load %arg0[%c608, %c0_106] : memref<1312x128xf32, #tpu.memory_space<vmem>>, vector<1x64xf32>
    %283 = vector.broadcast %282 : vector<1x64xf32> to vector<16x64xf32>
    %284 = arith.addf %281, %283 : vector<16x64xf32>
    %cst_107 = arith.constant 5.000000e-01 : f32
    %285 = vector.broadcast %cst_107 : f32 to vector<16x64xf32>
    %286 = arith.mulf %285, %284 : vector<16x64xf32>
    %cst_108 = arith.constant 0.707106769 : f32
    %287 = vector.broadcast %cst_108 : f32 to vector<16x64xf32>
    %288 = arith.mulf %284, %287 : vector<16x64xf32>
    %289 = math.erf %288 : vector<16x64xf32>
    %cst_109 = arith.constant 1.000000e+00 : f32
    %290 = vector.broadcast %cst_109 : f32 to vector<16x64xf32>
    %291 = arith.addf %290, %289 : vector<16x64xf32>
    %292 = arith.mulf %286, %291 : vector<16x64xf32>
    %c616 = arith.constant 616 : index
    %c0_110 = arith.constant 0 : index
    %293 = vector.load %arg0[%c616, %c0_110] : memref<1312x128xf32, #tpu.memory_space<vmem>>, vector<64x32xf32>
    %cst_111 = arith.constant dense<0.000000e+00> : vector<16x32xf32>
    %294 = tpu.matmul %292, %293, %cst_111 {dimension_numbers = #tpu.dot_dimension_numbers<[1], [0], [0], [1], [0, 0, 1, 1], [], []>} : vector<16x64xf32>, vector<64x32xf32>, vector<16x32xf32> -> vector<16x32xf32>
    %c680 = arith.constant 680 : index
    %c0_112 = arith.constant 0 : index
    %295 = vector.load %arg0[%c680, %c0_112] : memref<1312x128xf32, #tpu.memory_space<vmem>>, vector<1x32xf32>
    %296 = vector.broadcast %295 : vector<1x32xf32> to vector<16x32xf32>
    %297 = arith.addf %294, %296 : vector<16x32xf32>
    %298 = arith.addf %279, %297 : vector<16x32xf32>
    %cst_113 = arith.constant dense<0.000000e+00> : vector<16xf32>
    %299 = vector.multi_reduction <add>, %298, %cst_113 [1] : vector<16x32xf32> to vector<16xf32>
    %300 = vector.shape_cast %299 : vector<16xf32> to vector<16x1xf32>
    %cst_114 = arith.constant 3.200000e+01 : f32
    %301 = vector.broadcast %cst_114 : f32 to vector<16x1xf32>
    %302 = arith.divf %300, %301 : vector<16x1xf32>
    %303 = arith.mulf %298, %298 : vector<16x32xf32>
    %cst_115 = arith.constant dense<0.000000e+00> : vector<16xf32>
    %304 = vector.multi_reduction <add>, %303, %cst_115 [1] : vector<16x32xf32> to vector<16xf32>
    %305 = vector.shape_cast %304 : vector<16xf32> to vector<16x1xf32>
    %cst_116 = arith.constant 3.200000e+01 : f32
    %306 = vector.broadcast %cst_116 : f32 to vector<16x1xf32>
    %307 = arith.divf %305, %306 : vector<16x1xf32>
    %308 = arith.mulf %302, %302 : vector<16x1xf32>
    %309 = arith.subf %307, %308 : vector<16x1xf32>
    %cst_117 = arith.constant 9.99999974E-6 : f32
    %310 = vector.broadcast %cst_117 : f32 to vector<16x1xf32>
    %311 = arith.addf %309, %310 : vector<16x1xf32>
    %312 = math.rsqrt %311 : vector<16x1xf32>
    %313 = vector.broadcast %302 : vector<16x1xf32> to vector<16x32xf32>
    %314 = arith.subf %298, %313 : vector<16x32xf32>
    %315 = vector.broadcast %312 : vector<16x1xf32> to vector<16x32xf32>
    %316 = arith.mulf %314, %315 : vector<16x32xf32>
    %c681 = arith.constant 681 : index
    %c0_118 = arith.constant 0 : index
    %317 = vector.load %arg0[%c681, %c0_118] : memref<1312x128xf32, #tpu.memory_space<vmem>>, vector<1x32xf32>
    %318 = vector.broadcast %317 : vector<1x32xf32> to vector<16x32xf32>
    %319 = arith.mulf %316, %318 : vector<16x32xf32>
    %c682 = arith.constant 682 : index
    %c0_119 = arith.constant 0 : index
    %320 = vector.load %arg0[%c682, %c0_119] : memref<1312x128xf32, #tpu.memory_space<vmem>>, vector<1x32xf32>
    %321 = vector.broadcast %320 : vector<1x32xf32> to vector<16x32xf32>
    %322 = arith.addf %319, %321 : vector<16x32xf32>
    %c0_120 = arith.constant 0 : index
    %c0_121 = arith.constant 0 : index
    %323 = vector.load %arg5[%c0_120, %c0_121] : memref<16x32xf32, #tpu.memory_space<vmem>>, vector<16x32xf32>
    %324 = arith.addf %53, %323 : vector<16x32xf32>
    %cst_122 = arith.constant dense<0.000000e+00> : vector<16xf32>
    %325 = vector.multi_reduction <add>, %324, %cst_122 [1] : vector<16x32xf32> to vector<16xf32>
    %326 = vector.shape_cast %325 : vector<16xf32> to vector<16x1xf32>
    %cst_123 = arith.constant 3.200000e+01 : f32
    %327 = vector.broadcast %cst_123 : f32 to vector<16x1xf32>
    %328 = arith.divf %326, %327 : vector<16x1xf32>
    %329 = arith.mulf %324, %324 : vector<16x32xf32>
    %cst_124 = arith.constant dense<0.000000e+00> : vector<16xf32>
    %330 = vector.multi_reduction <add>, %329, %cst_124 [1] : vector<16x32xf32> to vector<16xf32>
    %331 = vector.shape_cast %330 : vector<16xf32> to vector<16x1xf32>
    %cst_125 = arith.constant 3.200000e+01 : f32
    %332 = vector.broadcast %cst_125 : f32 to vector<16x1xf32>
    %333 = arith.divf %331, %332 : vector<16x1xf32>
    %334 = arith.mulf %328, %328 : vector<16x1xf32>
    %335 = arith.subf %333, %334 : vector<16x1xf32>
    %cst_126 = arith.constant 9.99999974E-6 : f32
    %336 = vector.broadcast %cst_126 : f32 to vector<16x1xf32>
    %337 = arith.addf %335, %336 : vector<16x1xf32>
    %338 = math.rsqrt %337 : vector<16x1xf32>
    %339 = vector.broadcast %328 : vector<16x1xf32> to vector<16x32xf32>
    %340 = arith.subf %324, %339 : vector<16x32xf32>
    %341 = vector.broadcast %338 : vector<16x1xf32> to vector<16x32xf32>
    %342 = arith.mulf %340, %341 : vector<16x32xf32>
    %c301 = arith.constant 301 : index
    %c0_127 = arith.constant 0 : index
    %343 = vector.load %arg0[%c301, %c0_127] : memref<1312x128xf32, #tpu.memory_space<vmem>>, vector<1x32xf32>
    %344 = vector.broadcast %343 : vector<1x32xf32> to vector<16x32xf32>
    %345 = arith.mulf %342, %344 : vector<16x32xf32>
    %c302 = arith.constant 302 : index
    %c0_128 = arith.constant 0 : index
    %346 = vector.load %arg0[%c302, %c0_128] : memref<1312x128xf32, #tpu.memory_space<vmem>>, vector<1x32xf32>
    %347 = vector.broadcast %346 : vector<1x32xf32> to vector<16x32xf32>
    %348 = arith.addf %345, %347 : vector<16x32xf32>
    %c0_129 = arith.constant 0 : index
    %c0_130 = arith.constant 0 : index
    %349 = vector.load %arg7[%c0_129, %c0_130] : memref<16x16xf32, #tpu.memory_space<vmem>>, vector<16x16xf32>
    %c0_131 = arith.constant 0 : index
    %c0_132 = arith.constant 0 : index
    %350 = vector.load %arg8[%c0_131, %c0_132] : memref<16x16xf32, #tpu.memory_space<vmem>>, vector<16x16xf32>
    %c688 = arith.constant 688 : index
    %c0_133 = arith.constant 0 : index
    %351 = vector.load %arg0[%c688, %c0_133] : memref<1312x128xf32, #tpu.memory_space<vmem>>, vector<32x96xf32>
    %cst_134 = arith.constant dense<0.000000e+00> : vector<16x96xf32>
    %352 = tpu.matmul %348, %351, %cst_134 {dimension_numbers = #tpu.dot_dimension_numbers<[1], [0], [0], [1], [0, 0, 1, 1], [], []>} : vector<16x32xf32>, vector<32x96xf32>, vector<16x96xf32> -> vector<16x96xf32>
    %c720 = arith.constant 720 : index
    %c0_135 = arith.constant 0 : index
    %353 = vector.load %arg0[%c720, %c0_135] : memref<1312x128xf32, #tpu.memory_space<vmem>>, vector<1x96xf32>
    %354 = vector.broadcast %353 : vector<1x96xf32> to vector<16x96xf32>
    %355 = arith.addf %352, %354 : vector<16x96xf32>
    %356 = vector.extract_strided_slice %355 {offsets = [0, 0], sizes = [16, 16], strides = [1, 1]} : vector<16x96xf32> to vector<16x16xf32>
    %357 = vector.extract_strided_slice %355 {offsets = [0, 32], sizes = [16, 16], strides = [1, 1]} : vector<16x96xf32> to vector<16x16xf32>
    %358 = vector.extract_strided_slice %355 {offsets = [0, 64], sizes = [16, 16], strides = [1, 1]} : vector<16x96xf32> to vector<16x16xf32>
    %cst_136 = arith.constant dense<0.000000e+00> : vector<16x16xf32>
    %359 = tpu.matmul %356, %357, %cst_136 {dimension_numbers = #tpu.dot_dimension_numbers<[1], [1], [0], [0], [0, 0, 1, 0], [], []>} : vector<16x16xf32>, vector<16x16xf32>, vector<16x16xf32> -> vector<16x16xf32>
    %cst_137 = arith.constant 2.500000e-01 : f32
    %360 = vector.broadcast %cst_137 : f32 to vector<16x16xf32>
    %361 = arith.mulf %359, %360 : vector<16x16xf32>
    %362 = arith.addf %361, %349 : vector<16x16xf32>
    %cst_138 = arith.constant dense<0xFF800000> : vector<16xf32>
    %363 = vector.multi_reduction <maximumf>, %362, %cst_138 [1] : vector<16x16xf32> to vector<16xf32>
    %364 = vector.shape_cast %363 : vector<16xf32> to vector<16x1xf32>
    %365 = vector.broadcast %364 : vector<16x1xf32> to vector<16x16xf32>
    %366 = arith.subf %362, %365 : vector<16x16xf32>
    %367 = math.exp %366 : vector<16x16xf32>
    %cst_139 = arith.constant dense<0.000000e+00> : vector<16xf32>
    %368 = vector.multi_reduction <add>, %367, %cst_139 [1] : vector<16x16xf32> to vector<16xf32>
    %369 = vector.shape_cast %368 : vector<16xf32> to vector<16x1xf32>
    %370 = tpu.reciprocal %369 {approx = true} : vector<16x1xf32> -> vector<16x1xf32>
    %371 = vector.broadcast %370 : vector<16x1xf32> to vector<16x16xf32>
    %372 = arith.mulf %367, %371 : vector<16x16xf32>
    %cst_140 = arith.constant dense<0.000000e+00> : vector<16x16xf32>
    %373 = tpu.matmul %372, %358, %cst_140 {dimension_numbers = #tpu.dot_dimension_numbers<[1], [0], [0], [1], [0, 0, 1, 1], [], []>} : vector<16x16xf32>, vector<16x16xf32>, vector<16x16xf32> -> vector<16x16xf32>
    %374 = vector.extract_strided_slice %355 {offsets = [0, 16], sizes = [16, 16], strides = [1, 1]} : vector<16x96xf32> to vector<16x16xf32>
    %375 = vector.extract_strided_slice %355 {offsets = [0, 48], sizes = [16, 16], strides = [1, 1]} : vector<16x96xf32> to vector<16x16xf32>
    %376 = vector.extract_strided_slice %355 {offsets = [0, 80], sizes = [16, 16], strides = [1, 1]} : vector<16x96xf32> to vector<16x16xf32>
    %cst_141 = arith.constant dense<0.000000e+00> : vector<16x16xf32>
    %377 = tpu.matmul %374, %375, %cst_141 {dimension_numbers = #tpu.dot_dimension_numbers<[1], [1], [0], [0], [0, 0, 1, 0], [], []>} : vector<16x16xf32>, vector<16x16xf32>, vector<16x16xf32> -> vector<16x16xf32>
    %cst_142 = arith.constant 2.500000e-01 : f32
    %378 = vector.broadcast %cst_142 : f32 to vector<16x16xf32>
    %379 = arith.mulf %377, %378 : vector<16x16xf32>
    %380 = arith.addf %379, %349 : vector<16x16xf32>
    %cst_143 = arith.constant dense<0xFF800000> : vector<16xf32>
    %381 = vector.multi_reduction <maximumf>, %380, %cst_143 [1] : vector<16x16xf32> to vector<16xf32>
    %382 = vector.shape_cast %381 : vector<16xf32> to vector<16x1xf32>
    %383 = vector.broadcast %382 : vector<16x1xf32> to vector<16x16xf32>
    %384 = arith.subf %380, %383 : vector<16x16xf32>
    %385 = math.exp %384 : vector<16x16xf32>
    %cst_144 = arith.constant dense<0.000000e+00> : vector<16xf32>
    %386 = vector.multi_reduction <add>, %385, %cst_144 [1] : vector<16x16xf32> to vector<16xf32>
    %387 = vector.shape_cast %386 : vector<16xf32> to vector<16x1xf32>
    %388 = tpu.reciprocal %387 {approx = true} : vector<16x1xf32> -> vector<16x1xf32>
    %389 = vector.broadcast %388 : vector<16x1xf32> to vector<16x16xf32>
    %390 = arith.mulf %385, %389 : vector<16x16xf32>
    %cst_145 = arith.constant dense<0.000000e+00> : vector<16x16xf32>
    %391 = tpu.matmul %390, %376, %cst_145 {dimension_numbers = #tpu.dot_dimension_numbers<[1], [0], [0], [1], [0, 0, 1, 1], [], []>} : vector<16x16xf32>, vector<16x16xf32>, vector<16x16xf32> -> vector<16x16xf32>
    %392 = tpu.concatenate %373, %391 in 1 : vector<16x16xf32>, vector<16x16xf32> -> vector<16x32xf32>
    %c728 = arith.constant 728 : index
    %c0_146 = arith.constant 0 : index
    %393 = vector.load %arg0[%c728, %c0_146] : memref<1312x128xf32, #tpu.memory_space<vmem>>, vector<32x32xf32>
    %cst_147 = arith.constant dense<0.000000e+00> : vector<16x32xf32>
    %394 = tpu.matmul %392, %393, %cst_147 {dimension_numbers = #tpu.dot_dimension_numbers<[1], [0], [0], [1], [0, 0, 1, 1], [], []>} : vector<16x32xf32>, vector<32x32xf32>, vector<16x32xf32> -> vector<16x32xf32>
    %c760 = arith.constant 760 : index
    %c0_148 = arith.constant 0 : index
    %395 = vector.load %arg0[%c760, %c0_148] : memref<1312x128xf32, #tpu.memory_space<vmem>>, vector<1x32xf32>
    %396 = vector.broadcast %395 : vector<1x32xf32> to vector<16x32xf32>
    %397 = arith.addf %394, %396 : vector<16x32xf32>
    %398 = arith.addf %348, %397 : vector<16x32xf32>
    %cst_149 = arith.constant dense<0.000000e+00> : vector<16xf32>
    %399 = vector.multi_reduction <add>, %398, %cst_149 [1] : vector<16x32xf32> to vector<16xf32>
    %400 = vector.shape_cast %399 : vector<16xf32> to vector<16x1xf32>
    %cst_150 = arith.constant 3.200000e+01 : f32
    %401 = vector.broadcast %cst_150 : f32 to vector<16x1xf32>
    %402 = arith.divf %400, %401 : vector<16x1xf32>
    %403 = arith.mulf %398, %398 : vector<16x32xf32>
    %cst_151 = arith.constant dense<0.000000e+00> : vector<16xf32>
    %404 = vector.multi_reduction <add>, %403, %cst_151 [1] : vector<16x32xf32> to vector<16xf32>
    %405 = vector.shape_cast %404 : vector<16xf32> to vector<16x1xf32>
    %cst_152 = arith.constant 3.200000e+01 : f32
    %406 = vector.broadcast %cst_152 : f32 to vector<16x1xf32>
    %407 = arith.divf %405, %406 : vector<16x1xf32>
    %408 = arith.mulf %402, %402 : vector<16x1xf32>
    %409 = arith.subf %407, %408 : vector<16x1xf32>
    %cst_153 = arith.constant 9.99999974E-6 : f32
    %410 = vector.broadcast %cst_153 : f32 to vector<16x1xf32>
    %411 = arith.addf %409, %410 : vector<16x1xf32>
    %412 = math.rsqrt %411 : vector<16x1xf32>
    %413 = vector.broadcast %402 : vector<16x1xf32> to vector<16x32xf32>
    %414 = arith.subf %398, %413 : vector<16x32xf32>
    %415 = vector.broadcast %412 : vector<16x1xf32> to vector<16x32xf32>
    %416 = arith.mulf %414, %415 : vector<16x32xf32>
    %c761 = arith.constant 761 : index
    %c0_154 = arith.constant 0 : index
    %417 = vector.load %arg0[%c761, %c0_154] : memref<1312x128xf32, #tpu.memory_space<vmem>>, vector<1x32xf32>
    %418 = vector.broadcast %417 : vector<1x32xf32> to vector<16x32xf32>
    %419 = arith.mulf %416, %418 : vector<16x32xf32>
    %c762 = arith.constant 762 : index
    %c0_155 = arith.constant 0 : index
    %420 = vector.load %arg0[%c762, %c0_155] : memref<1312x128xf32, #tpu.memory_space<vmem>>, vector<1x32xf32>
    %421 = vector.broadcast %420 : vector<1x32xf32> to vector<16x32xf32>
    %422 = arith.addf %419, %421 : vector<16x32xf32>
    %c768 = arith.constant 768 : index
    %c0_156 = arith.constant 0 : index
    %423 = vector.load %arg0[%c768, %c0_156] : memref<1312x128xf32, #tpu.memory_space<vmem>>, vector<32x32xf32>
    %cst_157 = arith.constant dense<0.000000e+00> : vector<16x32xf32>
    %424 = tpu.matmul %422, %423, %cst_157 {dimension_numbers = #tpu.dot_dimension_numbers<[1], [0], [0], [1], [0, 0, 1, 1], [], []>} : vector<16x32xf32>, vector<32x32xf32>, vector<16x32xf32> -> vector<16x32xf32>
    %c800 = arith.constant 800 : index
    %c0_158 = arith.constant 0 : index
    %425 = vector.load %arg0[%c800, %c0_158] : memref<1312x128xf32, #tpu.memory_space<vmem>>, vector<1x32xf32>
    %426 = vector.broadcast %425 : vector<1x32xf32> to vector<16x32xf32>
    %427 = arith.addf %424, %426 : vector<16x32xf32>
    %c808 = arith.constant 808 : index
    %c0_159 = arith.constant 0 : index
    %428 = vector.load %arg0[%c808, %c0_159] : memref<1312x128xf32, #tpu.memory_space<vmem>>, vector<32x64xf32>
    %cst_160 = arith.constant dense<0.000000e+00> : vector<16x64xf32>
    %429 = tpu.matmul %322, %428, %cst_160 {dimension_numbers = #tpu.dot_dimension_numbers<[1], [0], [0], [1], [0, 0, 1, 1], [], []>} : vector<16x32xf32>, vector<32x64xf32>, vector<16x64xf32> -> vector<16x64xf32>
    %c840 = arith.constant 840 : index
    %c0_161 = arith.constant 0 : index
    %430 = vector.load %arg0[%c840, %c0_161] : memref<1312x128xf32, #tpu.memory_space<vmem>>, vector<1x64xf32>
    %431 = vector.broadcast %430 : vector<1x64xf32> to vector<16x64xf32>
    %432 = arith.addf %429, %431 : vector<16x64xf32>
    %433 = vector.extract_strided_slice %427 {offsets = [0, 0], sizes = [16, 16], strides = [1, 1]} : vector<16x32xf32> to vector<16x16xf32>
    %434 = vector.extract_strided_slice %432 {offsets = [0, 0], sizes = [16, 16], strides = [1, 1]} : vector<16x64xf32> to vector<16x16xf32>
    %435 = vector.extract_strided_slice %432 {offsets = [0, 32], sizes = [16, 16], strides = [1, 1]} : vector<16x64xf32> to vector<16x16xf32>
    %cst_162 = arith.constant dense<0.000000e+00> : vector<16x16xf32>
    %436 = tpu.matmul %433, %434, %cst_162 {dimension_numbers = #tpu.dot_dimension_numbers<[1], [1], [0], [0], [0, 0, 1, 0], [], []>} : vector<16x16xf32>, vector<16x16xf32>, vector<16x16xf32> -> vector<16x16xf32>
    %cst_163 = arith.constant 2.500000e-01 : f32
    %437 = vector.broadcast %cst_163 : f32 to vector<16x16xf32>
    %438 = arith.mulf %436, %437 : vector<16x16xf32>
    %439 = arith.addf %438, %350 : vector<16x16xf32>
    %cst_164 = arith.constant dense<0xFF800000> : vector<16xf32>
    %440 = vector.multi_reduction <maximumf>, %439, %cst_164 [1] : vector<16x16xf32> to vector<16xf32>
    %441 = vector.shape_cast %440 : vector<16xf32> to vector<16x1xf32>
    %442 = vector.broadcast %441 : vector<16x1xf32> to vector<16x16xf32>
    %443 = arith.subf %439, %442 : vector<16x16xf32>
    %444 = math.exp %443 : vector<16x16xf32>
    %cst_165 = arith.constant dense<0.000000e+00> : vector<16xf32>
    %445 = vector.multi_reduction <add>, %444, %cst_165 [1] : vector<16x16xf32> to vector<16xf32>
    %446 = vector.shape_cast %445 : vector<16xf32> to vector<16x1xf32>
    %447 = tpu.reciprocal %446 {approx = true} : vector<16x1xf32> -> vector<16x1xf32>
    %448 = vector.broadcast %447 : vector<16x1xf32> to vector<16x16xf32>
    %449 = arith.mulf %444, %448 : vector<16x16xf32>
    %cst_166 = arith.constant dense<0.000000e+00> : vector<16x16xf32>
    %450 = tpu.matmul %449, %435, %cst_166 {dimension_numbers = #tpu.dot_dimension_numbers<[1], [0], [0], [1], [0, 0, 1, 1], [], []>} : vector<16x16xf32>, vector<16x16xf32>, vector<16x16xf32> -> vector<16x16xf32>
    %451 = vector.extract_strided_slice %427 {offsets = [0, 16], sizes = [16, 16], strides = [1, 1]} : vector<16x32xf32> to vector<16x16xf32>
    %452 = vector.extract_strided_slice %432 {offsets = [0, 16], sizes = [16, 16], strides = [1, 1]} : vector<16x64xf32> to vector<16x16xf32>
    %453 = vector.extract_strided_slice %432 {offsets = [0, 48], sizes = [16, 16], strides = [1, 1]} : vector<16x64xf32> to vector<16x16xf32>
    %cst_167 = arith.constant dense<0.000000e+00> : vector<16x16xf32>
    %454 = tpu.matmul %451, %452, %cst_167 {dimension_numbers = #tpu.dot_dimension_numbers<[1], [1], [0], [0], [0, 0, 1, 0], [], []>} : vector<16x16xf32>, vector<16x16xf32>, vector<16x16xf32> -> vector<16x16xf32>
    %cst_168 = arith.constant 2.500000e-01 : f32
    %455 = vector.broadcast %cst_168 : f32 to vector<16x16xf32>
    %456 = arith.mulf %454, %455 : vector<16x16xf32>
    %457 = arith.addf %456, %350 : vector<16x16xf32>
    %cst_169 = arith.constant dense<0xFF800000> : vector<16xf32>
    %458 = vector.multi_reduction <maximumf>, %457, %cst_169 [1] : vector<16x16xf32> to vector<16xf32>
    %459 = vector.shape_cast %458 : vector<16xf32> to vector<16x1xf32>
    %460 = vector.broadcast %459 : vector<16x1xf32> to vector<16x16xf32>
    %461 = arith.subf %457, %460 : vector<16x16xf32>
    %462 = math.exp %461 : vector<16x16xf32>
    %cst_170 = arith.constant dense<0.000000e+00> : vector<16xf32>
    %463 = vector.multi_reduction <add>, %462, %cst_170 [1] : vector<16x16xf32> to vector<16xf32>
    %464 = vector.shape_cast %463 : vector<16xf32> to vector<16x1xf32>
    %465 = tpu.reciprocal %464 {approx = true} : vector<16x1xf32> -> vector<16x1xf32>
    %466 = vector.broadcast %465 : vector<16x1xf32> to vector<16x16xf32>
    %467 = arith.mulf %462, %466 : vector<16x16xf32>
    %cst_171 = arith.constant dense<0.000000e+00> : vector<16x16xf32>
    %468 = tpu.matmul %467, %453, %cst_171 {dimension_numbers = #tpu.dot_dimension_numbers<[1], [0], [0], [1], [0, 0, 1, 1], [], []>} : vector<16x16xf32>, vector<16x16xf32>, vector<16x16xf32> -> vector<16x16xf32>
    %469 = tpu.concatenate %450, %468 in 1 : vector<16x16xf32>, vector<16x16xf32> -> vector<16x32xf32>
    %c848 = arith.constant 848 : index
    %c0_172 = arith.constant 0 : index
    %470 = vector.load %arg0[%c848, %c0_172] : memref<1312x128xf32, #tpu.memory_space<vmem>>, vector<32x32xf32>
    %cst_173 = arith.constant dense<0.000000e+00> : vector<16x32xf32>
    %471 = tpu.matmul %469, %470, %cst_173 {dimension_numbers = #tpu.dot_dimension_numbers<[1], [0], [0], [1], [0, 0, 1, 1], [], []>} : vector<16x32xf32>, vector<32x32xf32>, vector<16x32xf32> -> vector<16x32xf32>
    %c880 = arith.constant 880 : index
    %c0_174 = arith.constant 0 : index
    %472 = vector.load %arg0[%c880, %c0_174] : memref<1312x128xf32, #tpu.memory_space<vmem>>, vector<1x32xf32>
    %473 = vector.broadcast %472 : vector<1x32xf32> to vector<16x32xf32>
    %474 = arith.addf %471, %473 : vector<16x32xf32>
    %475 = arith.addf %422, %474 : vector<16x32xf32>
    %cst_175 = arith.constant dense<0.000000e+00> : vector<16xf32>
    %476 = vector.multi_reduction <add>, %475, %cst_175 [1] : vector<16x32xf32> to vector<16xf32>
    %477 = vector.shape_cast %476 : vector<16xf32> to vector<16x1xf32>
    %cst_176 = arith.constant 3.200000e+01 : f32
    %478 = vector.broadcast %cst_176 : f32 to vector<16x1xf32>
    %479 = arith.divf %477, %478 : vector<16x1xf32>
    %480 = arith.mulf %475, %475 : vector<16x32xf32>
    %cst_177 = arith.constant dense<0.000000e+00> : vector<16xf32>
    %481 = vector.multi_reduction <add>, %480, %cst_177 [1] : vector<16x32xf32> to vector<16xf32>
    %482 = vector.shape_cast %481 : vector<16xf32> to vector<16x1xf32>
    %cst_178 = arith.constant 3.200000e+01 : f32
    %483 = vector.broadcast %cst_178 : f32 to vector<16x1xf32>
    %484 = arith.divf %482, %483 : vector<16x1xf32>
    %485 = arith.mulf %479, %479 : vector<16x1xf32>
    %486 = arith.subf %484, %485 : vector<16x1xf32>
    %cst_179 = arith.constant 9.99999974E-6 : f32
    %487 = vector.broadcast %cst_179 : f32 to vector<16x1xf32>
    %488 = arith.addf %486, %487 : vector<16x1xf32>
    %489 = math.rsqrt %488 : vector<16x1xf32>
    %490 = vector.broadcast %479 : vector<16x1xf32> to vector<16x32xf32>
    %491 = arith.subf %475, %490 : vector<16x32xf32>
    %492 = vector.broadcast %489 : vector<16x1xf32> to vector<16x32xf32>
    %493 = arith.mulf %491, %492 : vector<16x32xf32>
    %c881 = arith.constant 881 : index
    %c0_180 = arith.constant 0 : index
    %494 = vector.load %arg0[%c881, %c0_180] : memref<1312x128xf32, #tpu.memory_space<vmem>>, vector<1x32xf32>
    %495 = vector.broadcast %494 : vector<1x32xf32> to vector<16x32xf32>
    %496 = arith.mulf %493, %495 : vector<16x32xf32>
    %c882 = arith.constant 882 : index
    %c0_181 = arith.constant 0 : index
    %497 = vector.load %arg0[%c882, %c0_181] : memref<1312x128xf32, #tpu.memory_space<vmem>>, vector<1x32xf32>
    %498 = vector.broadcast %497 : vector<1x32xf32> to vector<16x32xf32>
    %499 = arith.addf %496, %498 : vector<16x32xf32>
    %c888 = arith.constant 888 : index
    %c0_182 = arith.constant 0 : index
    %500 = vector.load %arg0[%c888, %c0_182] : memref<1312x128xf32, #tpu.memory_space<vmem>>, vector<32x64xf32>
    %cst_183 = arith.constant dense<0.000000e+00> : vector<16x64xf32>
    %501 = tpu.matmul %499, %500, %cst_183 {dimension_numbers = #tpu.dot_dimension_numbers<[1], [0], [0], [1], [0, 0, 1, 1], [], []>} : vector<16x32xf32>, vector<32x64xf32>, vector<16x64xf32> -> vector<16x64xf32>
    %c920 = arith.constant 920 : index
    %c0_184 = arith.constant 0 : index
    %502 = vector.load %arg0[%c920, %c0_184] : memref<1312x128xf32, #tpu.memory_space<vmem>>, vector<1x64xf32>
    %503 = vector.broadcast %502 : vector<1x64xf32> to vector<16x64xf32>
    %504 = arith.addf %501, %503 : vector<16x64xf32>
    %cst_185 = arith.constant 5.000000e-01 : f32
    %505 = vector.broadcast %cst_185 : f32 to vector<16x64xf32>
    %506 = arith.mulf %505, %504 : vector<16x64xf32>
    %cst_186 = arith.constant 0.707106769 : f32
    %507 = vector.broadcast %cst_186 : f32 to vector<16x64xf32>
    %508 = arith.mulf %504, %507 : vector<16x64xf32>
    %509 = math.erf %508 : vector<16x64xf32>
    %cst_187 = arith.constant 1.000000e+00 : f32
    %510 = vector.broadcast %cst_187 : f32 to vector<16x64xf32>
    %511 = arith.addf %510, %509 : vector<16x64xf32>
    %512 = arith.mulf %506, %511 : vector<16x64xf32>
    %c928 = arith.constant 928 : index
    %c0_188 = arith.constant 0 : index
    %513 = vector.load %arg0[%c928, %c0_188] : memref<1312x128xf32, #tpu.memory_space<vmem>>, vector<64x32xf32>
    %cst_189 = arith.constant dense<0.000000e+00> : vector<16x32xf32>
    %514 = tpu.matmul %512, %513, %cst_189 {dimension_numbers = #tpu.dot_dimension_numbers<[1], [0], [0], [1], [0, 0, 1, 1], [], []>} : vector<16x64xf32>, vector<64x32xf32>, vector<16x32xf32> -> vector<16x32xf32>
    %c992 = arith.constant 992 : index
    %c0_190 = arith.constant 0 : index
    %515 = vector.load %arg0[%c992, %c0_190] : memref<1312x128xf32, #tpu.memory_space<vmem>>, vector<1x32xf32>
    %516 = vector.broadcast %515 : vector<1x32xf32> to vector<16x32xf32>
    %517 = arith.addf %514, %516 : vector<16x32xf32>
    %518 = arith.addf %499, %517 : vector<16x32xf32>
    %cst_191 = arith.constant dense<0.000000e+00> : vector<16xf32>
    %519 = vector.multi_reduction <add>, %518, %cst_191 [1] : vector<16x32xf32> to vector<16xf32>
    %520 = vector.shape_cast %519 : vector<16xf32> to vector<16x1xf32>
    %cst_192 = arith.constant 3.200000e+01 : f32
    %521 = vector.broadcast %cst_192 : f32 to vector<16x1xf32>
    %522 = arith.divf %520, %521 : vector<16x1xf32>
    %523 = arith.mulf %518, %518 : vector<16x32xf32>
    %cst_193 = arith.constant dense<0.000000e+00> : vector<16xf32>
    %524 = vector.multi_reduction <add>, %523, %cst_193 [1] : vector<16x32xf32> to vector<16xf32>
    %525 = vector.shape_cast %524 : vector<16xf32> to vector<16x1xf32>
    %cst_194 = arith.constant 3.200000e+01 : f32
    %526 = vector.broadcast %cst_194 : f32 to vector<16x1xf32>
    %527 = arith.divf %525, %526 : vector<16x1xf32>
    %528 = arith.mulf %522, %522 : vector<16x1xf32>
    %529 = arith.subf %527, %528 : vector<16x1xf32>
    %cst_195 = arith.constant 9.99999974E-6 : f32
    %530 = vector.broadcast %cst_195 : f32 to vector<16x1xf32>
    %531 = arith.addf %529, %530 : vector<16x1xf32>
    %532 = math.rsqrt %531 : vector<16x1xf32>
    %533 = vector.broadcast %522 : vector<16x1xf32> to vector<16x32xf32>
    %534 = arith.subf %518, %533 : vector<16x32xf32>
    %535 = vector.broadcast %532 : vector<16x1xf32> to vector<16x32xf32>
    %536 = arith.mulf %534, %535 : vector<16x32xf32>
    %c993 = arith.constant 993 : index
    %c0_196 = arith.constant 0 : index
    %537 = vector.load %arg0[%c993, %c0_196] : memref<1312x128xf32, #tpu.memory_space<vmem>>, vector<1x32xf32>
    %538 = vector.broadcast %537 : vector<1x32xf32> to vector<16x32xf32>
    %539 = arith.mulf %536, %538 : vector<16x32xf32>
    %c994 = arith.constant 994 : index
    %c0_197 = arith.constant 0 : index
    %540 = vector.load %arg0[%c994, %c0_197] : memref<1312x128xf32, #tpu.memory_space<vmem>>, vector<1x32xf32>
    %541 = vector.broadcast %540 : vector<1x32xf32> to vector<16x32xf32>
    %542 = arith.addf %539, %541 : vector<16x32xf32>
    %c1000 = arith.constant 1000 : index
    %c0_198 = arith.constant 0 : index
    %543 = vector.load %arg0[%c1000, %c0_198] : memref<1312x128xf32, #tpu.memory_space<vmem>>, vector<32x96xf32>
    %cst_199 = arith.constant dense<0.000000e+00> : vector<16x96xf32>
    %544 = tpu.matmul %542, %543, %cst_199 {dimension_numbers = #tpu.dot_dimension_numbers<[1], [0], [0], [1], [0, 0, 1, 1], [], []>} : vector<16x32xf32>, vector<32x96xf32>, vector<16x96xf32> -> vector<16x96xf32>
    %c1032 = arith.constant 1032 : index
    %c0_200 = arith.constant 0 : index
    %545 = vector.load %arg0[%c1032, %c0_200] : memref<1312x128xf32, #tpu.memory_space<vmem>>, vector<1x96xf32>
    %546 = vector.broadcast %545 : vector<1x96xf32> to vector<16x96xf32>
    %547 = arith.addf %544, %546 : vector<16x96xf32>
    %548 = vector.extract_strided_slice %547 {offsets = [0, 0], sizes = [16, 16], strides = [1, 1]} : vector<16x96xf32> to vector<16x16xf32>
    %549 = vector.extract_strided_slice %547 {offsets = [0, 32], sizes = [16, 16], strides = [1, 1]} : vector<16x96xf32> to vector<16x16xf32>
    %550 = vector.extract_strided_slice %547 {offsets = [0, 64], sizes = [16, 16], strides = [1, 1]} : vector<16x96xf32> to vector<16x16xf32>
    %cst_201 = arith.constant dense<0.000000e+00> : vector<16x16xf32>
    %551 = tpu.matmul %548, %549, %cst_201 {dimension_numbers = #tpu.dot_dimension_numbers<[1], [1], [0], [0], [0, 0, 1, 0], [], []>} : vector<16x16xf32>, vector<16x16xf32>, vector<16x16xf32> -> vector<16x16xf32>
    %cst_202 = arith.constant 2.500000e-01 : f32
    %552 = vector.broadcast %cst_202 : f32 to vector<16x16xf32>
    %553 = arith.mulf %551, %552 : vector<16x16xf32>
    %554 = arith.addf %553, %349 : vector<16x16xf32>
    %cst_203 = arith.constant dense<0xFF800000> : vector<16xf32>
    %555 = vector.multi_reduction <maximumf>, %554, %cst_203 [1] : vector<16x16xf32> to vector<16xf32>
    %556 = vector.shape_cast %555 : vector<16xf32> to vector<16x1xf32>
    %557 = vector.broadcast %556 : vector<16x1xf32> to vector<16x16xf32>
    %558 = arith.subf %554, %557 : vector<16x16xf32>
    %559 = math.exp %558 : vector<16x16xf32>
    %cst_204 = arith.constant dense<0.000000e+00> : vector<16xf32>
    %560 = vector.multi_reduction <add>, %559, %cst_204 [1] : vector<16x16xf32> to vector<16xf32>
    %561 = vector.shape_cast %560 : vector<16xf32> to vector<16x1xf32>
    %562 = tpu.reciprocal %561 {approx = true} : vector<16x1xf32> -> vector<16x1xf32>
    %563 = vector.broadcast %562 : vector<16x1xf32> to vector<16x16xf32>
    %564 = arith.mulf %559, %563 : vector<16x16xf32>
    %cst_205 = arith.constant dense<0.000000e+00> : vector<16x16xf32>
    %565 = tpu.matmul %564, %550, %cst_205 {dimension_numbers = #tpu.dot_dimension_numbers<[1], [0], [0], [1], [0, 0, 1, 1], [], []>} : vector<16x16xf32>, vector<16x16xf32>, vector<16x16xf32> -> vector<16x16xf32>
    %566 = vector.extract_strided_slice %547 {offsets = [0, 16], sizes = [16, 16], strides = [1, 1]} : vector<16x96xf32> to vector<16x16xf32>
    %567 = vector.extract_strided_slice %547 {offsets = [0, 48], sizes = [16, 16], strides = [1, 1]} : vector<16x96xf32> to vector<16x16xf32>
    %568 = vector.extract_strided_slice %547 {offsets = [0, 80], sizes = [16, 16], strides = [1, 1]} : vector<16x96xf32> to vector<16x16xf32>
    %cst_206 = arith.constant dense<0.000000e+00> : vector<16x16xf32>
    %569 = tpu.matmul %566, %567, %cst_206 {dimension_numbers = #tpu.dot_dimension_numbers<[1], [1], [0], [0], [0, 0, 1, 0], [], []>} : vector<16x16xf32>, vector<16x16xf32>, vector<16x16xf32> -> vector<16x16xf32>
    %cst_207 = arith.constant 2.500000e-01 : f32
    %570 = vector.broadcast %cst_207 : f32 to vector<16x16xf32>
    %571 = arith.mulf %569, %570 : vector<16x16xf32>
    %572 = arith.addf %571, %349 : vector<16x16xf32>
    %cst_208 = arith.constant dense<0xFF800000> : vector<16xf32>
    %573 = vector.multi_reduction <maximumf>, %572, %cst_208 [1] : vector<16x16xf32> to vector<16xf32>
    %574 = vector.shape_cast %573 : vector<16xf32> to vector<16x1xf32>
    %575 = vector.broadcast %574 : vector<16x1xf32> to vector<16x16xf32>
    %576 = arith.subf %572, %575 : vector<16x16xf32>
    %577 = math.exp %576 : vector<16x16xf32>
    %cst_209 = arith.constant dense<0.000000e+00> : vector<16xf32>
    %578 = vector.multi_reduction <add>, %577, %cst_209 [1] : vector<16x16xf32> to vector<16xf32>
    %579 = vector.shape_cast %578 : vector<16xf32> to vector<16x1xf32>
    %580 = tpu.reciprocal %579 {approx = true} : vector<16x1xf32> -> vector<16x1xf32>
    %581 = vector.broadcast %580 : vector<16x1xf32> to vector<16x16xf32>
    %582 = arith.mulf %577, %581 : vector<16x16xf32>
    %cst_210 = arith.constant dense<0.000000e+00> : vector<16x16xf32>
    %583 = tpu.matmul %582, %568, %cst_210 {dimension_numbers = #tpu.dot_dimension_numbers<[1], [0], [0], [1], [0, 0, 1, 1], [], []>} : vector<16x16xf32>, vector<16x16xf32>, vector<16x16xf32> -> vector<16x16xf32>
    %584 = tpu.concatenate %565, %583 in 1 : vector<16x16xf32>, vector<16x16xf32> -> vector<16x32xf32>
    %c1040 = arith.constant 1040 : index
    %c0_211 = arith.constant 0 : index
    %585 = vector.load %arg0[%c1040, %c0_211] : memref<1312x128xf32, #tpu.memory_space<vmem>>, vector<32x32xf32>
    %cst_212 = arith.constant dense<0.000000e+00> : vector<16x32xf32>
    %586 = tpu.matmul %584, %585, %cst_212 {dimension_numbers = #tpu.dot_dimension_numbers<[1], [0], [0], [1], [0, 0, 1, 1], [], []>} : vector<16x32xf32>, vector<32x32xf32>, vector<16x32xf32> -> vector<16x32xf32>
    %c1072 = arith.constant 1072 : index
    %c0_213 = arith.constant 0 : index
    %587 = vector.load %arg0[%c1072, %c0_213] : memref<1312x128xf32, #tpu.memory_space<vmem>>, vector<1x32xf32>
    %588 = vector.broadcast %587 : vector<1x32xf32> to vector<16x32xf32>
    %589 = arith.addf %586, %588 : vector<16x32xf32>
    %590 = arith.addf %542, %589 : vector<16x32xf32>
    %cst_214 = arith.constant dense<0.000000e+00> : vector<16xf32>
    %591 = vector.multi_reduction <add>, %590, %cst_214 [1] : vector<16x32xf32> to vector<16xf32>
    %592 = vector.shape_cast %591 : vector<16xf32> to vector<16x1xf32>
    %cst_215 = arith.constant 3.200000e+01 : f32
    %593 = vector.broadcast %cst_215 : f32 to vector<16x1xf32>
    %594 = arith.divf %592, %593 : vector<16x1xf32>
    %595 = arith.mulf %590, %590 : vector<16x32xf32>
    %cst_216 = arith.constant dense<0.000000e+00> : vector<16xf32>
    %596 = vector.multi_reduction <add>, %595, %cst_216 [1] : vector<16x32xf32> to vector<16xf32>
    %597 = vector.shape_cast %596 : vector<16xf32> to vector<16x1xf32>
    %cst_217 = arith.constant 3.200000e+01 : f32
    %598 = vector.broadcast %cst_217 : f32 to vector<16x1xf32>
    %599 = arith.divf %597, %598 : vector<16x1xf32>
    %600 = arith.mulf %594, %594 : vector<16x1xf32>
    %601 = arith.subf %599, %600 : vector<16x1xf32>
    %cst_218 = arith.constant 9.99999974E-6 : f32
    %602 = vector.broadcast %cst_218 : f32 to vector<16x1xf32>
    %603 = arith.addf %601, %602 : vector<16x1xf32>
    %604 = math.rsqrt %603 : vector<16x1xf32>
    %605 = vector.broadcast %594 : vector<16x1xf32> to vector<16x32xf32>
    %606 = arith.subf %590, %605 : vector<16x32xf32>
    %607 = vector.broadcast %604 : vector<16x1xf32> to vector<16x32xf32>
    %608 = arith.mulf %606, %607 : vector<16x32xf32>
    %c1073 = arith.constant 1073 : index
    %c0_219 = arith.constant 0 : index
    %609 = vector.load %arg0[%c1073, %c0_219] : memref<1312x128xf32, #tpu.memory_space<vmem>>, vector<1x32xf32>
    %610 = vector.broadcast %609 : vector<1x32xf32> to vector<16x32xf32>
    %611 = arith.mulf %608, %610 : vector<16x32xf32>
    %c1074 = arith.constant 1074 : index
    %c0_220 = arith.constant 0 : index
    %612 = vector.load %arg0[%c1074, %c0_220] : memref<1312x128xf32, #tpu.memory_space<vmem>>, vector<1x32xf32>
    %613 = vector.broadcast %612 : vector<1x32xf32> to vector<16x32xf32>
    %614 = arith.addf %611, %613 : vector<16x32xf32>
    %c1080 = arith.constant 1080 : index
    %c0_221 = arith.constant 0 : index
    %615 = vector.load %arg0[%c1080, %c0_221] : memref<1312x128xf32, #tpu.memory_space<vmem>>, vector<32x32xf32>
    %cst_222 = arith.constant dense<0.000000e+00> : vector<16x32xf32>
    %616 = tpu.matmul %614, %615, %cst_222 {dimension_numbers = #tpu.dot_dimension_numbers<[1], [0], [0], [1], [0, 0, 1, 1], [], []>} : vector<16x32xf32>, vector<32x32xf32>, vector<16x32xf32> -> vector<16x32xf32>
    %c1112 = arith.constant 1112 : index
    %c0_223 = arith.constant 0 : index
    %617 = vector.load %arg0[%c1112, %c0_223] : memref<1312x128xf32, #tpu.memory_space<vmem>>, vector<1x32xf32>
    %618 = vector.broadcast %617 : vector<1x32xf32> to vector<16x32xf32>
    %619 = arith.addf %616, %618 : vector<16x32xf32>
    %c1120 = arith.constant 1120 : index
    %c0_224 = arith.constant 0 : index
    %620 = vector.load %arg0[%c1120, %c0_224] : memref<1312x128xf32, #tpu.memory_space<vmem>>, vector<32x64xf32>
    %cst_225 = arith.constant dense<0.000000e+00> : vector<16x64xf32>
    %621 = tpu.matmul %322, %620, %cst_225 {dimension_numbers = #tpu.dot_dimension_numbers<[1], [0], [0], [1], [0, 0, 1, 1], [], []>} : vector<16x32xf32>, vector<32x64xf32>, vector<16x64xf32> -> vector<16x64xf32>
    %c1152 = arith.constant 1152 : index
    %c0_226 = arith.constant 0 : index
    %622 = vector.load %arg0[%c1152, %c0_226] : memref<1312x128xf32, #tpu.memory_space<vmem>>, vector<1x64xf32>
    %623 = vector.broadcast %622 : vector<1x64xf32> to vector<16x64xf32>
    %624 = arith.addf %621, %623 : vector<16x64xf32>
    %625 = vector.extract_strided_slice %619 {offsets = [0, 0], sizes = [16, 16], strides = [1, 1]} : vector<16x32xf32> to vector<16x16xf32>
    %626 = vector.extract_strided_slice %624 {offsets = [0, 0], sizes = [16, 16], strides = [1, 1]} : vector<16x64xf32> to vector<16x16xf32>
    %627 = vector.extract_strided_slice %624 {offsets = [0, 32], sizes = [16, 16], strides = [1, 1]} : vector<16x64xf32> to vector<16x16xf32>
    %cst_227 = arith.constant dense<0.000000e+00> : vector<16x16xf32>
    %628 = tpu.matmul %625, %626, %cst_227 {dimension_numbers = #tpu.dot_dimension_numbers<[1], [1], [0], [0], [0, 0, 1, 0], [], []>} : vector<16x16xf32>, vector<16x16xf32>, vector<16x16xf32> -> vector<16x16xf32>
    %cst_228 = arith.constant 2.500000e-01 : f32
    %629 = vector.broadcast %cst_228 : f32 to vector<16x16xf32>
    %630 = arith.mulf %628, %629 : vector<16x16xf32>
    %631 = arith.addf %630, %350 : vector<16x16xf32>
    %cst_229 = arith.constant dense<0xFF800000> : vector<16xf32>
    %632 = vector.multi_reduction <maximumf>, %631, %cst_229 [1] : vector<16x16xf32> to vector<16xf32>
    %633 = vector.shape_cast %632 : vector<16xf32> to vector<16x1xf32>
    %634 = vector.broadcast %633 : vector<16x1xf32> to vector<16x16xf32>
    %635 = arith.subf %631, %634 : vector<16x16xf32>
    %636 = math.exp %635 : vector<16x16xf32>
    %cst_230 = arith.constant dense<0.000000e+00> : vector<16xf32>
    %637 = vector.multi_reduction <add>, %636, %cst_230 [1] : vector<16x16xf32> to vector<16xf32>
    %638 = vector.shape_cast %637 : vector<16xf32> to vector<16x1xf32>
    %639 = tpu.reciprocal %638 {approx = true} : vector<16x1xf32> -> vector<16x1xf32>
    %640 = vector.broadcast %639 : vector<16x1xf32> to vector<16x16xf32>
    %641 = arith.mulf %636, %640 : vector<16x16xf32>
    %cst_231 = arith.constant dense<0.000000e+00> : vector<16x16xf32>
    %642 = tpu.matmul %641, %627, %cst_231 {dimension_numbers = #tpu.dot_dimension_numbers<[1], [0], [0], [1], [0, 0, 1, 1], [], []>} : vector<16x16xf32>, vector<16x16xf32>, vector<16x16xf32> -> vector<16x16xf32>
    %643 = vector.extract_strided_slice %619 {offsets = [0, 16], sizes = [16, 16], strides = [1, 1]} : vector<16x32xf32> to vector<16x16xf32>
    %644 = vector.extract_strided_slice %624 {offsets = [0, 16], sizes = [16, 16], strides = [1, 1]} : vector<16x64xf32> to vector<16x16xf32>
    %645 = vector.extract_strided_slice %624 {offsets = [0, 48], sizes = [16, 16], strides = [1, 1]} : vector<16x64xf32> to vector<16x16xf32>
    %cst_232 = arith.constant dense<0.000000e+00> : vector<16x16xf32>
    %646 = tpu.matmul %643, %644, %cst_232 {dimension_numbers = #tpu.dot_dimension_numbers<[1], [1], [0], [0], [0, 0, 1, 0], [], []>} : vector<16x16xf32>, vector<16x16xf32>, vector<16x16xf32> -> vector<16x16xf32>
    %cst_233 = arith.constant 2.500000e-01 : f32
    %647 = vector.broadcast %cst_233 : f32 to vector<16x16xf32>
    %648 = arith.mulf %646, %647 : vector<16x16xf32>
    %649 = arith.addf %648, %350 : vector<16x16xf32>
    %cst_234 = arith.constant dense<0xFF800000> : vector<16xf32>
    %650 = vector.multi_reduction <maximumf>, %649, %cst_234 [1] : vector<16x16xf32> to vector<16xf32>
    %651 = vector.shape_cast %650 : vector<16xf32> to vector<16x1xf32>
    %652 = vector.broadcast %651 : vector<16x1xf32> to vector<16x16xf32>
    %653 = arith.subf %649, %652 : vector<16x16xf32>
    %654 = math.exp %653 : vector<16x16xf32>
    %cst_235 = arith.constant dense<0.000000e+00> : vector<16xf32>
    %655 = vector.multi_reduction <add>, %654, %cst_235 [1] : vector<16x16xf32> to vector<16xf32>
    %656 = vector.shape_cast %655 : vector<16xf32> to vector<16x1xf32>
    %657 = tpu.reciprocal %656 {approx = true} : vector<16x1xf32> -> vector<16x1xf32>
    %658 = vector.broadcast %657 : vector<16x1xf32> to vector<16x16xf32>
    %659 = arith.mulf %654, %658 : vector<16x16xf32>
    %cst_236 = arith.constant dense<0.000000e+00> : vector<16x16xf32>
    %660 = tpu.matmul %659, %645, %cst_236 {dimension_numbers = #tpu.dot_dimension_numbers<[1], [0], [0], [1], [0, 0, 1, 1], [], []>} : vector<16x16xf32>, vector<16x16xf32>, vector<16x16xf32> -> vector<16x16xf32>
    %661 = tpu.concatenate %642, %660 in 1 : vector<16x16xf32>, vector<16x16xf32> -> vector<16x32xf32>
    %c1160 = arith.constant 1160 : index
    %c0_237 = arith.constant 0 : index
    %662 = vector.load %arg0[%c1160, %c0_237] : memref<1312x128xf32, #tpu.memory_space<vmem>>, vector<32x32xf32>
    %cst_238 = arith.constant dense<0.000000e+00> : vector<16x32xf32>
    %663 = tpu.matmul %661, %662, %cst_238 {dimension_numbers = #tpu.dot_dimension_numbers<[1], [0], [0], [1], [0, 0, 1, 1], [], []>} : vector<16x32xf32>, vector<32x32xf32>, vector<16x32xf32> -> vector<16x32xf32>
    %c1192 = arith.constant 1192 : index
    %c0_239 = arith.constant 0 : index
    %664 = vector.load %arg0[%c1192, %c0_239] : memref<1312x128xf32, #tpu.memory_space<vmem>>, vector<1x32xf32>
    %665 = vector.broadcast %664 : vector<1x32xf32> to vector<16x32xf32>
    %666 = arith.addf %663, %665 : vector<16x32xf32>
    %667 = arith.addf %614, %666 : vector<16x32xf32>
    %cst_240 = arith.constant dense<0.000000e+00> : vector<16xf32>
    %668 = vector.multi_reduction <add>, %667, %cst_240 [1] : vector<16x32xf32> to vector<16xf32>
    %669 = vector.shape_cast %668 : vector<16xf32> to vector<16x1xf32>
    %cst_241 = arith.constant 3.200000e+01 : f32
    %670 = vector.broadcast %cst_241 : f32 to vector<16x1xf32>
    %671 = arith.divf %669, %670 : vector<16x1xf32>
    %672 = arith.mulf %667, %667 : vector<16x32xf32>
    %cst_242 = arith.constant dense<0.000000e+00> : vector<16xf32>
    %673 = vector.multi_reduction <add>, %672, %cst_242 [1] : vector<16x32xf32> to vector<16xf32>
    %674 = vector.shape_cast %673 : vector<16xf32> to vector<16x1xf32>
    %cst_243 = arith.constant 3.200000e+01 : f32
    %675 = vector.broadcast %cst_243 : f32 to vector<16x1xf32>
    %676 = arith.divf %674, %675 : vector<16x1xf32>
    %677 = arith.mulf %671, %671 : vector<16x1xf32>
    %678 = arith.subf %676, %677 : vector<16x1xf32>
    %cst_244 = arith.constant 9.99999974E-6 : f32
    %679 = vector.broadcast %cst_244 : f32 to vector<16x1xf32>
    %680 = arith.addf %678, %679 : vector<16x1xf32>
    %681 = math.rsqrt %680 : vector<16x1xf32>
    %682 = vector.broadcast %671 : vector<16x1xf32> to vector<16x32xf32>
    %683 = arith.subf %667, %682 : vector<16x32xf32>
    %684 = vector.broadcast %681 : vector<16x1xf32> to vector<16x32xf32>
    %685 = arith.mulf %683, %684 : vector<16x32xf32>
    %c1193 = arith.constant 1193 : index
    %c0_245 = arith.constant 0 : index
    %686 = vector.load %arg0[%c1193, %c0_245] : memref<1312x128xf32, #tpu.memory_space<vmem>>, vector<1x32xf32>
    %687 = vector.broadcast %686 : vector<1x32xf32> to vector<16x32xf32>
    %688 = arith.mulf %685, %687 : vector<16x32xf32>
    %c1194 = arith.constant 1194 : index
    %c0_246 = arith.constant 0 : index
    %689 = vector.load %arg0[%c1194, %c0_246] : memref<1312x128xf32, #tpu.memory_space<vmem>>, vector<1x32xf32>
    %690 = vector.broadcast %689 : vector<1x32xf32> to vector<16x32xf32>
    %691 = arith.addf %688, %690 : vector<16x32xf32>
    %c1200 = arith.constant 1200 : index
    %c0_247 = arith.constant 0 : index
    %692 = vector.load %arg0[%c1200, %c0_247] : memref<1312x128xf32, #tpu.memory_space<vmem>>, vector<32x64xf32>
    %cst_248 = arith.constant dense<0.000000e+00> : vector<16x64xf32>
    %693 = tpu.matmul %691, %692, %cst_248 {dimension_numbers = #tpu.dot_dimension_numbers<[1], [0], [0], [1], [0, 0, 1, 1], [], []>} : vector<16x32xf32>, vector<32x64xf32>, vector<16x64xf32> -> vector<16x64xf32>
    %c1232 = arith.constant 1232 : index
    %c0_249 = arith.constant 0 : index
    %694 = vector.load %arg0[%c1232, %c0_249] : memref<1312x128xf32, #tpu.memory_space<vmem>>, vector<1x64xf32>
    %695 = vector.broadcast %694 : vector<1x64xf32> to vector<16x64xf32>
    %696 = arith.addf %693, %695 : vector<16x64xf32>
    %cst_250 = arith.constant 5.000000e-01 : f32
    %697 = vector.broadcast %cst_250 : f32 to vector<16x64xf32>
    %698 = arith.mulf %697, %696 : vector<16x64xf32>
    %cst_251 = arith.constant 0.707106769 : f32
    %699 = vector.broadcast %cst_251 : f32 to vector<16x64xf32>
    %700 = arith.mulf %696, %699 : vector<16x64xf32>
    %701 = math.erf %700 : vector<16x64xf32>
    %cst_252 = arith.constant 1.000000e+00 : f32
    %702 = vector.broadcast %cst_252 : f32 to vector<16x64xf32>
    %703 = arith.addf %702, %701 : vector<16x64xf32>
    %704 = arith.mulf %698, %703 : vector<16x64xf32>
    %c1240 = arith.constant 1240 : index
    %c0_253 = arith.constant 0 : index
    %705 = vector.load %arg0[%c1240, %c0_253] : memref<1312x128xf32, #tpu.memory_space<vmem>>, vector<64x32xf32>
    %cst_254 = arith.constant dense<0.000000e+00> : vector<16x32xf32>
    %706 = tpu.matmul %704, %705, %cst_254 {dimension_numbers = #tpu.dot_dimension_numbers<[1], [0], [0], [1], [0, 0, 1, 1], [], []>} : vector<16x64xf32>, vector<64x32xf32>, vector<16x32xf32> -> vector<16x32xf32>
    %c1304 = arith.constant 1304 : index
    %c0_255 = arith.constant 0 : index
    %707 = vector.load %arg0[%c1304, %c0_255] : memref<1312x128xf32, #tpu.memory_space<vmem>>, vector<1x32xf32>
    %708 = vector.broadcast %707 : vector<1x32xf32> to vector<16x32xf32>
    %709 = arith.addf %706, %708 : vector<16x32xf32>
    %710 = arith.addf %691, %709 : vector<16x32xf32>
    %cst_256 = arith.constant dense<0.000000e+00> : vector<16xf32>
    %711 = vector.multi_reduction <add>, %710, %cst_256 [1] : vector<16x32xf32> to vector<16xf32>
    %712 = vector.shape_cast %711 : vector<16xf32> to vector<16x1xf32>
    %cst_257 = arith.constant 3.200000e+01 : f32
    %713 = vector.broadcast %cst_257 : f32 to vector<16x1xf32>
    %714 = arith.divf %712, %713 : vector<16x1xf32>
    %715 = arith.mulf %710, %710 : vector<16x32xf32>
    %cst_258 = arith.constant dense<0.000000e+00> : vector<16xf32>
    %716 = vector.multi_reduction <add>, %715, %cst_258 [1] : vector<16x32xf32> to vector<16xf32>
    %717 = vector.shape_cast %716 : vector<16xf32> to vector<16x1xf32>
    %cst_259 = arith.constant 3.200000e+01 : f32
    %718 = vector.broadcast %cst_259 : f32 to vector<16x1xf32>
    %719 = arith.divf %717, %718 : vector<16x1xf32>
    %720 = arith.mulf %714, %714 : vector<16x1xf32>
    %721 = arith.subf %719, %720 : vector<16x1xf32>
    %cst_260 = arith.constant 9.99999974E-6 : f32
    %722 = vector.broadcast %cst_260 : f32 to vector<16x1xf32>
    %723 = arith.addf %721, %722 : vector<16x1xf32>
    %724 = math.rsqrt %723 : vector<16x1xf32>
    %725 = vector.broadcast %714 : vector<16x1xf32> to vector<16x32xf32>
    %726 = arith.subf %710, %725 : vector<16x32xf32>
    %727 = vector.broadcast %724 : vector<16x1xf32> to vector<16x32xf32>
    %728 = arith.mulf %726, %727 : vector<16x32xf32>
    %c1305 = arith.constant 1305 : index
    %c0_261 = arith.constant 0 : index
    %729 = vector.load %arg0[%c1305, %c0_261] : memref<1312x128xf32, #tpu.memory_space<vmem>>, vector<1x32xf32>
    %730 = vector.broadcast %729 : vector<1x32xf32> to vector<16x32xf32>
    %731 = arith.mulf %728, %730 : vector<16x32xf32>
    %c1306 = arith.constant 1306 : index
    %c0_262 = arith.constant 0 : index
    %732 = vector.load %arg0[%c1306, %c0_262] : memref<1312x128xf32, #tpu.memory_space<vmem>>, vector<1x32xf32>
    %733 = vector.broadcast %732 : vector<1x32xf32> to vector<16x32xf32>
    %734 = arith.addf %731, %733 : vector<16x32xf32>
    %c224 = arith.constant 224 : index
    %c0_263 = arith.constant 0 : index
    %735 = vector.load %arg0[%c224, %c0_263] : memref<1312x128xf32, #tpu.memory_space<vmem>>, vector<32x32xf32>
    %cst_264 = arith.constant dense<0.000000e+00> : vector<16x32xf32>
    %736 = tpu.matmul %734, %735, %cst_264 {dimension_numbers = #tpu.dot_dimension_numbers<[1], [0], [0], [1], [0, 0, 1, 1], [], []>} : vector<16x32xf32>, vector<32x32xf32>, vector<16x32xf32> -> vector<16x32xf32>
    %c256 = arith.constant 256 : index
    %c0_265 = arith.constant 0 : index
    %737 = vector.load %arg0[%c256, %c0_265] : memref<1312x128xf32, #tpu.memory_space<vmem>>, vector<1x32xf32>
    %738 = vector.broadcast %737 : vector<1x32xf32> to vector<16x32xf32>
    %739 = arith.addf %736, %738 : vector<16x32xf32>
    %740 = math.tanh %739 : vector<16x32xf32>
    %c264 = arith.constant 264 : index
    %c0_266 = arith.constant 0 : index
    %741 = vector.load %arg0[%c264, %c0_266] : memref<1312x128xf32, #tpu.memory_space<vmem>>, vector<32x128xf32>
    %cst_267 = arith.constant dense<0.000000e+00> : vector<16x128xf32>
    %742 = tpu.matmul %740, %741, %cst_267 {dimension_numbers = #tpu.dot_dimension_numbers<[1], [0], [0], [1], [0, 0, 1, 1], [], []>} : vector<16x32xf32>, vector<32x128xf32>, vector<16x128xf32> -> vector<16x128xf32>
    %c296 = arith.constant 296 : index
    %c0_268 = arith.constant 0 : index
    %743 = vector.load %arg0[%c296, %c0_268] : memref<1312x128xf32, #tpu.memory_space<vmem>>, vector<1x128xf32>
    %744 = vector.broadcast %743 : vector<1x128xf32> to vector<16x128xf32>
    %745 = arith.addf %742, %744 : vector<16x128xf32>
    %c0_269 = arith.constant 0 : index
    %c0_270 = arith.constant 0 : index
    %746 = vector.load %arg9[%c0_269, %c0_270] : memref<16x128xf32, #tpu.memory_space<vmem>>, vector<16x128xf32>
    tpu.vector_store %arg9[%c0_269, %c0_270], %745 {strides = array<i32>} : memref<16x128xf32, #tpu.memory_space<vmem>>, vector<16x128xf32>,
    return
  }
}

</mosaic_0001>

<llo_original>
// kernel: eq.22
$region0: #{eq.22}
  %s0 = inlined_call_operand.vmem [shape: s32[2,8], index: 0, kind: input, shape index: {}]
  %s1 = inlined_call_operand.vmem [shape: s32[16], index: 1, kind: output, shape index: {}]
  $region1: #{eq.22} parent=0
    #allocation0 [shape = 'u8[4096]{0}', space=vmem, size = 0x1000, scoped, tag = 'scoped mem for output reshape']
    #allocation1 [shape = 'u8[4096]{0}', space=vmem, size = 0x1000, scoped, tag = 'scoped mem for input reshape']
    %s3 = ssub.s32 4, 1
    %v4 = vld [vmem:[%s0] sm:%s3]
    %5 = vst [vmem:[#allocation1] sm:%s3] %v4
    %v6 = vld [vmem:[#allocation1] sm:$0x1]
    %vm7 = vcmask 64512
    %8 = vst.msk [vmem:[#allocation0] sm:$0x1] %vm7, %v6
    %s9 = scalar_lea.vmem [#allocation1], 1
    %v10 = vld [vmem:[%s9] sm:$0x1]
    %11 = vrot.lane.b32.xlu0 %v10, 8
    %v12 = vpop.permute.xlu0 %11
    %vm13 = vcmask 130112
    %14 = vst.msk [vmem:[#allocation0] sm:$0x1] %vm13, %v12
    %s16 = ssub.s32 2, 1
    %v17 = vld [vmem:[#allocation0] sm:%s16]
    %s19 = ssub.s32 2, 1
    %20 = vst [vmem:[%s1] sm:%s19] %v17

// kernel: forward.1
$region0: #{forward.1}
  #allocation0 [shape = 'u32[]', space=smem, size = 0x4, offset = 0x4, fixed_abs, tag = 'smem constant byte address 0x4 - core index']
  #allocation1 [shape = 'u32[72,128]{1,0:T(1,128)}', space=vmem, size = 0x9000, scoped, tag = 'internal scratch']
  %s0 = inlined_call_operand.hbm [shape: f32[1312,128], index: 0, kind: input, shape index: {}]
  %s1 = inlined_call_operand.vmem [shape: f32[16,32], index: 1, kind: input, shape index: {}]
  %s2 = inlined_call_operand.vmem [shape: f32[16,32], index: 2, kind: input, shape index: {}]
  %s3 = inlined_call_operand.vmem [shape: f32[16,16], index: 3, kind: input, shape index: {}]
  %s4 = inlined_call_operand.vmem [shape: f32[16,32], index: 4, kind: input, shape index: {}]
  %s5 = inlined_call_operand.vmem [shape: f32[16,32], index: 5, kind: input, shape index: {}]
  %s6 = inlined_call_operand.vmem [shape: f32[16,16], index: 6, kind: input, shape index: {}, may-alias: {6,8}]
  %s7 = inlined_call_operand.vmem [shape: f32[16,16], index: 7, kind: input, shape index: {}]
  %s8 = inlined_call_operand.vmem [shape: f32[16,16], index: 8, kind: input, shape index: {}, may-alias: {6,8}]
  %s9 = inlined_call_operand.vmem [shape: f32[16,128], index: 9, kind: output, shape index: {}]
  %s10 = sld [smem:[#allocation0]]
  $region50: #{forward.1} parent=0
    _
  %s12 = ssub.s32 1, %s10
  %s13 = scalar_select 0, %s12, %s10
  $region1: #{forward.1} parent=0
    #allocation2 [shape = 'u8[671744]{0}', space=vmem, size = 0xa4000, scoped, tag = 'input window, operand 0, single buffered']
    #allocation3 [shape = 's32[1]{0}', space=sflag, size = 0x4, scoped, tag = 'scoped memory for forward.1']
    %14 = vsyncpa [#allocation3], 0
    // Predicated region
    $region2: #{forward.1} parent=1 // pred_check
      _
    $region3: #{forward.1} parent=1 // pred_check_branch
      %16 = sbr.rel (0) target = $region5
    $region4: #{forward.1} parent=1 // pred_region
      %18 = vsyncadd [#allocation3], 0
      %s19 = sshll.u32 %s0, 4
      %s20 = int_to_ptr.hbm [resolvable:$true] %s19
      %s21 = sshll.u32 [#allocation2], 4
      %s22 = int_to_ptr.vmem [resolvable:$true] %s21
      %27 = dma.hbm_to_vmem [thread:$0]  %s20, 20992, %s22, [#allocation3], 128, 128, 8
    $region5: #{forward.1} parent=1 // pred_fallthru
      _
    // Predicated region
    $region6: #{forward.1} parent=1 // pred_check
      _
    $region7: #{forward.1} parent=1 // pred_check_branch
      %29 = sbr.rel (0) target = $region9
    $region8: #{forward.1} parent=1 // pred_region
      _
    $region9: #{forward.1} parent=1 // pred_fallthru
      _
    // Predicated region
    $region10: #{forward.1} parent=1 // pred_check
      _
    $region11: #{forward.1} parent=1 // pred_check_branch
      %31 = sbr.rel (0) target = $region13
    $region12: #{forward.1} parent=1 // pred_region
      _
    $region13: #{forward.1} parent=1 // pred_fallthru
      _
    // Predicated region
    $region14: #{forward.1} parent=1 // pred_check
      _
    $region15: #{forward.1} parent=1 // pred_check_branch
      %33 = sbr.rel (0) target = $region17
    $region16: #{forward.1} parent=1 // pred_region
      _
    $region17: #{forward.1} parent=1 // pred_fallthru
      _
    // Predicated region
    $region18: #{forward.1} parent=1 // pred_check
      _
    $region19: #{forward.1} parent=1 // pred_check_branch
      %35 = sbr.rel (0) target = $region21
    $region20: #{forward.1} parent=1 // pred_region
      _
    $region21: #{forward.1} parent=1 // pred_fallthru
      _
    // Predicated region
    $region22: #{forward.1} parent=1 // pred_check
      _
    $region23: #{forward.1} parent=1 // pred_check_branch
      %37 = sbr.rel (0) target = $region25
    $region24: #{forward.1} parent=1 // pred_region
      _
    $region25: #{forward.1} parent=1 // pred_fallthru
      _
    // Predicated region
    $region26: #{forward.1} parent=1 // pred_check
      _
    $region27: #{forward.1} parent=1 // pred_check_branch
      %39 = sbr.rel (0) target = $region29
    $region28: #{forward.1} parent=1 // pred_region
      _
    $region29: #{forward.1} parent=1 // pred_fallthru
      _
    // Predicated region
    $region30: #{forward.1} parent=1 // pred_check
      _
    $region31: #{forward.1} parent=1 // pred_check_branch
      %41 = sbr.rel (0) target = $region33
    $region32: #{forward.1} parent=1 // pred_region
      _
    $region33: #{forward.1} parent=1 // pred_fallthru
      _
    // Predicated region
    $region34: #{forward.1} parent=1 // pred_check
      _
    $region35: #{forward.1} parent=1 // pred_check_branch
      %43 = sbr.rel (0) target = $region37
    $region36: #{forward.1} parent=1 // pred_region
      _
    $region37: #{forward.1} parent=1 // pred_fallthru
      _
    // Predicated region
    $region38: #{forward.1} parent=1 // pred_check
      _
    $region39: #{forward.1} parent=1 // pred_check_branch
      %45 = sbr.rel (0) target = $region41
    $region40: #{forward.1} parent=1 // pred_region
      %47 = dma.done [#allocation3], 20992
    $region41: #{forward.1} parent=1 // pred_fallthru
      _
    %v48 = vld [vmem:[%s1] sm:$0xff]
    %v49 = vld [vmem:[%s1 + $0x8] sm:$0xff]
    %v50 = vld [vmem:[#allocation2] sm:$0xff]
    %v51 = vld [vmem:[#allocation2 + $0x8] sm:$0xff]
    %v52 = vld [vmem:[#allocation2 + $0x10] sm:$0xff]
    %v53 = vld [vmem:[#allocation2 + $0x18] sm:$0xff]
    %v54 = vld [vmem:[#allocation2 + $0x20] sm:$0x1]
    %v55 = vperm.slane %v54, 0
    %vm56 = vcmask 261120
    %v58 = vsel %vm56, %v48, 0
    %v61 = vsel %vm56, %v49, 0
    %63 = vmatpush.msra.mxu0 0.0
    %64 = vmatpush.msra.mxu0 0.0
    %65 = vmatpush.msra.mxu0 0.0
    %66 = vmatpush.msra.mxu0 0.0
    %67 = vmatpush.msra.mxu0 0.0
    %68 = vmatpush.msra.mxu0 0.0
    %69 = vmatpush.msra.mxu0 0.0
    %70 = vmatpush.msra.mxu0 0.0
    %71 = vmatpush.msra.mxu0 0.0
    %72 = vmatpush.msra.mxu0 0.0
    %73 = vmatpush.msra.mxu0 0.0
    %74 = vmatpush.msra.mxu0 0.0
    %75 = vmatpush.msra.mxu0 %v53
    %76 = vmatpush.msra.mxu0 %v52
    %77 = vmatpush.msra.mxu0 %v51
    %78 = vmatpush.msra.mxu0 %v50
    %79 = vmatmul.f32.gmra.mxu0 %v58
    %v80 = vpop.f32.mrf.mxu0
    %v81 = vadd.f32 %v55, %v80
    %82 = vmatmul.f32.gmra.mxu0 %v61
    %v83 = vpop.f32.mrf.mxu0
    %v84 = vadd.f32 %v55, %v83
    %85 = vdwg.mxu0
    %v86 = vxor.u32 %v81, 2147483648
    %v87 = vxor.u32 %v84, 2147483648
    %v88 = vmul.f32 %v86, 1.442695
    %v89 = vpow.pop %v88
    %v90 = vmul.f32 %v87, 1.442695
    %v91 = vpow.pop %v90
    %v92 = vadd.f32 %v89, 1.0
    %v93 = vadd.f32 %v91, 1.0
    %v94 = vrcp.pop %v92
    %v95 = vmul.f32 %v92, %v94
    %v96 = vsub.f32 1.0, %v95
    %v97 = vmul.f32 %v94, %v96
    %v98 = vadd.f32 %v94, %v97
    %vm99 = vweird.f32 %v92
    %vm100 = vweird.f32 %v94
    %vm101 = vmor %vm99, %vm100
    %v102 = vsel %vm101, %v94, %v98
    %v103 = vand.u32 2147483647, %v92
    %vm104 = vcmp.eq.f32.partialorder %v103, 8.507059e+37
    %v105 = vand.u32 %v92, 2147483648
    %v106 = vor.u32 1.1754944e-38, %v105
    %v107 = vsel %vm104, %v106, %v102
    %v108 = vmul.f32 1.0, %v107
    %v109 = vrcp.pop %v93
    %v110 = vmul.f32 %v93, %v109
    %v111 = vsub.f32 1.0, %v110
    %v112 = vmul.f32 %v109, %v111
    %v113 = vadd.f32 %v109, %v112
    %vm114 = vweird.f32 %v93
    %vm115 = vweird.f32 %v109
    %vm116 = vmor %vm114, %vm115
    %v117 = vsel %vm116, %v109, %v113
    %v118 = vand.u32 2147483647, %v93
    %vm119 = vcmp.eq.f32.partialorder %v118, 8.507059e+37
    %v120 = vand.u32 %v93, 2147483648
    %v121 = vor.u32 1.1754944e-38, %v120
    %v122 = vsel %vm119, %v121, %v117
    %v123 = vmul.f32 1.0, %v122
    %v124 = vmul.f32 %v81, %v108
    %v125 = vmul.f32 %v84, %v123
    %v126 = vld [vmem:[#allocation2 + $0x28] sm:$0xff]
    %v127 = vld [vmem:[#allocation2 + $0x30] sm:$0xff]
    %v128 = vld [vmem:[#allocation2 + $0x38] sm:$0xff]
    %v129 = vld [vmem:[#allocation2 + $0x40] sm:$0xff]
    %v130 = vld [vmem:[#allocation2 + $0x48] sm:$0x1]
    %v131 = vperm.slane %v130, 0
    %v133 = vsel %vm56, %v124, 0
    %v136 = vsel %vm56, %v125, 0
    %138 = vmatpush.msra.mxu0 0.0
    %139 = vmatpush.msra.mxu0 0.0
    %140 = vmatpush.msra.mxu0 0.0
    %141 = vmatpush.msra.mxu0 0.0
    %142 = vmatpush.msra.mxu0 0.0
    %143 = vmatpush.msra.mxu0 0.0
    %144 = vmatpush.msra.mxu0 0.0
    %145 = vmatpush.msra.mxu0 0.0
    %146 = vmatpush.msra.mxu0 0.0
    %147 = vmatpush.msra.mxu0 0.0
    %148 = vmatpush.msra.mxu0 0.0
    %149 = vmatpush.msra.mxu0 0.0
    %150 = vmatpush.msra.mxu0 %v129
    %151 = vmatpush.msra.mxu0 %v128
    %152 = vmatpush.msra.mxu0 %v127
    %153 = vmatpush.msra.mxu0 %v126
    %154 = vmatmul.f32.gmra.mxu0 %v133
    %v155 = vpop.f32.mrf.mxu0
    %v156 = vadd.f32 %v131, %v155
    %157 = vmatmul.f32.gmra.mxu0 %v136
    %v158 = vpop.f32.mrf.mxu0
    %v159 = vadd.f32 %v131, %v158
    %160 = vdwg.mxu0
    %v161 = vld [vmem:[%s2] sm:$0xff]
    %v162 = vld [vmem:[%s2 + $0x8] sm:$0xff]
    %v163 = vld [vmem:[#allocation2 + $0x50] sm:$0xff]
    %v164 = vld [vmem:[#allocation2 + $0x58] sm:$0xff]
    %v165 = vld [vmem:[#allocation2 + $0x60] sm:$0xff]
    %v166 = vld [vmem:[#allocation2 + $0x68] sm:$0xff]
    %v167 = vld [vmem:[#allocation2 + $0x70] sm:$0x1]
    %v168 = vperm.slane %v167, 0
    %v170 = vsel %vm56, %v161, 0
    %v173 = vsel %vm56, %v162, 0
    %175 = vmatpush.msra.mxu0 0.0
    %176 = vmatpush.msra.mxu0 0.0
    %177 = vmatpush.msra.mxu0 0.0
    %178 = vmatpush.msra.mxu0 0.0
    %179 = vmatpush.msra.mxu0 0.0
    %180 = vmatpush.msra.mxu0 0.0
    %181 = vmatpush.msra.mxu0 0.0
    %182 = vmatpush.msra.mxu0 0.0
    %183 = vmatpush.msra.mxu0 0.0
    %184 = vmatpush.msra.mxu0 0.0
    %185 = vmatpush.msra.mxu0 0.0
    %186 = vmatpush.msra.mxu0 0.0
    %187 = vmatpush.msra.mxu0 %v166
    %188 = vmatpush.msra.mxu0 %v165
    %189 = vmatpush.msra.mxu0 %v164
    %190 = vmatpush.msra.mxu0 %v163
    %191 = vmatmul.f32.gmra.mxu0 %v170
    %v192 = vpop.f32.mrf.mxu0
    %v193 = vadd.f32 %v168, %v192
    %194 = vmatmul.f32.gmra.mxu0 %v173
    %v195 = vpop.f32.mrf.mxu0
    %v196 = vadd.f32 %v168, %v195
    %197 = vdwg.mxu0
    %v198 = vtanh.pop %v193
    %v199 = vtanh.pop %v196
    %v200 = vld [vmem:[#allocation2 + $0x78] sm:$0xff]
    %v201 = vld [vmem:[#allocation2 + $0x80] sm:$0xff]
    %v202 = vld [vmem:[#allocation2 + $0x88] sm:$0xff]
    %v203 = vld [vmem:[#allocation2 + $0x90] sm:$0xff]
    %v204 = vld [vmem:[#allocation2 + $0x98] sm:$0x1]
    %v205 = vperm.slane %v204, 0
    %v207 = vsel %vm56, %v198, 0
    %v210 = vsel %vm56, %v199, 0
    %212 = vmatpush.msra.mxu0 0.0
    %213 = vmatpush.msra.mxu0 0.0
    %214 = vmatpush.msra.mxu0 0.0
    %215 = vmatpush.msra.mxu0 0.0
    %216 = vmatpush.msra.mxu0 0.0
    %217 = vmatpush.msra.mxu0 0.0
    %218 = vmatpush.msra.mxu0 0.0
    %219 = vmatpush.msra.mxu0 0.0
    %220 = vmatpush.msra.mxu0 0.0
    %221 = vmatpush.msra.mxu0 0.0
    %222 = vmatpush.msra.mxu0 0.0
    %223 = vmatpush.msra.mxu0 0.0
    %224 = vmatpush.msra.mxu0 %v203
    %225 = vmatpush.msra.mxu0 %v202
    %226 = vmatpush.msra.mxu0 %v201
    %227 = vmatpush.msra.mxu0 %v200
    %228 = vmatmul.f32.gmra.mxu0 %v207
    %v229 = vpop.f32.mrf.mxu0
    %v230 = vadd.f32 %v205, %v229
    %231 = vmatmul.f32.gmra.mxu0 %v210
    %v232 = vpop.f32.mrf.mxu0
    %v233 = vadd.f32 %v205, %v232
    %234 = vdwg.mxu0
    %v235 = vadd.f32 %v230, %v156
    %v236 = vadd.f32 %v233, %v159
    %v237 = vsel %vm56, %v235, 0.0
    %238 = vadd.xlane.f32.xlu0 %v237
    %v239 = vpop.xlane.xlu0 %238
    %v240 = vsel %vm56, %v236, 0.0
    %241 = vadd.xlane.f32.xlu0 %v240
    %v242 = vpop.xlane.xlu0 %241
    %v243 = vrcp.pop 32.0
    %v244 = vmul.f32 32.0, %v243
    %v245 = vsub.f32 1.0, %v244
    %v246 = vmul.f32 %v243, %v245
    %v247 = vadd.f32 %v243, %v246
    %vm248 = vweird.f32 %v243
    %v249 = vsel %vm248, %v243, %v247
    %v250 = vmul.f32 %v239, %v249
    %v251 = vmul.f32 %v242, %v249
    %v252 = vmul.f32 %v235, %v235
    %v253 = vmul.f32 %v236, %v236
    %v254 = vsel %vm56, %v252, 0.0
    %255 = vadd.xlane.f32.xlu0 %v254
    %v256 = vpop.xlane.xlu0 %255
    %v257 = vsel %vm56, %v253, 0.0
    %258 = vadd.xlane.f32.xlu0 %v257
    %v259 = vpop.xlane.xlu0 %258
    %v260 = vmul.f32 %v256, %v249
    %v261 = vmul.f32 %v259, %v249
    %v262 = vmul.f32 %v250, %v250
    %v263 = vmul.f32 %v251, %v251
    %v264 = vsub.f32 %v260, %v262
    %v265 = vsub.f32 %v261, %v263
    %v266 = vadd.f32 %v264, 1e-05
    %v267 = vadd.f32 %v265, 1e-05
    %v268 = vrsqrt.pop %v266
    %v269 = vmul.f32 %v268, %v266
    %v270 = vmul.f32 %v269, %v268
    %v271 = vmul.f32 0.5, %v270
    %v272 = vsub.f32 1.5, %v271
    %v273 = vmul.f32 %v268, %v272
    %vm274 = vweird.f32 %v266
    %vm275 = vweird.f32 %v268
    %vm276 = vmor %vm274, %vm275
    %v277 = vsel %vm276, %v268, %v273
    %v278 = vrsqrt.pop %v267
    %v279 = vmul.f32 %v278, %v267
    %v280 = vmul.f32 %v279, %v278
    %v281 = vmul.f32 0.5, %v280
    %v282 = vsub.f32 1.5, %v281
    %v283 = vmul.f32 %v278, %v282
    %vm284 = vweird.f32 %v267
    %vm285 = vweird.f32 %v278
    %vm286 = vmor %vm284, %vm285
    %v287 = vsel %vm286, %v278, %v283
    %v288 = vsub.f32 %v235, %v250
    %v289 = vsub.f32 %v236, %v251
    %v290 = vmul.f32 %v288, %v277
    %v291 = vmul.f32 %v289, %v287
    %v292 = vld [vmem:[#allocation2 + $0x129] sm:$0x1]
    %v293 = vperm.slane %v292, 0
    %v294 = vmul.f32 %v290, %v293
    %v295 = vmul.f32 %v291, %v293
    %v296 = vld [vmem:[#allocation2 + $0x12a] sm:$0x1]
    %v297 = vperm.slane %v296, 0
    %v298 = vadd.f32 %v294, %v297
    %v299 = vadd.f32 %v295, %v297
    %v300 = vld [vmem:[%s3] sm:$0xff]
    %v301 = vld [vmem:[%s3 + $0x8] sm:$0xff]
    %v302 = vld [vmem:[#allocation2 + $0xa0] sm:$0xff]
    %v303 = vld [vmem:[#allocation2 + $0xa8] sm:$0xff]
    %v304 = vld [vmem:[#allocation2 + $0xb0] sm:$0x1]
    %v305 = vperm.slane %v304, 0
    %vm306 = vcmask 130048
    %v308 = vsel %vm306, %v300, 0
    %v311 = vsel %vm306, %v301, 0
    %313 = vmatpush.msra.mxu0 0.0
    %314 = vmatpush.msra.mxu0 0.0
    %315 = vmatpush.msra.mxu0 0.0
    %316 = vmatpush.msra.mxu0 0.0
    %317 = vmatpush.msra.mxu0 0.0
    %318 = vmatpush.msra.mxu0 0.0
    %319 = vmatpush.msra.mxu0 0.0
    %320 = vmatpush.msra.mxu0 0.0
    %321 = vmatpush.msra.mxu0 0.0
    %322 = vmatpush.msra.mxu0 0.0
    %323 = vmatpush.msra.mxu0 0.0
    %324 = vmatpush.msra.mxu0 0.0
    %325 = vmatpush.msra.mxu0 0.0
    %326 = vmatpush.msra.mxu0 0.0
    %327 = vmatpush.msra.mxu0 %v303
    %328 = vmatpush.msra.mxu0 %v302
    %329 = vmatmul.f32.gmra.mxu0 %v308
    %v330 = vpop.f32.mrf.mxu0
    %v331 = vadd.f32 %v305, %v330
    %332 = vmatmul.f32.gmra.mxu0 %v311
    %v333 = vpop.f32.mrf.mxu0
    %v334 = vadd.f32 %v305, %v333
    %335 = vdwg.mxu0
    %v336 = vtanh.pop %v331
    %v337 = vtanh.pop %v334
    %v338 = vld [vmem:[#allocation2 + $0xb8] sm:$0xff]
    %v339 = vld [vmem:[#allocation2 + $0xc0] sm:$0xff]
    %v340 = vld [vmem:[#allocation2 + $0xc8] sm:$0xff]
    %v341 = vld [vmem:[#allocation2 + $0xd0] sm:$0xff]
    %v342 = vld [vmem:[#allocation2 + $0xd8] sm:$0x1]
    %v343 = vperm.slane %v342, 0
    %v345 = vsel %vm56, %v336, 0
    %v348 = vsel %vm56, %v337, 0
    %350 = vmatpush.msra.mxu0 0.0
    %351 = vmatpush.msra.mxu0 0.0
    %352 = vmatpush.msra.mxu0 0.0
    %353 = vmatpush.msra.mxu0 0.0
    %354 = vmatpush.msra.mxu0 0.0
    %355 = vmatpush.msra.mxu0 0.0
    %356 = vmatpush.msra.mxu0 0.0
    %357 = vmatpush.msra.mxu0 0.0
    %358 = vmatpush.msra.mxu0 0.0
    %359 = vmatpush.msra.mxu0 0.0
    %360 = vmatpush.msra.mxu0 0.0
    %361 = vmatpush.msra.mxu0 0.0
    %362 = vmatpush.msra.mxu0 %v341
    %363 = vmatpush.msra.mxu0 %v340
    %364 = vmatpush.msra.mxu0 %v339
    %365 = vmatpush.msra.mxu0 %v338
    %366 = vmatmul.f32.gmra.mxu0 %v345
    %v367 = vpop.f32.mrf.mxu0
    %v368 = vadd.f32 %v343, %v367
    %369 = vmatmul.f32.gmra.mxu0 %v348
    %v370 = vpop.f32.mrf.mxu0
    %v371 = vadd.f32 %v343, %v370
    %372 = vdwg.mxu0
    %v373 = vld [vmem:[%s4] sm:$0xff]
    %v374 = vld [vmem:[%s4 + $0x8] sm:$0xff]
    %v375 = vadd.f32 %v368, %v373
    %v376 = vadd.f32 %v371, %v374
    %v377 = vsel %vm56, %v375, 0.0
    %378 = vadd.xlane.f32.xlu0 %v377
    %v379 = vpop.xlane.xlu0 %378
    %v380 = vsel %vm56, %v376, 0.0
    %381 = vadd.xlane.f32.xlu0 %v380
    %v382 = vpop.xlane.xlu0 %381
    %v383 = vmul.f32 %v379, %v249
    %v384 = vmul.f32 %v382, %v249
    %v385 = vmul.f32 %v375, %v375
    %v386 = vmul.f32 %v376, %v376
    %v387 = vsel %vm56, %v385, 0.0
    %388 = vadd.xlane.f32.xlu0 %v387
    %v389 = vpop.xlane.xlu0 %388
    %v390 = vsel %vm56, %v386, 0.0
    %391 = vadd.xlane.f32.xlu0 %v390
    %v392 = vpop.xlane.xlu0 %391
    %v393 = vmul.f32 %v389, %v249
    %v394 = vmul.f32 %v392, %v249
    %v395 = vmul.f32 %v383, %v383
    %v396 = vmul.f32 %v384, %v384
    %v397 = vsub.f32 %v393, %v395
    %v398 = vsub.f32 %v394, %v396
    %v399 = vadd.f32 %v397, 1e-05
    %v400 = vadd.f32 %v398, 1e-05
    %v401 = vrsqrt.pop %v399
    %v402 = vmul.f32 %v401, %v399
    %v403 = vmul.f32 %v402, %v401
    %v404 = vmul.f32 0.5, %v403
    %v405 = vsub.f32 1.5, %v404
    %v406 = vmul.f32 %v401, %v405
    %vm407 = vweird.f32 %v399
    %vm408 = vweird.f32 %v401
    %vm409 = vmor %vm407, %vm408
    %v410 = vsel %vm409, %v401, %v406
    %v411 = vrsqrt.pop %v400
    %v412 = vmul.f32 %v411, %v400
    %v413 = vmul.f32 %v412, %v411
    %v414 = vmul.f32 0.5, %v413
    %v415 = vsub.f32 1.5, %v414
    %v416 = vmul.f32 %v411, %v415
    %vm417 = vweird.f32 %v400
    %vm418 = vweird.f32 %v411
    %vm419 = vmor %vm417, %vm418
    %v420 = vsel %vm419, %v411, %v416
    %v421 = vsub.f32 %v375, %v383
    %v422 = vsub.f32 %v376, %v384
    %v423 = vmul.f32 %v421, %v410
    %v424 = vmul.f32 %v422, %v420
    %v425 = vld [vmem:[#allocation2 + $0x12b] sm:$0x1]
    %v426 = vperm.slane %v425, 0
    %v427 = vmul.f32 %v423, %v426
    %v428 = vmul.f32 %v424, %v426
    %v429 = vld [vmem:[#allocation2 + $0x12c] sm:$0x1]
    %v430 = vperm.slane %v429, 0
    %v431 = vadd.f32 %v427, %v430
    %v432 = vadd.f32 %v428, %v430
    %v433 = vld [vmem:[%s6] sm:$0xff]
    %v434 = vld [vmem:[%s6 + $0x8] sm:$0xff]
    %v435 = vld [vmem:[#allocation2 + $0x130] sm:$0xff]
    %v436 = vld [vmem:[#allocation2 + $0x138] sm:$0xff]
    %v437 = vld [vmem:[#allocation2 + $0x140] sm:$0xff]
    %v438 = vld [vmem:[#allocation2 + $0x148] sm:$0xff]
    %v439 = vld [vmem:[#allocation2 + $0x150] sm:$0x1]
    %v440 = vperm.slane %v439, 0
    %v442 = vsel %vm56, %v431, 0
    %v445 = vsel %vm56, %v432, 0
    %447 = vmatpush.msra.mxu0 0.0
    %448 = vmatpush.msra.mxu0 0.0
    %449 = vmatpush.msra.mxu0 0.0
    %450 = vmatpush.msra.mxu0 0.0
    %451 = vmatpush.msra.mxu0 0.0
    %452 = vmatpush.msra.mxu0 0.0
    %453 = vmatpush.msra.mxu0 0.0
    %454 = vmatpush.msra.mxu0 0.0
    %455 = vmatpush.msra.mxu0 0.0
    %456 = vmatpush.msra.mxu0 0.0
    %457 = vmatpush.msra.mxu0 0.0
    %458 = vmatpush.msra.mxu0 0.0
    %459 = vmatpush.msra.mxu0 %v438
    %460 = vmatpush.msra.mxu0 %v437
    %461 = vmatpush.msra.mxu0 %v436
    %462 = vmatpush.msra.mxu0 %v435
    %463 = vmatmul.f32.gmra.mxu0 %v442
    %v464 = vpop.f32.mrf.mxu0
    %v465 = vadd.f32 %v440, %v464
    %466 = vmatmul.f32.gmra.mxu0 %v445
    %v467 = vpop.f32.mrf.mxu0
    %v468 = vadd.f32 %v440, %v467
    %469 = vdwg.mxu0
    %472 = vrot.lane.b32.xlu0 %v465, 96
    %v473 = vpop.permute.xlu0 %472
    %474 = vrot.lane.b32.xlu0 %v468, 96
    %v475 = vpop.permute.xlu0 %474
    %v476 = vsel %vm306, %v465, 0
    %v478 = vsel %vm306, %v468, 0
    %v480 = vsel %vm306, %v473, 0
    %v482 = vsel %vm306, %v475, 0
    %484 = vmatpush.xpose.msra.mxu0 0.0
    %485 = vmatpush.xpose.msra.mxu0 0.0
    %486 = vmatpush.xpose.msra.mxu0 0.0
    %487 = vmatpush.xpose.msra.mxu0 0.0
    %488 = vmatpush.xpose.msra.mxu0 0.0
    %489 = vmatpush.xpose.msra.mxu0 0.0
    %490 = vmatpush.xpose.msra.mxu0 0.0
    %491 = vmatpush.xpose.msra.mxu0 0.0
    %492 = vmatpush.xpose.msra.mxu0 0.0
    %493 = vmatpush.xpose.msra.mxu0 0.0
    %494 = vmatpush.xpose.msra.mxu0 0.0
    %495 = vmatpush.xpose.msra.mxu0 0.0
    %496 = vmatpush.xpose.msra.mxu0 0.0
    %497 = vmatpush.xpose.msra.mxu0 0.0
    %498 = vmatpush.xpose.msra.mxu0 %v482
    %499 = vmatpush.xpose.msra.mxu0 %v480
    %500 = vmatmul.f32.gmra.mxu0 %v476
    %v501 = vpop.f32.mrf.mxu0
    %v502 = vadd.f32 0.0, %v501
    %503 = vmatmul.f32.gmra.mxu0 %v478
    %v504 = vpop.f32.mrf.mxu0
    %v505 = vadd.f32 0.0, %v504
    %506 = vdwg.mxu0
    %v507 = vmul.f32 %v502, 0.25
    %v508 = vmul.f32 %v505, 0.25
    %v509 = vadd.f32 %v507, %v433
    %v510 = vadd.f32 %v508, %v434
    %v511 = vsel %vm306, %v509, -inf
    %512 = vmax.xlane.f32.xlu0 %v511
    %v513 = vpop.xlane.xlu0 %512
    %v514 = vsel %vm306, %v510, -inf
    %515 = vmax.xlane.f32.xlu0 %v514
    %v516 = vpop.xlane.xlu0 %515
    %v517 = vsub.f32 %v509, %v513
    %v518 = vsub.f32 %v510, %v516
    %v519 = vmul.f32 %v517, 1.442695
    %v520 = vpow.pop %v519
    %v521 = vmul.f32 %v518, 1.442695
    %v522 = vpow.pop %v521
    %v523 = vsel %vm306, %v520, 0.0
    %524 = vadd.xlane.f32.xlu0 %v523
    %v525 = vpop.xlane.xlu0 %524
    %v526 = vsel %vm306, %v522, 0.0
    %527 = vadd.xlane.f32.xlu0 %v526
    %v528 = vpop.xlane.xlu0 %527
    %v529 = vrcp.pop %v525
    %v530 = vrcp.pop %v528
    %v531 = vmul.f32 %v520, %v529
    %v532 = vmul.f32 %v522, %v530
    %533 = vrot.lane.b32.xlu0 %v465, 64
    %v534 = vpop.permute.xlu0 %533
    %535 = vrot.lane.b32.xlu0 %v468, 64
    %v536 = vpop.permute.xlu0 %535
    %v540 = vsel %vm306, %v531, 0
    %v543 = vsel %vm306, %v532, 0
    %545 = vmatpush.msra.mxu0 0.0
    %546 = vmatpush.msra.mxu0 0.0
    %547 = vmatpush.msra.mxu0 0.0
    %548 = vmatpush.msra.mxu0 0.0
    %549 = vmatpush.msra.mxu0 0.0
    %550 = vmatpush.msra.mxu0 0.0
    %551 = vmatpush.msra.mxu0 0.0
    %552 = vmatpush.msra.mxu0 0.0
    %553 = vmatpush.msra.mxu0 0.0
    %554 = vmatpush.msra.mxu0 0.0
    %555 = vmatpush.msra.mxu0 0.0
    %556 = vmatpush.msra.mxu0 0.0
    %557 = vmatpush.msra.mxu0 0.0
    %558 = vmatpush.msra.mxu0 0.0
    %559 = vmatpush.msra.mxu0 %v536
    %560 = vmatpush.msra.mxu0 %v534
    %561 = vmatmul.f32.gmra.mxu0 %v540
    %v562 = vpop.f32.mrf.mxu0
    %v563 = vadd.f32 0.0, %v562
    %564 = vmatmul.f32.gmra.mxu0 %v543
    %v565 = vpop.f32.mrf.mxu0
    %v566 = vadd.f32 0.0, %v565
    %567 = vdwg.mxu0
    %568 = vrot.lane.b32.xlu0 %v465, 112
    %v569 = vpop.permute.xlu0 %568
    %570 = vrot.lane.b32.xlu0 %v468, 112
    %v571 = vpop.permute.xlu0 %570
    %572 = vrot.lane.b32.xlu0 %v465, 80
    %v573 = vpop.permute.xlu0 %572
    %574 = vrot.lane.b32.xlu0 %v468, 80
    %v575 = vpop.permute.xlu0 %574
    %v576 = vsel %vm306, %v569, 0
    %v578 = vsel %vm306, %v571, 0
    %v580 = vsel %vm306, %v573, 0
    %v582 = vsel %vm306, %v575, 0
    %584 = vmatpush.xpose.msra.mxu0 0.0
    %585 = vmatpush.xpose.msra.mxu0 0.0
    %586 = vmatpush.xpose.msra.mxu0 0.0
    %587 = vmatpush.xpose.msra.mxu0 0.0
    %588 = vmatpush.xpose.msra.mxu0 0.0
    %589 = vmatpush.xpose.msra.mxu0 0.0
    %590 = vmatpush.xpose.msra.mxu0 0.0
    %591 = vmatpush.xpose.msra.mxu0 0.0
    %592 = vmatpush.xpose.msra.mxu0 0.0
    %593 = vmatpush.xpose.msra.mxu0 0.0
    %594 = vmatpush.xpose.msra.mxu0 0.0
    %595 = vmatpush.xpose.msra.mxu0 0.0
    %596 = vmatpush.xpose.msra.mxu0 0.0
    %597 = vmatpush.xpose.msra.mxu0 0.0
    %598 = vmatpush.xpose.msra.mxu0 %v582
    %599 = vmatpush.xpose.msra.mxu0 %v580
    %600 = vmatmul.f32.gmra.mxu0 %v576
    %v601 = vpop.f32.mrf.mxu0
    %v602 = vadd.f32 0.0, %v601
    %603 = vmatmul.f32.gmra.mxu0 %v578
    %v604 = vpop.f32.mrf.mxu0
    %v605 = vadd.f32 0.0, %v604
    %606 = vdwg.mxu0
    %v607 = vmul.f32 %v602, 0.25
    %v608 = vmul.f32 %v605, 0.25
    %v609 = vadd.f32 %v607, %v433
    %v610 = vadd.f32 %v608, %v434
    %v611 = vsel %vm306, %v609, -inf
    %612 = vmax.xlane.f32.xlu0 %v611
    %v613 = vpop.xlane.xlu0 %612
    %v614 = vsel %vm306, %v610, -inf
    %615 = vmax.xlane.f32.xlu0 %v614
    %v616 = vpop.xlane.xlu0 %615
    %v617 = vsub.f32 %v609, %v613
    %v618 = vsub.f32 %v610, %v616
    %v619 = vmul.f32 %v617, 1.442695
    %v620 = vpow.pop %v619
    %v621 = vmul.f32 %v618, 1.442695
    %v622 = vpow.pop %v621
    %v623 = vsel %vm306, %v620, 0.0
    %624 = vadd.xlane.f32.xlu0 %v623
    %v625 = vpop.xlane.xlu0 %624
    %v626 = vsel %vm306, %v622, 0.0
    %627 = vadd.xlane.f32.xlu0 %v626
    %v628 = vpop.xlane.xlu0 %627
    %v629 = vrcp.pop %v625
    %v630 = vrcp.pop %v628
    %v631 = vmul.f32 %v620, %v629
    %v632 = vmul.f32 %v622, %v630
    %633 = vrot.lane.b32.xlu0 %v465, 48
    %v634 = vpop.permute.xlu0 %633
    %635 = vrot.lane.b32.xlu0 %v468, 48
    %v636 = vpop.permute.xlu0 %635
    %v640 = vsel %vm306, %v631, 0
    %v643 = vsel %vm306, %v632, 0
    %645 = vmatpush.msra.mxu0 0.0
    %646 = vmatpush.msra.mxu0 0.0
    %647 = vmatpush.msra.mxu0 0.0
    %648 = vmatpush.msra.mxu0 0.0
    %649 = vmatpush.msra.mxu0 0.0
    %650 = vmatpush.msra.mxu0 0.0
    %651 = vmatpush.msra.mxu0 0.0
    %652 = vmatpush.msra.mxu0 0.0
    %653 = vmatpush.msra.mxu0 0.0
    %654 = vmatpush.msra.mxu0 0.0
    %655 = vmatpush.msra.mxu0 0.0
    %656 = vmatpush.msra.mxu0 0.0
    %657 = vmatpush.msra.mxu0 0.0
    %658 = vmatpush.msra.mxu0 0.0
    %659 = vmatpush.msra.mxu0 %v636
    %660 = vmatpush.msra.mxu0 %v634
    %661 = vmatmul.f32.gmra.mxu0 %v640
    %v662 = vpop.f32.mrf.mxu0
    %v663 = vadd.f32 0.0, %v662
    %664 = vmatmul.f32.gmra.mxu0 %v643
    %v665 = vpop.f32.mrf.mxu0
    %v666 = vadd.f32 0.0, %v665
    %667 = vdwg.mxu0
    %670 = vrot.lane.b32.xlu0 %v663, 16
    %v671 = vpop.permute.xlu0 %670
    %672 = vrot.lane.b32.xlu0 %v666, 16
    %v673 = vpop.permute.xlu0 %672
    %v676 = vsel %vm306, %v563, %v671
    %v677 = vsel %vm306, %v566, %v673
    %v678 = vld [vmem:[#allocation2 + $0x158] sm:$0xff]
    %v679 = vld [vmem:[#allocation2 + $0x160] sm:$0xff]
    %v680 = vld [vmem:[#allocation2 + $0x168] sm:$0xff]
    %v681 = vld [vmem:[#allocation2 + $0x170] sm:$0xff]
    %v682 = vld [vmem:[#allocation2 + $0x178] sm:$0x1]
    %v683 = vperm.slane %v682, 0
    %v685 = vsel %vm56, %v676, 0
    %v688 = vsel %vm56, %v677, 0
    %690 = vmatpush.msra.mxu0 0.0
    %691 = vmatpush.msra.mxu0 0.0
    %692 = vmatpush.msra.mxu0 0.0
    %693 = vmatpush.msra.mxu0 0.0
    %694 = vmatpush.msra.mxu0 0.0
    %695 = vmatpush.msra.mxu0 0.0
    %696 = vmatpush.msra.mxu0 0.0
    %697 = vmatpush.msra.mxu0 0.0
    %698 = vmatpush.msra.mxu0 0.0
    %699 = vmatpush.msra.mxu0 0.0
    %700 = vmatpush.msra.mxu0 0.0
    %701 = vmatpush.msra.mxu0 0.0
    %702 = vmatpush.msra.mxu0 %v681
    %703 = vmatpush.msra.mxu0 %v680
    %704 = vmatpush.msra.mxu0 %v679
    %705 = vmatpush.msra.mxu0 %v678
    %706 = vmatmul.f32.gmra.mxu0 %v685
    %v707 = vpop.f32.mrf.mxu0
    %v708 = vadd.f32 %v683, %v707
    %709 = vmatmul.f32.gmra.mxu0 %v688
    %v710 = vpop.f32.mrf.mxu0
    %v711 = vadd.f32 %v683, %v710
    %712 = vdwg.mxu0
    %v713 = vadd.f32 %v431, %v708
    %v714 = vadd.f32 %v432, %v711
    %v715 = vsel %vm56, %v713, 0.0
    %716 = vadd.xlane.f32.xlu0 %v715
    %v717 = vpop.xlane.xlu0 %716
    %v718 = vsel %vm56, %v714, 0.0
    %719 = vadd.xlane.f32.xlu0 %v718
    %v720 = vpop.xlane.xlu0 %719
    %v721 = vmul.f32 %v717, %v249
    %v722 = vmul.f32 %v720, %v249
    %v723 = vmul.f32 %v713, %v713
    %v724 = vmul.f32 %v714, %v714
    %v725 = vsel %vm56, %v723, 0.0
    %726 = vadd.xlane.f32.xlu0 %v725
    %v727 = vpop.xlane.xlu0 %726
    %v728 = vsel %vm56, %v724, 0.0
    %729 = vadd.xlane.f32.xlu0 %v728
    %v730 = vpop.xlane.xlu0 %729
    %v731 = vmul.f32 %v727, %v249
    %v732 = vmul.f32 %v730, %v249
    %v733 = vmul.f32 %v721, %v721
    %v734 = vmul.f32 %v722, %v722
    %v735 = vsub.f32 %v731, %v733
    %v736 = vsub.f32 %v732, %v734
    %v737 = vadd.f32 %v735, 1e-05
    %v738 = vadd.f32 %v736, 1e-05
    %v739 = vrsqrt.pop %v737
    %v740 = vmul.f32 %v739, %v737
    %v741 = vmul.f32 %v740, %v739
    %v742 = vmul.f32 0.5, %v741
    %v743 = vsub.f32 1.5, %v742
    %v744 = vmul.f32 %v739, %v743
    %vm745 = vweird.f32 %v737
    %vm746 = vweird.f32 %v739
    %vm747 = vmor %vm745, %vm746
    %v748 = vsel %vm747, %v739, %v744
    %v749 = vrsqrt.pop %v738
    %v750 = vmul.f32 %v749, %v738
    %v751 = vmul.f32 %v750, %v749
    %v752 = vmul.f32 0.5, %v751
    %v753 = vsub.f32 1.5, %v752
    %v754 = vmul.f32 %v749, %v753
    %vm755 = vweird.f32 %v738
    %vm756 = vweird.f32 %v749
    %vm757 = vmor %vm755, %vm756
    %v758 = vsel %vm757, %v749, %v754
    %v759 = vsub.f32 %v713, %v721
    %v760 = vsub.f32 %v714, %v722
    %v761 = vmul.f32 %v759, %v748
    %v762 = vmul.f32 %v760, %v758
    %v763 = vld [vmem:[#allocation2 + $0x179] sm:$0x1]
    %v764 = vperm.slane %v763, 0
    %v765 = vmul.f32 %v761, %v764
    %v766 = vmul.f32 %v762, %v764
    %v767 = vld [vmem:[#allocation2 + $0x17a] sm:$0x1]
    %v768 = vperm.slane %v767, 0
    %v769 = vadd.f32 %v765, %v768
    %v770 = vadd.f32 %v766, %v768
    %v771 = vld [vmem:[#allocation2 + $0x180] sm:$0xff]
    %v772 = vld [vmem:[#allocation2 + $0x188] sm:$0xff]
    %v773 = vld [vmem:[#allocation2 + $0x190] sm:$0xff]
    %v774 = vld [vmem:[#allocation2 + $0x198] sm:$0xff]
    %v775 = vld [vmem:[#allocation2 + $0x1a0] sm:$0x1]
    %v776 = vperm.slane %v775, 0
    %v778 = vsel %vm56, %v769, 0
    %v781 = vsel %vm56, %v770, 0
    %783 = vmatpush.msra.mxu0 0.0
    %784 = vmatpush.msra.mxu0 0.0
    %785 = vmatpush.msra.mxu0 0.0
    %786 = vmatpush.msra.mxu0 0.0
    %787 = vmatpush.msra.mxu0 0.0
    %788 = vmatpush.msra.mxu0 0.0
    %789 = vmatpush.msra.mxu0 0.0
    %790 = vmatpush.msra.mxu0 0.0
    %791 = vmatpush.msra.mxu0 0.0
    %792 = vmatpush.msra.mxu0 0.0
    %793 = vmatpush.msra.mxu0 0.0
    %794 = vmatpush.msra.mxu0 0.0
    %795 = vmatpush.msra.mxu0 %v774
    %796 = vmatpush.msra.mxu0 %v773
    %797 = vmatpush.msra.mxu0 %v772
    %798 = vmatpush.msra.mxu0 %v771
    %799 = vmatmul.f32.gmra.mxu0 %v778
    %v800 = vpop.f32.mrf.mxu0
    %v801 = vadd.f32 %v776, %v800
    %802 = vmatmul.f32.gmra.mxu0 %v781
    %v803 = vpop.f32.mrf.mxu0
    %v804 = vadd.f32 %v776, %v803
    %805 = vdwg.mxu0
    %v806 = vmul.f32 %v801, 0.5
    %v807 = vmul.f32 %v804, 0.5
    %v808 = vmul.f32 %v801, 0.70710677
    %v809 = vmul.f32 %v804, 0.70710677
    %v810 = vmul.f32 %v808, %v808
    %v811 = vmin.f32 16.0, %v810
    %v812 = vmul.f32 %v811, 2.1237322e-06
    %v813 = vadd.f32 %v812, 0.00028619796
    %v814 = vmul.f32 %v811, %v813
    %v815 = vadd.f32 %v814, 0.0036580483
    %v816 = vmul.f32 %v811, %v815
    %v817 = vadd.f32 %v816, 0.05243302
    %v818 = vmul.f32 %v811, %v817
    %v819 = vadd.f32 %v818, 0.18741608
    %v820 = vmul.f32 %v811, %v819
    %v821 = vadd.f32 %v820, 1.1283791
    %v822 = vmul.f32 %v808, %v821
    %v823 = vmul.f32 %v811, 3.8918573e-05
    %v824 = vadd.f32 %v823, 0.001143296
    %v825 = vmul.f32 %v811, %v824
    %v826 = vadd.f32 %v825, 0.014752088
    %v827 = vmul.f32 %v811, %v826
    %v828 = vadd.f32 %v827, 0.112945676
    %v829 = vmul.f32 %v811, %v828
    %v830 = vadd.f32 %v829, 0.4994258
    %v831 = vmul.f32 %v811, %v830
    %v832 = vadd.f32 %v831, 1.0
    %v833 = vrcp.pop %v832
    %v834 = vmul.f32 %v832, %v833
    %v835 = vsub.f32 1.0, %v834
    %v836 = vmul.f32 %v833, %v835
    %v837 = vadd.f32 %v833, %v836
    %vm838 = vweird.f32 %v832
    %vm839 = vweird.f32 %v833
    %vm840 = vmor %vm838, %vm839
    %v841 = vsel %vm840, %v833, %v837
    %v842 = vand.u32 2147483647, %v832
    %vm843 = vcmp.eq.f32.partialorder %v842, 8.507059e+37
    %v844 = vand.u32 %v832, 2147483648
    %v845 = vor.u32 1.1754944e-38, %v844
    %v846 = vsel %vm843, %v845, %v841
    %v847 = vmul.f32 %v822, %v846
    %v848 = vmin.f32 %v847, 1.0
    %v849 = vmax.f32 %v848, -1.0
    %v850 = vmul.f32 %v809, %v809
    %v851 = vmin.f32 16.0, %v850
    %v852 = vmul.f32 %v851, 2.1237322e-06
    %v853 = vadd.f32 %v852, 0.00028619796
    %v854 = vmul.f32 %v851, %v853
    %v855 = vadd.f32 %v854, 0.0036580483
    %v856 = vmul.f32 %v851, %v855
    %v857 = vadd.f32 %v856, 0.05243302
    %v858 = vmul.f32 %v851, %v857
    %v859 = vadd.f32 %v858, 0.18741608
    %v860 = vmul.f32 %v851, %v859
    %v861 = vadd.f32 %v860, 1.1283791
    %v862 = vmul.f32 %v809, %v861
    %v863 = vmul.f32 %v851, 3.8918573e-05
    %v864 = vadd.f32 %v863, 0.001143296
    %v865 = vmul.f32 %v851, %v864
    %v866 = vadd.f32 %v865, 0.014752088
    %v867 = vmul.f32 %v851, %v866
    %v868 = vadd.f32 %v867, 0.112945676
    %v869 = vmul.f32 %v851, %v868
    %v870 = vadd.f32 %v869, 0.4994258
    %v871 = vmul.f32 %v851, %v870
    %v872 = vadd.f32 %v871, 1.0
    %v873 = vrcp.pop %v872
    %v874 = vmul.f32 %v872, %v873
    %v875 = vsub.f32 1.0, %v874
    %v876 = vmul.f32 %v873, %v875
    %v877 = vadd.f32 %v873, %v876
    %vm878 = vweird.f32 %v872
    %vm879 = vweird.f32 %v873
    %vm880 = vmor %vm878, %vm879
    %v881 = vsel %vm880, %v873, %v877
    %v882 = vand.u32 2147483647, %v872
    %vm883 = vcmp.eq.f32.partialorder %v882, 8.507059e+37
    %v884 = vand.u32 %v872, 2147483648
    %v885 = vor.u32 1.1754944e-38, %v884
    %v886 = vsel %vm883, %v885, %v881
    %v887 = vmul.f32 %v862, %v886
    %v888 = vmin.f32 %v887, 1.0
    %v889 = vmax.f32 %v888, -1.0
    %v890 = vadd.f32 %v849, 1.0
    %v891 = vadd.f32 %v889, 1.0
    %v892 = vmul.f32 %v806, %v890
    %v893 = vmul.f32 %v807, %v891
    %v894 = vld [vmem:[#allocation2 + $0x1a8] sm:$0xff]
    %v895 = vld [vmem:[#allocation2 + $0x1b0] sm:$0xff]
    %v896 = vld [vmem:[#allocation2 + $0x1b8] sm:$0xff]
    %v897 = vld [vmem:[#allocation2 + $0x1c0] sm:$0xff]
    %v898 = vld [vmem:[#allocation2 + $0x1c8] sm:$0xff]
    %v899 = vld [vmem:[#allocation2 + $0x1d0] sm:$0xff]
    %v900 = vld [vmem:[#allocation2 + $0x1d8] sm:$0xff]
    %v901 = vld [vmem:[#allocation2 + $0x1e0] sm:$0xff]
    %v902 = vld [vmem:[#allocation2 + $0x1e8] sm:$0x1]
    %v903 = vperm.slane %v902, 0
    %vm904 = vcmask 523264
    %v906 = vsel %vm904, %v892, 0
    %v909 = vsel %vm904, %v893, 0
    %911 = vmatpush.msra.mxu0 0.0
    %912 = vmatpush.msra.mxu0 0.0
    %913 = vmatpush.msra.mxu0 0.0
    %914 = vmatpush.msra.mxu0 0.0
    %915 = vmatpush.msra.mxu0 0.0
    %916 = vmatpush.msra.mxu0 0.0
    %917 = vmatpush.msra.mxu0 0.0
    %918 = vmatpush.msra.mxu0 0.0
    %919 = vmatpush.msra.mxu0 %v901
    %920 = vmatpush.msra.mxu0 %v900
    %921 = vmatpush.msra.mxu0 %v899
    %922 = vmatpush.msra.mxu0 %v898
    %923 = vmatpush.msra.mxu0 %v897
    %924 = vmatpush.msra.mxu0 %v896
    %925 = vmatpush.msra.mxu0 %v895
    %926 = vmatpush.msra.mxu0 %v894
    %927 = vmatmul.f32.gmra.mxu0 %v906
    %v928 = vpop.f32.mrf.mxu0
    %v929 = vadd.f32 %v903, %v928
    %930 = vmatmul.f32.gmra.mxu0 %v909
    %v931 = vpop.f32.mrf.mxu0
    %v932 = vadd.f32 %v903, %v931
    %933 = vdwg.mxu0
    %v934 = vadd.f32 %v769, %v929
    %v935 = vadd.f32 %v770, %v932
    %v936 = vsel %vm56, %v934, 0.0
    %937 = vadd.xlane.f32.xlu0 %v936
    %v938 = vpop.xlane.xlu0 %937
    %v939 = vsel %vm56, %v935, 0.0
    %940 = vadd.xlane.f32.xlu0 %v939
    %v941 = vpop.xlane.xlu0 %940
    %v942 = vmul.f32 %v938, %v249
    %v943 = vmul.f32 %v941, %v249
    %v944 = vmul.f32 %v934, %v934
    %v945 = vmul.f32 %v935, %v935
    %v946 = vsel %vm56, %v944, 0.0
    %947 = vadd.xlane.f32.xlu0 %v946
    %v948 = vpop.xlane.xlu0 %947
    %v949 = vsel %vm56, %v945, 0.0
    %950 = vadd.xlane.f32.xlu0 %v949
    %v951 = vpop.xlane.xlu0 %950
    %v952 = vmul.f32 %v948, %v249
    %v953 = vmul.f32 %v951, %v249
    %v954 = vmul.f32 %v942, %v942
    %v955 = vmul.f32 %v943, %v943
    %v956 = vsub.f32 %v952, %v954
    %v957 = vsub.f32 %v953, %v955
    %v958 = vadd.f32 %v956, 1e-05
    %v959 = vadd.f32 %v957, 1e-05
    %v960 = vrsqrt.pop %v958
    %v961 = vmul.f32 %v960, %v958
    %v962 = vmul.f32 %v961, %v960
    %v963 = vmul.f32 0.5, %v962
    %v964 = vsub.f32 1.5, %v963
    %v965 = vmul.f32 %v960, %v964
    %vm966 = vweird.f32 %v958
    %vm967 = vweird.f32 %v960
    %vm968 = vmor %vm966, %vm967
    %v969 = vsel %vm968, %v960, %v965
    %v970 = vrsqrt.pop %v959
    %v971 = vmul.f32 %v970, %v959
    %v972 = vmul.f32 %v971, %v970
    %v973 = vmul.f32 0.5, %v972
    %v974 = vsub.f32 1.5, %v973
    %v975 = vmul.f32 %v970, %v974
    %vm976 = vweird.f32 %v959
    %vm977 = vweird.f32 %v970
    %vm978 = vmor %vm976, %vm977
    %v979 = vsel %vm978, %v970, %v975
    %v980 = vsub.f32 %v934, %v942
    %v981 = vsub.f32 %v935, %v943
    %v982 = vmul.f32 %v980, %v969
    %v983 = vmul.f32 %v981, %v979
    %v984 = vld [vmem:[#allocation2 + $0x1e9] sm:$0x1]
    %v985 = vperm.slane %v984, 0
    %v986 = vmul.f32 %v982, %v985
    %v987 = vmul.f32 %v983, %v985
    %v988 = vld [vmem:[#allocation2 + $0x1ea] sm:$0x1]
    %v989 = vperm.slane %v988, 0
    %v990 = vadd.f32 %v986, %v989
    %v991 = vadd.f32 %v987, %v989
    %v992 = vld [vmem:[#allocation2 + $0x1f0] sm:$0xff]
    %v993 = vld [vmem:[#allocation2 + $0x1f8] sm:$0xff]
    %v994 = vld [vmem:[#allocation2 + $0x200] sm:$0xff]
    %v995 = vld [vmem:[#allocation2 + $0x208] sm:$0xff]
    %v996 = vld [vmem:[#allocation2 + $0x210] sm:$0x1]
    %v997 = vperm.slane %v996, 0
    %v999 = vsel %vm56, %v990, 0
    %v1002 = vsel %vm56, %v991, 0
    %1004 = vmatpush.msra.mxu0 0.0
    %1005 = vmatpush.msra.mxu0 0.0
    %1006 = vmatpush.msra.mxu0 0.0
    %1007 = vmatpush.msra.mxu0 0.0
    %1008 = vmatpush.msra.mxu0 0.0
    %1009 = vmatpush.msra.mxu0 0.0
    %1010 = vmatpush.msra.mxu0 0.0
    %1011 = vmatpush.msra.mxu0 0.0
    %1012 = vmatpush.msra.mxu0 0.0
    %1013 = vmatpush.msra.mxu0 0.0
    %1014 = vmatpush.msra.mxu0 0.0
    %1015 = vmatpush.msra.mxu0 0.0
    %1016 = vmatpush.msra.mxu0 %v995
    %1017 = vmatpush.msra.mxu0 %v994
    %1018 = vmatpush.msra.mxu0 %v993
    %1019 = vmatpush.msra.mxu0 %v992
    %1020 = vmatmul.f32.gmra.mxu0 %v999
    %v1021 = vpop.f32.mrf.mxu0
    %v1022 = vadd.f32 %v997, %v1021
    %1023 = vmatmul.f32.gmra.mxu0 %v1002
    %v1024 = vpop.f32.mrf.mxu0
    %v1025 = vadd.f32 %v997, %v1024
    %1026 = vdwg.mxu0
    %1029 = vrot.lane.b32.xlu0 %v1022, 96
    %v1030 = vpop.permute.xlu0 %1029
    %1031 = vrot.lane.b32.xlu0 %v1025, 96
    %v1032 = vpop.permute.xlu0 %1031
    %v1033 = vsel %vm306, %v1022, 0
    %v1035 = vsel %vm306, %v1025, 0
    %v1037 = vsel %vm306, %v1030, 0
    %v1039 = vsel %vm306, %v1032, 0
    %1041 = vmatpush.xpose.msra.mxu0 0.0
    %1042 = vmatpush.xpose.msra.mxu0 0.0
    %1043 = vmatpush.xpose.msra.mxu0 0.0
    %1044 = vmatpush.xpose.msra.mxu0 0.0
    %1045 = vmatpush.xpose.msra.mxu0 0.0
    %1046 = vmatpush.xpose.msra.mxu0 0.0
    %1047 = vmatpush.xpose.msra.mxu0 0.0
    %1048 = vmatpush.xpose.msra.mxu0 0.0
    %1049 = vmatpush.xpose.msra.mxu0 0.0
    %1050 = vmatpush.xpose.msra.mxu0 0.0
    %1051 = vmatpush.xpose.msra.mxu0 0.0
    %1052 = vmatpush.xpose.msra.mxu0 0.0
    %1053 = vmatpush.xpose.msra.mxu0 0.0
    %1054 = vmatpush.xpose.msra.mxu0 0.0
    %1055 = vmatpush.xpose.msra.mxu0 %v1039
    %1056 = vmatpush.xpose.msra.mxu0 %v1037
    %1057 = vmatmul.f32.gmra.mxu0 %v1033
    %v1058 = vpop.f32.mrf.mxu0
    %v1059 = vadd.f32 0.0, %v1058
    %1060 = vmatmul.f32.gmra.mxu0 %v1035
    %v1061 = vpop.f32.mrf.mxu0
    %v1062 = vadd.f32 0.0, %v1061
    %1063 = vdwg.mxu0
    %v1064 = vmul.f32 %v1059, 0.25
    %v1065 = vmul.f32 %v1062, 0.25
    %v1066 = vadd.f32 %v1064, %v433
    %v1067 = vadd.f32 %v1065, %v434
    %v1068 = vsel %vm306, %v1066, -inf
    %1069 = vmax.xlane.f32.xlu0 %v1068
    %v1070 = vpop.xlane.xlu0 %1069
    %v1071 = vsel %vm306, %v1067, -inf
    %1072 = vmax.xlane.f32.xlu0 %v1071
    %v1073 = vpop.xlane.xlu0 %1072
    %v1074 = vsub.f32 %v1066, %v1070
    %v1075 = vsub.f32 %v1067, %v1073
    %v1076 = vmul.f32 %v1074, 1.442695
    %v1077 = vpow.pop %v1076
    %v1078 = vmul.f32 %v1075, 1.442695
    %v1079 = vpow.pop %v1078
    %v1080 = vsel %vm306, %v1077, 0.0
    %1081 = vadd.xlane.f32.xlu0 %v1080
    %v1082 = vpop.xlane.xlu0 %1081
    %v1083 = vsel %vm306, %v1079, 0.0
    %1084 = vadd.xlane.f32.xlu0 %v1083
    %v1085 = vpop.xlane.xlu0 %1084
    %v1086 = vrcp.pop %v1082
    %v1087 = vrcp.pop %v1085
    %v1088 = vmul.f32 %v1077, %v1086
    %v1089 = vmul.f32 %v1079, %v1087
    %1090 = vrot.lane.b32.xlu0 %v1022, 64
    %v1091 = vpop.permute.xlu0 %1090
    %1092 = vrot.lane.b32.xlu0 %v1025, 64
    %v1093 = vpop.permute.xlu0 %1092
    %v1097 = vsel %vm306, %v1088, 0
    %v1100 = vsel %vm306, %v1089, 0
    %1102 = vmatpush.msra.mxu0 0.0
    %1103 = vmatpush.msra.mxu0 0.0
    %1104 = vmatpush.msra.mxu0 0.0
    %1105 = vmatpush.msra.mxu0 0.0
    %1106 = vmatpush.msra.mxu0 0.0
    %1107 = vmatpush.msra.mxu0 0.0
    %1108 = vmatpush.msra.mxu0 0.0
    %1109 = vmatpush.msra.mxu0 0.0
    %1110 = vmatpush.msra.mxu0 0.0
    %1111 = vmatpush.msra.mxu0 0.0
    %1112 = vmatpush.msra.mxu0 0.0
    %1113 = vmatpush.msra.mxu0 0.0
    %1114 = vmatpush.msra.mxu0 0.0
    %1115 = vmatpush.msra.mxu0 0.0
    %1116 = vmatpush.msra.mxu0 %v1093
    %1117 = vmatpush.msra.mxu0 %v1091
    %1118 = vmatmul.f32.gmra.mxu0 %v1097
    %v1119 = vpop.f32.mrf.mxu0
    %v1120 = vadd.f32 0.0, %v1119
    %1121 = vmatmul.f32.gmra.mxu0 %v1100
    %v1122 = vpop.f32.mrf.mxu0
    %v1123 = vadd.f32 0.0, %v1122
    %1124 = vdwg.mxu0
    %1125 = vrot.lane.b32.xlu0 %v1022, 112
    %v1126 = vpop.permute.xlu0 %1125
    %1127 = vrot.lane.b32.xlu0 %v1025, 112
    %v1128 = vpop.permute.xlu0 %1127
    %1129 = vrot.lane.b32.xlu0 %v1022, 80
    %v1130 = vpop.permute.xlu0 %1129
    %1131 = vrot.lane.b32.xlu0 %v1025, 80
    %v1132 = vpop.permute.xlu0 %1131
    %v1133 = vsel %vm306, %v1126, 0
    %v1135 = vsel %vm306, %v1128, 0
    %v1137 = vsel %vm306, %v1130, 0
    %v1139 = vsel %vm306, %v1132, 0
    %1141 = vmatpush.xpose.msra.mxu0 0.0
    %1142 = vmatpush.xpose.msra.mxu0 0.0
    %1143 = vmatpush.xpose.msra.mxu0 0.0
    %1144 = vmatpush.xpose.msra.mxu0 0.0
    %1145 = vmatpush.xpose.msra.mxu0 0.0
    %1146 = vmatpush.xpose.msra.mxu0 0.0
    %1147 = vmatpush.xpose.msra.mxu0 0.0
    %1148 = vmatpush.xpose.msra.mxu0 0.0
    %1149 = vmatpush.xpose.msra.mxu0 0.0
    %1150 = vmatpush.xpose.msra.mxu0 0.0
    %1151 = vmatpush.xpose.msra.mxu0 0.0
    %1152 = vmatpush.xpose.msra.mxu0 0.0
    %1153 = vmatpush.xpose.msra.mxu0 0.0
    %1154 = vmatpush.xpose.msra.mxu0 0.0
    %1155 = vmatpush.xpose.msra.mxu0 %v1139
    %1156 = vmatpush.xpose.msra.mxu0 %v1137
    %1157 = vmatmul.f32.gmra.mxu0 %v1133
    %v1158 = vpop.f32.mrf.mxu0
    %v1159 = vadd.f32 0.0, %v1158
    %1160 = vmatmul.f32.gmra.mxu0 %v1135
    %v1161 = vpop.f32.mrf.mxu0
    %v1162 = vadd.f32 0.0, %v1161
    %1163 = vdwg.mxu0
    %v1164 = vmul.f32 %v1159, 0.25
    %v1165 = vmul.f32 %v1162, 0.25
    %v1166 = vadd.f32 %v1164, %v433
    %v1167 = vadd.f32 %v1165, %v434
    %v1168 = vsel %vm306, %v1166, -inf
    %1169 = vmax.xlane.f32.xlu0 %v1168
    %v1170 = vpop.xlane.xlu0 %1169
    %v1171 = vsel %vm306, %v1167, -inf
    %1172 = vmax.xlane.f32.xlu0 %v1171
    %v1173 = vpop.xlane.xlu0 %1172
    %v1174 = vsub.f32 %v1166, %v1170
    %v1175 = vsub.f32 %v1167, %v1173
    %v1176 = vmul.f32 %v1174, 1.442695
    %v1177 = vpow.pop %v1176
    %v1178 = vmul.f32 %v1175, 1.442695
    %v1179 = vpow.pop %v1178
    %v1180 = vsel %vm306, %v1177, 0.0
    %1181 = vadd.xlane.f32.xlu0 %v1180
    %v1182 = vpop.xlane.xlu0 %1181
    %v1183 = vsel %vm306, %v1179, 0.0
    %1184 = vadd.xlane.f32.xlu0 %v1183
    %v1185 = vpop.xlane.xlu0 %1184
    %v1186 = vrcp.pop %v1182
    %v1187 = vrcp.pop %v1185
    %v1188 = vmul.f32 %v1177, %v1186
    %v1189 = vmul.f32 %v1179, %v1187
    %1190 = vrot.lane.b32.xlu0 %v1022, 48
    %v1191 = vpop.permute.xlu0 %1190
    %1192 = vrot.lane.b32.xlu0 %v1025, 48
    %v1193 = vpop.permute.xlu0 %1192
    %v1197 = vsel %vm306, %v1188, 0
    %v1200 = vsel %vm306, %v1189, 0
    %1202 = vmatpush.msra.mxu0 0.0
    %1203 = vmatpush.msra.mxu0 0.0
    %1204 = vmatpush.msra.mxu0 0.0
    %1205 = vmatpush.msra.mxu0 0.0
    %1206 = vmatpush.msra.mxu0 0.0
    %1207 = vmatpush.msra.mxu0 0.0
    %1208 = vmatpush.msra.mxu0 0.0
    %1209 = vmatpush.msra.mxu0 0.0
    %1210 = vmatpush.msra.mxu0 0.0
    %1211 = vmatpush.msra.mxu0 0.0
    %1212 = vmatpush.msra.mxu0 0.0
    %1213 = vmatpush.msra.mxu0 0.0
    %1214 = vmatpush.msra.mxu0 0.0
    %1215 = vmatpush.msra.mxu0 0.0
    %1216 = vmatpush.msra.mxu0 %v1193
    %1217 = vmatpush.msra.mxu0 %v1191
    %1218 = vmatmul.f32.gmra.mxu0 %v1197
    %v1219 = vpop.f32.mrf.mxu0
    %v1220 = vadd.f32 0.0, %v1219
    %1221 = vmatmul.f32.gmra.mxu0 %v1200
    %v1222 = vpop.f32.mrf.mxu0
    %v1223 = vadd.f32 0.0, %v1222
    %1224 = vdwg.mxu0
    %1227 = vrot.lane.b32.xlu0 %v1220, 16
    %v1228 = vpop.permute.xlu0 %1227
    %1229 = vrot.lane.b32.xlu0 %v1223, 16
    %v1230 = vpop.permute.xlu0 %1229
    %v1233 = vsel %vm306, %v1120, %v1228
    %v1234 = vsel %vm306, %v1123, %v1230
    %v1235 = vld [vmem:[#allocation2 + $0x218] sm:$0xff]
    %v1236 = vld [vmem:[#allocation2 + $0x220] sm:$0xff]
    %v1237 = vld [vmem:[#allocation2 + $0x228] sm:$0xff]
    %v1238 = vld [vmem:[#allocation2 + $0x230] sm:$0xff]
    %v1239 = vld [vmem:[#allocation2 + $0x238] sm:$0x1]
    %v1240 = vperm.slane %v1239, 0
    %v1242 = vsel %vm56, %v1233, 0
    %v1245 = vsel %vm56, %v1234, 0
    %1247 = vmatpush.msra.mxu0 0.0
    %1248 = vmatpush.msra.mxu0 0.0
    %1249 = vmatpush.msra.mxu0 0.0
    %1250 = vmatpush.msra.mxu0 0.0
    %1251 = vmatpush.msra.mxu0 0.0
    %1252 = vmatpush.msra.mxu0 0.0
    %1253 = vmatpush.msra.mxu0 0.0
    %1254 = vmatpush.msra.mxu0 0.0
    %1255 = vmatpush.msra.mxu0 0.0
    %1256 = vmatpush.msra.mxu0 0.0
    %1257 = vmatpush.msra.mxu0 0.0
    %1258 = vmatpush.msra.mxu0 0.0
    %1259 = vmatpush.msra.mxu0 %v1238
    %1260 = vmatpush.msra.mxu0 %v1237
    %1261 = vmatpush.msra.mxu0 %v1236
    %1262 = vmatpush.msra.mxu0 %v1235
    %1263 = vmatmul.f32.gmra.mxu0 %v1242
    %v1264 = vpop.f32.mrf.mxu0
    %v1265 = vadd.f32 %v1240, %v1264
    %1266 = vmatmul.f32.gmra.mxu0 %v1245
    %v1267 = vpop.f32.mrf.mxu0
    %v1268 = vadd.f32 %v1240, %v1267
    %1269 = vdwg.mxu0
    %v1270 = vadd.f32 %v990, %v1265
    %v1271 = vadd.f32 %v991, %v1268
    %v1272 = vsel %vm56, %v1270, 0.0
    %1273 = vadd.xlane.f32.xlu0 %v1272
    %v1274 = vpop.xlane.xlu0 %1273
    %v1275 = vsel %vm56, %v1271, 0.0
    %1276 = vadd.xlane.f32.xlu0 %v1275
    %v1277 = vpop.xlane.xlu0 %1276
    %v1278 = vmul.f32 %v1274, %v249
    %v1279 = vmul.f32 %v1277, %v249
    %v1280 = vmul.f32 %v1270, %v1270
    %v1281 = vmul.f32 %v1271, %v1271
    %v1282 = vsel %vm56, %v1280, 0.0
    %1283 = vadd.xlane.f32.xlu0 %v1282
    %v1284 = vpop.xlane.xlu0 %1283
    %v1285 = vsel %vm56, %v1281, 0.0
    %1286 = vadd.xlane.f32.xlu0 %v1285
    %v1287 = vpop.xlane.xlu0 %1286
    %v1288 = vmul.f32 %v1284, %v249
    %v1289 = vmul.f32 %v1287, %v249
    %v1290 = vmul.f32 %v1278, %v1278
    %v1291 = vmul.f32 %v1279, %v1279
    %v1292 = vsub.f32 %v1288, %v1290
    %v1293 = vsub.f32 %v1289, %v1291
    %v1294 = vadd.f32 %v1292, 1e-05
    %v1295 = vadd.f32 %v1293, 1e-05
    %v1296 = vrsqrt.pop %v1294
    %v1297 = vmul.f32 %v1296, %v1294
    %v1298 = vmul.f32 %v1297, %v1296
    %v1299 = vmul.f32 0.5, %v1298
    %v1300 = vsub.f32 1.5, %v1299
    %v1301 = vmul.f32 %v1296, %v1300
    %vm1302 = vweird.f32 %v1294
    %vm1303 = vweird.f32 %v1296
    %vm1304 = vmor %vm1302, %vm1303
    %v1305 = vsel %vm1304, %v1296, %v1301
    %v1306 = vrsqrt.pop %v1295
    %v1307 = vmul.f32 %v1306, %v1295
    %v1308 = vmul.f32 %v1307, %v1306
    %v1309 = vmul.f32 0.5, %v1308
    %v1310 = vsub.f32 1.5, %v1309
    %v1311 = vmul.f32 %v1306, %v1310
    %vm1312 = vweird.f32 %v1295
    %vm1313 = vweird.f32 %v1306
    %vm1314 = vmor %vm1312, %vm1313
    %v1315 = vsel %vm1314, %v1306, %v1311
    %v1316 = vsub.f32 %v1270, %v1278
    %v1317 = vsub.f32 %v1271, %v1279
    %v1318 = vmul.f32 %v1316, %v1305
    %v1319 = vmul.f32 %v1317, %v1315
    %v1320 = vld [vmem:[#allocation2 + $0x239] sm:$0x1]
    %v1321 = vperm.slane %v1320, 0
    %v1322 = vmul.f32 %v1318, %v1321
    %v1323 = vmul.f32 %v1319, %v1321
    %v1324 = vld [vmem:[#allocation2 + $0x23a] sm:$0x1]
    %v1325 = vperm.slane %v1324, 0
    %v1326 = vadd.f32 %v1322, %v1325
    %v1327 = vadd.f32 %v1323, %v1325
    %v1328 = vld [vmem:[#allocation2 + $0x240] sm:$0xff]
    %v1329 = vld [vmem:[#allocation2 + $0x248] sm:$0xff]
    %v1330 = vld [vmem:[#allocation2 + $0x250] sm:$0xff]
    %v1331 = vld [vmem:[#allocation2 + $0x258] sm:$0xff]
    %v1332 = vld [vmem:[#allocation2 + $0x260] sm:$0x1]
    %v1333 = vperm.slane %v1332, 0
    %v1335 = vsel %vm56, %v1326, 0
    %v1338 = vsel %vm56, %v1327, 0
    %1340 = vmatpush.msra.mxu0 0.0
    %1341 = vmatpush.msra.mxu0 0.0
    %1342 = vmatpush.msra.mxu0 0.0
    %1343 = vmatpush.msra.mxu0 0.0
    %1344 = vmatpush.msra.mxu0 0.0
    %1345 = vmatpush.msra.mxu0 0.0
    %1346 = vmatpush.msra.mxu0 0.0
    %1347 = vmatpush.msra.mxu0 0.0
    %1348 = vmatpush.msra.mxu0 0.0
    %1349 = vmatpush.msra.mxu0 0.0
    %1350 = vmatpush.msra.mxu0 0.0
    %1351 = vmatpush.msra.mxu0 0.0
    %1352 = vmatpush.msra.mxu0 %v1331
    %1353 = vmatpush.msra.mxu0 %v1330
    %1354 = vmatpush.msra.mxu0 %v1329
    %1355 = vmatpush.msra.mxu0 %v1328
    %1356 = vmatmul.f32.gmra.mxu0 %v1335
    %v1357 = vpop.f32.mrf.mxu0
    %v1358 = vadd.f32 %v1333, %v1357
    %1359 = vmatmul.f32.gmra.mxu0 %v1338
    %v1360 = vpop.f32.mrf.mxu0
    %v1361 = vadd.f32 %v1333, %v1360
    %1362 = vdwg.mxu0
    %v1363 = vmul.f32 %v1358, 0.5
    %v1364 = vmul.f32 %v1361, 0.5
    %v1365 = vmul.f32 %v1358, 0.70710677
    %v1366 = vmul.f32 %v1361, 0.70710677
    %v1367 = vmul.f32 %v1365, %v1365
    %v1368 = vmin.f32 16.0, %v1367
    %v1369 = vmul.f32 %v1368, 2.1237322e-06
    %v1370 = vadd.f32 %v1369, 0.00028619796
    %v1371 = vmul.f32 %v1368, %v1370
    %v1372 = vadd.f32 %v1371, 0.0036580483
    %v1373 = vmul.f32 %v1368, %v1372
    %v1374 = vadd.f32 %v1373, 0.05243302
    %v1375 = vmul.f32 %v1368, %v1374
    %v1376 = vadd.f32 %v1375, 0.18741608
    %v1377 = vmul.f32 %v1368, %v1376
    %v1378 = vadd.f32 %v1377, 1.1283791
    %v1379 = vmul.f32 %v1365, %v1378
    %v1380 = vmul.f32 %v1368, 3.8918573e-05
    %v1381 = vadd.f32 %v1380, 0.001143296
    %v1382 = vmul.f32 %v1368, %v1381
    %v1383 = vadd.f32 %v1382, 0.014752088
    %v1384 = vmul.f32 %v1368, %v1383
    %v1385 = vadd.f32 %v1384, 0.112945676
    %v1386 = vmul.f32 %v1368, %v1385
    %v1387 = vadd.f32 %v1386, 0.4994258
    %v1388 = vmul.f32 %v1368, %v1387
    %v1389 = vadd.f32 %v1388, 1.0
    %v1390 = vrcp.pop %v1389
    %v1391 = vmul.f32 %v1389, %v1390
    %v1392 = vsub.f32 1.0, %v1391
    %v1393 = vmul.f32 %v1390, %v1392
    %v1394 = vadd.f32 %v1390, %v1393
    %vm1395 = vweird.f32 %v1389
    %vm1396 = vweird.f32 %v1390
    %vm1397 = vmor %vm1395, %vm1396
    %v1398 = vsel %vm1397, %v1390, %v1394
    %v1399 = vand.u32 2147483647, %v1389
    %vm1400 = vcmp.eq.f32.partialorder %v1399, 8.507059e+37
    %v1401 = vand.u32 %v1389, 2147483648
    %v1402 = vor.u32 1.1754944e-38, %v1401
    %v1403 = vsel %vm1400, %v1402, %v1398
    %v1404 = vmul.f32 %v1379, %v1403
    %v1405 = vmin.f32 %v1404, 1.0
    %v1406 = vmax.f32 %v1405, -1.0
    %v1407 = vmul.f32 %v1366, %v1366
    %v1408 = vmin.f32 16.0, %v1407
    %v1409 = vmul.f32 %v1408, 2.1237322e-06
    %v1410 = vadd.f32 %v1409, 0.00028619796
    %v1411 = vmul.f32 %v1408, %v1410
    %v1412 = vadd.f32 %v1411, 0.0036580483
    %v1413 = vmul.f32 %v1408, %v1412
    %v1414 = vadd.f32 %v1413, 0.05243302
    %v1415 = vmul.f32 %v1408, %v1414
    %v1416 = vadd.f32 %v1415, 0.18741608
    %v1417 = vmul.f32 %v1408, %v1416
    %v1418 = vadd.f32 %v1417, 1.1283791
    %v1419 = vmul.f32 %v1366, %v1418
    %v1420 = vmul.f32 %v1408, 3.8918573e-05
    %v1421 = vadd.f32 %v1420, 0.001143296
    %v1422 = vmul.f32 %v1408, %v1421
    %v1423 = vadd.f32 %v1422, 0.014752088
    %v1424 = vmul.f32 %v1408, %v1423
    %v1425 = vadd.f32 %v1424, 0.112945676
    %v1426 = vmul.f32 %v1408, %v1425
    %v1427 = vadd.f32 %v1426, 0.4994258
    %v1428 = vmul.f32 %v1408, %v1427
    %v1429 = vadd.f32 %v1428, 1.0
    %v1430 = vrcp.pop %v1429
    %v1431 = vmul.f32 %v1429, %v1430
    %v1432 = vsub.f32 1.0, %v1431
    %v1433 = vmul.f32 %v1430, %v1432
    %v1434 = vadd.f32 %v1430, %v1433
    %vm1435 = vweird.f32 %v1429
    %vm1436 = vweird.f32 %v1430
    %vm1437 = vmor %vm1435, %vm1436
    %v1438 = vsel %vm1437, %v1430, %v1434
    %v1439 = vand.u32 2147483647, %v1429
    %vm1440 = vcmp.eq.f32.partialorder %v1439, 8.507059e+37
    %v1441 = vand.u32 %v1429, 2147483648
    %v1442 = vor.u32 1.1754944e-38, %v1441
    %v1443 = vsel %vm1440, %v1442, %v1438
    %v1444 = vmul.f32 %v1419, %v1443
    %v1445 = vmin.f32 %v1444, 1.0
    %v1446 = vmax.f32 %v1445, -1.0
    %v1447 = vadd.f32 %v1406, 1.0
    %v1448 = vadd.f32 %v1446, 1.0
    %v1449 = vmul.f32 %v1363, %v1447
    %v1450 = vmul.f32 %v1364, %v1448
    %v1451 = vld [vmem:[#allocation2 + $0x268] sm:$0xff]
    %v1452 = vld [vmem:[#allocation2 + $0x270] sm:$0xff]
    %v1453 = vld [vmem:[#allocation2 + $0x278] sm:$0xff]
    %v1454 = vld [vmem:[#allocation2 + $0x280] sm:$0xff]
    %v1455 = vld [vmem:[#allocation2 + $0x288] sm:$0xff]
    %v1456 = vld [vmem:[#allocation2 + $0x290] sm:$0xff]
    %v1457 = vld [vmem:[#allocation2 + $0x298] sm:$0xff]
    %v1458 = vld [vmem:[#allocation2 + $0x2a0] sm:$0xff]
    %v1459 = vld [vmem:[#allocation2 + $0x2a8] sm:$0x1]
    %v1460 = vperm.slane %v1459, 0
    %v1462 = vsel %vm904, %v1449, 0
    %v1465 = vsel %vm904, %v1450, 0
    %1467 = vmatpush.msra.mxu0 0.0
    %1468 = vmatpush.msra.mxu0 0.0
    %1469 = vmatpush.msra.mxu0 0.0
    %1470 = vmatpush.msra.mxu0 0.0
    %1471 = vmatpush.msra.mxu0 0.0
    %1472 = vmatpush.msra.mxu0 0.0
    %1473 = vmatpush.msra.mxu0 0.0
    %1474 = vmatpush.msra.mxu0 0.0
    %1475 = vmatpush.msra.mxu0 %v1458
    %1476 = vmatpush.msra.mxu0 %v1457
    %1477 = vmatpush.msra.mxu0 %v1456
    %1478 = vmatpush.msra.mxu0 %v1455
    %1479 = vmatpush.msra.mxu0 %v1454
    %1480 = vmatpush.msra.mxu0 %v1453
    %1481 = vmatpush.msra.mxu0 %v1452
    %1482 = vmatpush.msra.mxu0 %v1451
    %1483 = vmatmul.f32.gmra.mxu0 %v1462
    %v1484 = vpop.f32.mrf.mxu0
    %v1485 = vadd.f32 %v1460, %v1484
    %1486 = vmatmul.f32.gmra.mxu0 %v1465
    %v1487 = vpop.f32.mrf.mxu0
    %v1488 = vadd.f32 %v1460, %v1487
    %1489 = vdwg.mxu0
    %v1490 = vadd.f32 %v1326, %v1485
    %v1491 = vadd.f32 %v1327, %v1488
    %v1492 = vsel %vm56, %v1490, 0.0
    %1493 = vadd.xlane.f32.xlu0 %v1492
    %v1494 = vpop.xlane.xlu0 %1493
    %v1495 = vsel %vm56, %v1491, 0.0
    %1496 = vadd.xlane.f32.xlu0 %v1495
    %v1497 = vpop.xlane.xlu0 %1496
    %v1498 = vmul.f32 %v1494, %v249
    %v1499 = vmul.f32 %v1497, %v249
    %v1500 = vmul.f32 %v1490, %v1490
    %v1501 = vmul.f32 %v1491, %v1491
    %v1502 = vsel %vm56, %v1500, 0.0
    %1503 = vadd.xlane.f32.xlu0 %v1502
    %v1504 = vpop.xlane.xlu0 %1503
    %v1505 = vsel %vm56, %v1501, 0.0
    %1506 = vadd.xlane.f32.xlu0 %v1505
    %v1507 = vpop.xlane.xlu0 %1506
    %v1508 = vmul.f32 %v1504, %v249
    %v1509 = vmul.f32 %v1507, %v249
    %v1510 = vmul.f32 %v1498, %v1498
    %v1511 = vmul.f32 %v1499, %v1499
    %v1512 = vsub.f32 %v1508, %v1510
    %v1513 = vsub.f32 %v1509, %v1511
    %v1514 = vadd.f32 %v1512, 1e-05
    %v1515 = vadd.f32 %v1513, 1e-05
    %v1516 = vrsqrt.pop %v1514
    %v1517 = vmul.f32 %v1516, %v1514
    %v1518 = vmul.f32 %v1517, %v1516
    %v1519 = vmul.f32 0.5, %v1518
    %v1520 = vsub.f32 1.5, %v1519
    %v1521 = vmul.f32 %v1516, %v1520
    %vm1522 = vweird.f32 %v1514
    %vm1523 = vweird.f32 %v1516
    %vm1524 = vmor %vm1522, %vm1523
    %v1525 = vsel %vm1524, %v1516, %v1521
    %v1526 = vrsqrt.pop %v1515
    %v1527 = vmul.f32 %v1526, %v1515
    %v1528 = vmul.f32 %v1527, %v1526
    %v1529 = vmul.f32 0.5, %v1528
    %v1530 = vsub.f32 1.5, %v1529
    %v1531 = vmul.f32 %v1526, %v1530
    %vm1532 = vweird.f32 %v1515
    %vm1533 = vweird.f32 %v1526
    %vm1534 = vmor %vm1532, %vm1533
    %v1535 = vsel %vm1534, %v1526, %v1531
    %v1536 = vsub.f32 %v1490, %v1498
    %v1537 = vsub.f32 %v1491, %v1499
    %v1538 = vmul.f32 %v1536, %v1525
    %v1539 = vmul.f32 %v1537, %v1535
    %v1540 = vld [vmem:[#allocation2 + $0x2a9] sm:$0x1]
    %v1541 = vperm.slane %v1540, 0
    %v1542 = vmul.f32 %v1538, %v1541
    %v1543 = vmul.f32 %v1539, %v1541
    %v1544 = vld [vmem:[#allocation2 + $0x2aa] sm:$0x1]
    %v1545 = vperm.slane %v1544, 0
    %v1546 = vadd.f32 %v1542, %v1545
    %v1547 = vadd.f32 %v1543, %v1545
    %v1548 = vld [vmem:[%s5] sm:$0xff]
    %v1549 = vld [vmem:[%s5 + $0x8] sm:$0xff]
    %v1550 = vadd.f32 %v298, %v1548
    %v1551 = vadd.f32 %v299, %v1549
    %v1552 = vsel %vm56, %v1550, 0.0
    %1553 = vadd.xlane.f32.xlu0 %v1552
    %v1554 = vpop.xlane.xlu0 %1553
    %v1555 = vsel %vm56, %v1551, 0.0
    %1556 = vadd.xlane.f32.xlu0 %v1555
    %v1557 = vpop.xlane.xlu0 %1556
    %v1558 = vmul.f32 %v1554, %v249
    %v1559 = vmul.f32 %v1557, %v249
    %v1560 = vmul.f32 %v1550, %v1550
    %v1561 = vmul.f32 %v1551, %v1551
    %v1562 = vsel %vm56, %v1560, 0.0
    %1563 = vadd.xlane.f32.xlu0 %v1562
    %v1564 = vpop.xlane.xlu0 %1563
    %v1565 = vsel %vm56, %v1561, 0.0
    %1566 = vadd.xlane.f32.xlu0 %v1565
    %v1567 = vpop.xlane.xlu0 %1566
    %v1568 = vmul.f32 %v1564, %v249
    %v1569 = vmul.f32 %v1567, %v249
    %v1570 = vmul.f32 %v1558, %v1558
    %v1571 = vmul.f32 %v1559, %v1559
    %v1572 = vsub.f32 %v1568, %v1570
    %v1573 = vsub.f32 %v1569, %v1571
    %v1574 = vadd.f32 %v1572, 1e-05
    %v1575 = vadd.f32 %v1573, 1e-05
    %v1576 = vrsqrt.pop %v1574
    %v1577 = vmul.f32 %v1576, %v1574
    %v1578 = vmul.f32 %v1577, %v1576
    %v1579 = vmul.f32 0.5, %v1578
    %v1580 = vsub.f32 1.5, %v1579
    %v1581 = vmul.f32 %v1576, %v1580
    %vm1582 = vweird.f32 %v1574
    %vm1583 = vweird.f32 %v1576
    %vm1584 = vmor %vm1582, %vm1583
    %v1585 = vsel %vm1584, %v1576, %v1581
    %v1586 = vrsqrt.pop %v1575
    %v1587 = vmul.f32 %v1586, %v1575
    %v1588 = vmul.f32 %v1587, %v1586
    %v1589 = vmul.f32 0.5, %v1588
    %v1590 = vsub.f32 1.5, %v1589
    %v1591 = vmul.f32 %v1586, %v1590
    %vm1592 = vweird.f32 %v1575
    %vm1593 = vweird.f32 %v1586
    %vm1594 = vmor %vm1592, %vm1593
    %v1595 = vsel %vm1594, %v1586, %v1591
    %v1596 = vsub.f32 %v1550, %v1558
    %v1597 = vsub.f32 %v1551, %v1559
    %v1598 = vmul.f32 %v1596, %v1585
    %v1599 = vmul.f32 %v1597, %v1595
    %v1600 = vld [vmem:[#allocation2 + $0x12d] sm:$0x1]
    %v1601 = vperm.slane %v1600, 0
    %v1602 = vmul.f32 %v1598, %v1601
    %v1603 = vmul.f32 %v1599, %v1601
    %v1604 = vld [vmem:[#allocation2 + $0x12e] sm:$0x1]
    %v1605 = vperm.slane %v1604, 0
    %v1606 = vadd.f32 %v1602, %v1605
    %v1607 = vadd.f32 %v1603, %v1605
    %v1608 = vld [vmem:[%s7] sm:$0xff]
    %v1609 = vld [vmem:[%s7 + $0x8] sm:$0xff]
    %v1610 = vld [vmem:[%s8] sm:$0xff]
    %v1611 = vld [vmem:[%s8 + $0x8] sm:$0xff]
    %v1612 = vld [vmem:[#allocation2 + $0x2b0] sm:$0xff]
    %v1613 = vld [vmem:[#allocation2 + $0x2b8] sm:$0xff]
    %v1614 = vld [vmem:[#allocation2 + $0x2c0] sm:$0xff]
    %v1615 = vld [vmem:[#allocation2 + $0x2c8] sm:$0xff]
    %v1616 = vld [vmem:[#allocation2 + $0x2d0] sm:$0x1]
    %v1617 = vperm.slane %v1616, 0
    %v1619 = vsel %vm56, %v1606, 0
    %v1622 = vsel %vm56, %v1607, 0
    %1624 = vmatpush.msra.mxu0 0.0
    %1625 = vmatpush.msra.mxu0 0.0
    %1626 = vmatpush.msra.mxu0 0.0
    %1627 = vmatpush.msra.mxu0 0.0
    %1628 = vmatpush.msra.mxu0 0.0
    %1629 = vmatpush.msra.mxu0 0.0
    %1630 = vmatpush.msra.mxu0 0.0
    %1631 = vmatpush.msra.mxu0 0.0
    %1632 = vmatpush.msra.mxu0 0.0
    %1633 = vmatpush.msra.mxu0 0.0
    %1634 = vmatpush.msra.mxu0 0.0
    %1635 = vmatpush.msra.mxu0 0.0
    %1636 = vmatpush.msra.mxu0 %v1615
    %1637 = vmatpush.msra.mxu0 %v1614
    %1638 = vmatpush.msra.mxu0 %v1613
    %1639 = vmatpush.msra.mxu0 %v1612
    %1640 = vmatmul.f32.gmra.mxu0 %v1619
    %v1641 = vpop.f32.mrf.mxu0
    %v1642 = vadd.f32 %v1617, %v1641
    %1643 = vmatmul.f32.gmra.mxu0 %v1622
    %v1644 = vpop.f32.mrf.mxu0
    %v1645 = vadd.f32 %v1617, %v1644
    %1646 = vdwg.mxu0
    %1649 = vrot.lane.b32.xlu0 %v1642, 96
    %v1650 = vpop.permute.xlu0 %1649
    %1651 = vrot.lane.b32.xlu0 %v1645, 96
    %v1652 = vpop.permute.xlu0 %1651
    %v1653 = vsel %vm306, %v1642, 0
    %v1655 = vsel %vm306, %v1645, 0
    %v1657 = vsel %vm306, %v1650, 0
    %v1659 = vsel %vm306, %v1652, 0
    %1661 = vmatpush.xpose.msra.mxu0 0.0
    %1662 = vmatpush.xpose.msra.mxu0 0.0
    %1663 = vmatpush.xpose.msra.mxu0 0.0
    %1664 = vmatpush.xpose.msra.mxu0 0.0
    %1665 = vmatpush.xpose.msra.mxu0 0.0
    %1666 = vmatpush.xpose.msra.mxu0 0.0
    %1667 = vmatpush.xpose.msra.mxu0 0.0
    %1668 = vmatpush.xpose.msra.mxu0 0.0
    %1669 = vmatpush.xpose.msra.mxu0 0.0
    %1670 = vmatpush.xpose.msra.mxu0 0.0
    %1671 = vmatpush.xpose.msra.mxu0 0.0
    %1672 = vmatpush.xpose.msra.mxu0 0.0
    %1673 = vmatpush.xpose.msra.mxu0 0.0
    %1674 = vmatpush.xpose.msra.mxu0 0.0
    %1675 = vmatpush.xpose.msra.mxu0 %v1659
    %1676 = vmatpush.xpose.msra.mxu0 %v1657
    %1677 = vmatmul.f32.gmra.mxu0 %v1653
    %v1678 = vpop.f32.mrf.mxu0
    %v1679 = vadd.f32 0.0, %v1678
    %1680 = vmatmul.f32.gmra.mxu0 %v1655
    %v1681 = vpop.f32.mrf.mxu0
    %v1682 = vadd.f32 0.0, %v1681
    %1683 = vdwg.mxu0
    %v1684 = vmul.f32 %v1679, 0.25
    %v1685 = vmul.f32 %v1682, 0.25
    %v1686 = vadd.f32 %v1684, %v1608
    %v1687 = vadd.f32 %v1685, %v1609
    %v1688 = vsel %vm306, %v1686, -inf
    %1689 = vmax.xlane.f32.xlu0 %v1688
    %v1690 = vpop.xlane.xlu0 %1689
    %v1691 = vsel %vm306, %v1687, -inf
    %1692 = vmax.xlane.f32.xlu0 %v1691
    %v1693 = vpop.xlane.xlu0 %1692
    %v1694 = vsub.f32 %v1686, %v1690
    %v1695 = vsub.f32 %v1687, %v1693
    %v1696 = vmul.f32 %v1694, 1.442695
    %v1697 = vpow.pop %v1696
    %v1698 = vmul.f32 %v1695, 1.442695
    %v1699 = vpow.pop %v1698
    %v1700 = vsel %vm306, %v1697, 0.0
    %1701 = vadd.xlane.f32.xlu0 %v1700
    %v1702 = vpop.xlane.xlu0 %1701
    %v1703 = vsel %vm306, %v1699, 0.0
    %1704 = vadd.xlane.f32.xlu0 %v1703
    %v1705 = vpop.xlane.xlu0 %1704
    %v1706 = vrcp.pop %v1702
    %v1707 = vrcp.pop %v1705
    %v1708 = vmul.f32 %v1697, %v1706
    %v1709 = vmul.f32 %v1699, %v1707
    %1710 = vrot.lane.b32.xlu0 %v1642, 64
    %v1711 = vpop.permute.xlu0 %1710
    %1712 = vrot.lane.b32.xlu0 %v1645, 64
    %v1713 = vpop.permute.xlu0 %1712
    %v1717 = vsel %vm306, %v1708, 0
    %v1720 = vsel %vm306, %v1709, 0
    %1722 = vmatpush.msra.mxu0 0.0
    %1723 = vmatpush.msra.mxu0 0.0
    %1724 = vmatpush.msra.mxu0 0.0
    %1725 = vmatpush.msra.mxu0 0.0
    %1726 = vmatpush.msra.mxu0 0.0
    %1727 = vmatpush.msra.mxu0 0.0
    %1728 = vmatpush.msra.mxu0 0.0
    %1729 = vmatpush.msra.mxu0 0.0
    %1730 = vmatpush.msra.mxu0 0.0
    %1731 = vmatpush.msra.mxu0 0.0
    %1732 = vmatpush.msra.mxu0 0.0
    %1733 = vmatpush.msra.mxu0 0.0
    %1734 = vmatpush.msra.mxu0 0.0
    %1735 = vmatpush.msra.mxu0 0.0
    %1736 = vmatpush.msra.mxu0 %v1713
    %1737 = vmatpush.msra.mxu0 %v1711
    %1738 = vmatmul.f32.gmra.mxu0 %v1717
    %v1739 = vpop.f32.mrf.mxu0
    %v1740 = vadd.f32 0.0, %v1739
    %1741 = vmatmul.f32.gmra.mxu0 %v1720
    %v1742 = vpop.f32.mrf.mxu0
    %v1743 = vadd.f32 0.0, %v1742
    %1744 = vdwg.mxu0
    %1745 = vrot.lane.b32.xlu0 %v1642, 112
    %v1746 = vpop.permute.xlu0 %1745
    %1747 = vrot.lane.b32.xlu0 %v1645, 112
    %v1748 = vpop.permute.xlu0 %1747
    %1749 = vrot.lane.b32.xlu0 %v1642, 80
    %v1750 = vpop.permute.xlu0 %1749
    %1751 = vrot.lane.b32.xlu0 %v1645, 80
    %v1752 = vpop.permute.xlu0 %1751
    %v1753 = vsel %vm306, %v1746, 0
    %v1755 = vsel %vm306, %v1748, 0
    %v1757 = vsel %vm306, %v1750, 0
    %v1759 = vsel %vm306, %v1752, 0
    %1761 = vmatpush.xpose.msra.mxu0 0.0
    %1762 = vmatpush.xpose.msra.mxu0 0.0
    %1763 = vmatpush.xpose.msra.mxu0 0.0
    %1764 = vmatpush.xpose.msra.mxu0 0.0
    %1765 = vmatpush.xpose.msra.mxu0 0.0
    %1766 = vmatpush.xpose.msra.mxu0 0.0
    %1767 = vmatpush.xpose.msra.mxu0 0.0
    %1768 = vmatpush.xpose.msra.mxu0 0.0
    %1769 = vmatpush.xpose.msra.mxu0 0.0
    %1770 = vmatpush.xpose.msra.mxu0 0.0
    %1771 = vmatpush.xpose.msra.mxu0 0.0
    %1772 = vmatpush.xpose.msra.mxu0 0.0
    %1773 = vmatpush.xpose.msra.mxu0 0.0
    %1774 = vmatpush.xpose.msra.mxu0 0.0
    %1775 = vmatpush.xpose.msra.mxu0 %v1759
    %1776 = vmatpush.xpose.msra.mxu0 %v1757
    %1777 = vmatmul.f32.gmra.mxu0 %v1753
    %v1778 = vpop.f32.mrf.mxu0
    %v1779 = vadd.f32 0.0, %v1778
    %1780 = vmatmul.f32.gmra.mxu0 %v1755
    %v1781 = vpop.f32.mrf.mxu0
    %v1782 = vadd.f32 0.0, %v1781
    %1783 = vdwg.mxu0
    %v1784 = vmul.f32 %v1779, 0.25
    %v1785 = vmul.f32 %v1782, 0.25
    %v1786 = vadd.f32 %v1784, %v1608
    %v1787 = vadd.f32 %v1785, %v1609
    %v1788 = vsel %vm306, %v1786, -inf
    %1789 = vmax.xlane.f32.xlu0 %v1788
    %v1790 = vpop.xlane.xlu0 %1789
    %v1791 = vsel %vm306, %v1787, -inf
    %1792 = vmax.xlane.f32.xlu0 %v1791
    %v1793 = vpop.xlane.xlu0 %1792
    %v1794 = vsub.f32 %v1786, %v1790
    %v1795 = vsub.f32 %v1787, %v1793
    %v1796 = vmul.f32 %v1794, 1.442695
    %v1797 = vpow.pop %v1796
    %v1798 = vmul.f32 %v1795, 1.442695
    %v1799 = vpow.pop %v1798
    %v1800 = vsel %vm306, %v1797, 0.0
    %1801 = vadd.xlane.f32.xlu0 %v1800
    %v1802 = vpop.xlane.xlu0 %1801
    %v1803 = vsel %vm306, %v1799, 0.0
    %1804 = vadd.xlane.f32.xlu0 %v1803
    %v1805 = vpop.xlane.xlu0 %1804
    %v1806 = vrcp.pop %v1802
    %v1807 = vrcp.pop %v1805
    %v1808 = vmul.f32 %v1797, %v1806
    %v1809 = vmul.f32 %v1799, %v1807
    %1810 = vrot.lane.b32.xlu0 %v1642, 48
    %v1811 = vpop.permute.xlu0 %1810
    %1812 = vrot.lane.b32.xlu0 %v1645, 48
    %v1813 = vpop.permute.xlu0 %1812
    %v1817 = vsel %vm306, %v1808, 0
    %v1820 = vsel %vm306, %v1809, 0
    %1822 = vmatpush.msra.mxu0 0.0
    %1823 = vmatpush.msra.mxu0 0.0
    %1824 = vmatpush.msra.mxu0 0.0
    %1825 = vmatpush.msra.mxu0 0.0
    %1826 = vmatpush.msra.mxu0 0.0
    %1827 = vmatpush.msra.mxu0 0.0
    %1828 = vmatpush.msra.mxu0 0.0
    %1829 = vmatpush.msra.mxu0 0.0
    %1830 = vmatpush.msra.mxu0 0.0
    %1831 = vmatpush.msra.mxu0 0.0
    %1832 = vmatpush.msra.mxu0 0.0
    %1833 = vmatpush.msra.mxu0 0.0
    %1834 = vmatpush.msra.mxu0 0.0
    %1835 = vmatpush.msra.mxu0 0.0
    %1836 = vmatpush.msra.mxu0 %v1813
    %1837 = vmatpush.msra.mxu0 %v1811
    %1838 = vmatmul.f32.gmra.mxu0 %v1817
    %v1839 = vpop.f32.mrf.mxu0
    %v1840 = vadd.f32 0.0, %v1839
    %1841 = vmatmul.f32.gmra.mxu0 %v1820
    %v1842 = vpop.f32.mrf.mxu0
    %v1843 = vadd.f32 0.0, %v1842
    %1844 = vdwg.mxu0
    %1847 = vrot.lane.b32.xlu0 %v1840, 16
    %v1848 = vpop.permute.xlu0 %1847
    %1849 = vrot.lane.b32.xlu0 %v1843, 16
    %v1850 = vpop.permute.xlu0 %1849
    %v1853 = vsel %vm306, %v1740, %v1848
    %v1854 = vsel %vm306, %v1743, %v1850
    %v1855 = vld [vmem:[#allocation2 + $0x2d8] sm:$0xff]
    %v1856 = vld [vmem:[#allocation2 + $0x2e0] sm:$0xff]
    %v1857 = vld [vmem:[#allocation2 + $0x2e8] sm:$0xff]
    %v1858 = vld [vmem:[#allocation2 + $0x2f0] sm:$0xff]
    %v1859 = vld [vmem:[#allocation2 + $0x2f8] sm:$0x1]
    %v1860 = vperm.slane %v1859, 0
    %v1862 = vsel %vm56, %v1853, 0
    %v1865 = vsel %vm56, %v1854, 0
    %1867 = vmatpush.msra.mxu0 0.0
    %1868 = vmatpush.msra.mxu0 0.0
    %1869 = vmatpush.msra.mxu0 0.0
    %1870 = vmatpush.msra.mxu0 0.0
    %1871 = vmatpush.msra.mxu0 0.0
    %1872 = vmatpush.msra.mxu0 0.0
    %1873 = vmatpush.msra.mxu0 0.0
    %1874 = vmatpush.msra.mxu0 0.0
    %1875 = vmatpush.msra.mxu0 0.0
    %1876 = vmatpush.msra.mxu0 0.0
    %1877 = vmatpush.msra.mxu0 0.0
    %1878 = vmatpush.msra.mxu0 0.0
    %1879 = vmatpush.msra.mxu0 %v1858
    %1880 = vmatpush.msra.mxu0 %v1857
    %1881 = vmatpush.msra.mxu0 %v1856
    %1882 = vmatpush.msra.mxu0 %v1855
    %1883 = vmatmul.f32.gmra.mxu0 %v1862
    %v1884 = vpop.f32.mrf.mxu0
    %v1885 = vadd.f32 %v1860, %v1884
    %1886 = vmatmul.f32.gmra.mxu0 %v1865
    %v1887 = vpop.f32.mrf.mxu0
    %v1888 = vadd.f32 %v1860, %v1887
    %1889 = vdwg.mxu0
    %v1890 = vadd.f32 %v1606, %v1885
    %v1891 = vadd.f32 %v1607, %v1888
    %v1892 = vsel %vm56, %v1890, 0.0
    %1893 = vadd.xlane.f32.xlu0 %v1892
    %v1894 = vpop.xlane.xlu0 %1893
    %v1895 = vsel %vm56, %v1891, 0.0
    %1896 = vadd.xlane.f32.xlu0 %v1895
    %v1897 = vpop.xlane.xlu0 %1896
    %v1898 = vmul.f32 %v1894, %v249
    %v1899 = vmul.f32 %v1897, %v249
    %v1900 = vmul.f32 %v1890, %v1890
    %v1901 = vmul.f32 %v1891, %v1891
    %v1902 = vsel %vm56, %v1900, 0.0
    %1903 = vadd.xlane.f32.xlu0 %v1902
    %v1904 = vpop.xlane.xlu0 %1903
    %v1905 = vsel %vm56, %v1901, 0.0
    %1906 = vadd.xlane.f32.xlu0 %v1905
    %v1907 = vpop.xlane.xlu0 %1906
    %v1908 = vmul.f32 %v1904, %v249
    %v1909 = vmul.f32 %v1907, %v249
    %v1910 = vmul.f32 %v1898, %v1898
    %v1911 = vmul.f32 %v1899, %v1899
    %v1912 = vsub.f32 %v1908, %v1910
    %v1913 = vsub.f32 %v1909, %v1911
    %v1914 = vadd.f32 %v1912, 1e-05
    %v1915 = vadd.f32 %v1913, 1e-05
    %v1916 = vrsqrt.pop %v1914
    %v1917 = vmul.f32 %v1916, %v1914
    %v1918 = vmul.f32 %v1917, %v1916
    %v1919 = vmul.f32 0.5, %v1918
    %v1920 = vsub.f32 1.5, %v1919
    %v1921 = vmul.f32 %v1916, %v1920
    %vm1922 = vweird.f32 %v1914
    %vm1923 = vweird.f32 %v1916
    %vm1924 = vmor %vm1922, %vm1923
    %v1925 = vsel %vm1924, %v1916, %v1921
    %v1926 = vrsqrt.pop %v1915
    %v1927 = vmul.f32 %v1926, %v1915
    %v1928 = vmul.f32 %v1927, %v1926
    %v1929 = vmul.f32 0.5, %v1928
    %v1930 = vsub.f32 1.5, %v1929
    %v1931 = vmul.f32 %v1926, %v1930
    %vm1932 = vweird.f32 %v1915
    %vm1933 = vweird.f32 %v1926
    %vm1934 = vmor %vm1932, %vm1933
    %v1935 = vsel %vm1934, %v1926, %v1931
    %v1936 = vsub.f32 %v1890, %v1898
    %v1937 = vsub.f32 %v1891, %v1899
    %v1938 = vmul.f32 %v1936, %v1925
    %v1939 = vmul.f32 %v1937, %v1935
    %v1940 = vld [vmem:[#allocation2 + $0x2f9] sm:$0x1]
    %v1941 = vperm.slane %v1940, 0
    %v1942 = vmul.f32 %v1938, %v1941
    %v1943 = vmul.f32 %v1939, %v1941
    %v1944 = vld [vmem:[#allocation2 + $0x2fa] sm:$0x1]
    %v1945 = vperm.slane %v1944, 0
    %v1946 = vadd.f32 %v1942, %v1945
    %v1947 = vadd.f32 %v1943, %v1945
    %v1948 = vld [vmem:[#allocation2 + $0x300] sm:$0xff]
    %v1949 = vld [vmem:[#allocation2 + $0x308] sm:$0xff]
    %v1950 = vld [vmem:[#allocation2 + $0x310] sm:$0xff]
    %v1951 = vld [vmem:[#allocation2 + $0x318] sm:$0xff]
    %v1952 = vld [vmem:[#allocation2 + $0x320] sm:$0x1]
    %v1953 = vperm.slane %v1952, 0
    %v1955 = vsel %vm56, %v1946, 0
    %v1958 = vsel %vm56, %v1947, 0
    %1960 = vmatpush.msra.mxu0 0.0
    %1961 = vmatpush.msra.mxu0 0.0
    %1962 = vmatpush.msra.mxu0 0.0
    %1963 = vmatpush.msra.mxu0 0.0
    %1964 = vmatpush.msra.mxu0 0.0
    %1965 = vmatpush.msra.mxu0 0.0
    %1966 = vmatpush.msra.mxu0 0.0
    %1967 = vmatpush.msra.mxu0 0.0
    %1968 = vmatpush.msra.mxu0 0.0
    %1969 = vmatpush.msra.mxu0 0.0
    %1970 = vmatpush.msra.mxu0 0.0
    %1971 = vmatpush.msra.mxu0 0.0
    %1972 = vmatpush.msra.mxu0 %v1951
    %1973 = vmatpush.msra.mxu0 %v1950
    %1974 = vmatpush.msra.mxu0 %v1949
    %1975 = vmatpush.msra.mxu0 %v1948
    %1976 = vmatmul.f32.gmra.mxu0 %v1955
    %v1977 = vpop.f32.mrf.mxu0
    %v1978 = vadd.f32 %v1953, %v1977
    %1979 = vmatmul.f32.gmra.mxu0 %v1958
    %v1980 = vpop.f32.mrf.mxu0
    %v1981 = vadd.f32 %v1953, %v1980
    %1982 = vdwg.mxu0
    %v1983 = vld [vmem:[#allocation2 + $0x328] sm:$0xff]
    %v1984 = vld [vmem:[#allocation2 + $0x330] sm:$0xff]
    %v1985 = vld [vmem:[#allocation2 + $0x338] sm:$0xff]
    %v1986 = vld [vmem:[#allocation2 + $0x340] sm:$0xff]
    %v1987 = vld [vmem:[#allocation2 + $0x348] sm:$0x1]
    %v1988 = vperm.slane %v1987, 0
    %v1990 = vsel %vm56, %v1546, 0
    %v1993 = vsel %vm56, %v1547, 0
    %1995 = vmatpush.msra.mxu0 0.0
    %1996 = vmatpush.msra.mxu0 0.0
    %1997 = vmatpush.msra.mxu0 0.0
    %1998 = vmatpush.msra.mxu0 0.0
    %1999 = vmatpush.msra.mxu0 0.0
    %2000 = vmatpush.msra.mxu0 0.0
    %2001 = vmatpush.msra.mxu0 0.0
    %2002 = vmatpush.msra.mxu0 0.0
    %2003 = vmatpush.msra.mxu0 0.0
    %2004 = vmatpush.msra.mxu0 0.0
    %2005 = vmatpush.msra.mxu0 0.0
    %2006 = vmatpush.msra.mxu0 0.0
    %2007 = vmatpush.msra.mxu0 %v1986
    %2008 = vmatpush.msra.mxu0 %v1985
    %2009 = vmatpush.msra.mxu0 %v1984
    %2010 = vmatpush.msra.mxu0 %v1983
    %2011 = vmatmul.f32.gmra.mxu0 %v1990
    %v2012 = vpop.f32.mrf.mxu0
    %v2013 = vadd.f32 %v1988, %v2012
    %2014 = vmatmul.f32.gmra.mxu0 %v1993
    %v2015 = vpop.f32.mrf.mxu0
    %v2016 = vadd.f32 %v1988, %v2015
    %2017 = vdwg.mxu0
    %v2019 = vsel %vm306, %v1978, 0
    %v2022 = vsel %vm306, %v1981, 0
    %v2025 = vsel %vm306, %v2013, 0
    %v2028 = vsel %vm306, %v2016, 0
    %2030 = vmatpush.xpose.msra.mxu0 0.0
    %2031 = vmatpush.xpose.msra.mxu0 0.0
    %2032 = vmatpush.xpose.msra.mxu0 0.0
    %2033 = vmatpush.xpose.msra.mxu0 0.0
    %2034 = vmatpush.xpose.msra.mxu0 0.0
    %2035 = vmatpush.xpose.msra.mxu0 0.0
    %2036 = vmatpush.xpose.msra.mxu0 0.0
    %2037 = vmatpush.xpose.msra.mxu0 0.0
    %2038 = vmatpush.xpose.msra.mxu0 0.0
    %2039 = vmatpush.xpose.msra.mxu0 0.0
    %2040 = vmatpush.xpose.msra.mxu0 0.0
    %2041 = vmatpush.xpose.msra.mxu0 0.0
    %2042 = vmatpush.xpose.msra.mxu0 0.0
    %2043 = vmatpush.xpose.msra.mxu0 0.0
    %2044 = vmatpush.xpose.msra.mxu0 %v2028
    %2045 = vmatpush.xpose.msra.mxu0 %v2025
    %2046 = vmatmul.f32.gmra.mxu0 %v2019
    %v2047 = vpop.f32.mrf.mxu0
    %v2048 = vadd.f32 0.0, %v2047
    %2049 = vmatmul.f32.gmra.mxu0 %v2022
    %v2050 = vpop.f32.mrf.mxu0
    %v2051 = vadd.f32 0.0, %v2050
    %2052 = vdwg.mxu0
    %v2053 = vmul.f32 %v2048, 0.25
    %v2054 = vmul.f32 %v2051, 0.25
    %v2055 = vadd.f32 %v2053, %v1610
    %v2056 = vadd.f32 %v2054, %v1611
    %v2057 = vsel %vm306, %v2055, -inf
    %2058 = vmax.xlane.f32.xlu0 %v2057
    %v2059 = vpop.xlane.xlu0 %2058
    %v2060 = vsel %vm306, %v2056, -inf
    %2061 = vmax.xlane.f32.xlu0 %v2060
    %v2062 = vpop.xlane.xlu0 %2061
    %v2063 = vsub.f32 %v2055, %v2059
    %v2064 = vsub.f32 %v2056, %v2062
    %v2065 = vmul.f32 %v2063, 1.442695
    %v2066 = vpow.pop %v2065
    %v2067 = vmul.f32 %v2064, 1.442695
    %v2068 = vpow.pop %v2067
    %v2069 = vsel %vm306, %v2066, 0.0
    %2070 = vadd.xlane.f32.xlu0 %v2069
    %v2071 = vpop.xlane.xlu0 %2070
    %v2072 = vsel %vm306, %v2068, 0.0
    %2073 = vadd.xlane.f32.xlu0 %v2072
    %v2074 = vpop.xlane.xlu0 %2073
    %v2075 = vrcp.pop %v2071
    %v2076 = vrcp.pop %v2074
    %v2077 = vmul.f32 %v2066, %v2075
    %v2078 = vmul.f32 %v2068, %v2076
    %2079 = vrot.lane.b32.xlu0 %v2013, 96
    %v2080 = vpop.permute.xlu0 %2079
    %2081 = vrot.lane.b32.xlu0 %v2016, 96
    %v2082 = vpop.permute.xlu0 %2081
    %v2086 = vsel %vm306, %v2077, 0
    %v2089 = vsel %vm306, %v2078, 0
    %2091 = vmatpush.msra.mxu0 0.0
    %2092 = vmatpush.msra.mxu0 0.0
    %2093 = vmatpush.msra.mxu0 0.0
    %2094 = vmatpush.msra.mxu0 0.0
    %2095 = vmatpush.msra.mxu0 0.0
    %2096 = vmatpush.msra.mxu0 0.0
    %2097 = vmatpush.msra.mxu0 0.0
    %2098 = vmatpush.msra.mxu0 0.0
    %2099 = vmatpush.msra.mxu0 0.0
    %2100 = vmatpush.msra.mxu0 0.0
    %2101 = vmatpush.msra.mxu0 0.0
    %2102 = vmatpush.msra.mxu0 0.0
    %2103 = vmatpush.msra.mxu0 0.0
    %2104 = vmatpush.msra.mxu0 0.0
    %2105 = vmatpush.msra.mxu0 %v2082
    %2106 = vmatpush.msra.mxu0 %v2080
    %2107 = vmatmul.f32.gmra.mxu0 %v2086
    %v2108 = vpop.f32.mrf.mxu0
    %v2109 = vadd.f32 0.0, %v2108
    %2110 = vmatmul.f32.gmra.mxu0 %v2089
    %v2111 = vpop.f32.mrf.mxu0
    %v2112 = vadd.f32 0.0, %v2111
    %2113 = vdwg.mxu0
    %2114 = vrot.lane.b32.xlu0 %v1978, 112
    %v2115 = vpop.permute.xlu0 %2114
    %2116 = vrot.lane.b32.xlu0 %v1981, 112
    %v2117 = vpop.permute.xlu0 %2116
    %2118 = vrot.lane.b32.xlu0 %v2013, 112
    %v2119 = vpop.permute.xlu0 %2118
    %2120 = vrot.lane.b32.xlu0 %v2016, 112
    %v2121 = vpop.permute.xlu0 %2120
    %v2122 = vsel %vm306, %v2115, 0
    %v2124 = vsel %vm306, %v2117, 0
    %v2126 = vsel %vm306, %v2119, 0
    %v2128 = vsel %vm306, %v2121, 0
    %2130 = vmatpush.xpose.msra.mxu0 0.0
    %2131 = vmatpush.xpose.msra.mxu0 0.0
    %2132 = vmatpush.xpose.msra.mxu0 0.0
    %2133 = vmatpush.xpose.msra.mxu0 0.0
    %2134 = vmatpush.xpose.msra.mxu0 0.0
    %2135 = vmatpush.xpose.msra.mxu0 0.0
    %2136 = vmatpush.xpose.msra.mxu0 0.0
    %2137 = vmatpush.xpose.msra.mxu0 0.0
    %2138 = vmatpush.xpose.msra.mxu0 0.0
    %2139 = vmatpush.xpose.msra.mxu0 0.0
    %2140 = vmatpush.xpose.msra.mxu0 0.0
    %2141 = vmatpush.xpose.msra.mxu0 0.0
    %2142 = vmatpush.xpose.msra.mxu0 0.0
    %2143 = vmatpush.xpose.msra.mxu0 0.0
    %2144 = vmatpush.xpose.msra.mxu0 %v2128
    %2145 = vmatpush.xpose.msra.mxu0 %v2126
    %2146 = vmatmul.f32.gmra.mxu0 %v2122
    %v2147 = vpop.f32.mrf.mxu0
    %v2148 = vadd.f32 0.0, %v2147
    %2149 = vmatmul.f32.gmra.mxu0 %v2124
    %v2150 = vpop.f32.mrf.mxu0
    %v2151 = vadd.f32 0.0, %v2150
    %2152 = vdwg.mxu0
    %v2153 = vmul.f32 %v2148, 0.25
    %v2154 = vmul.f32 %v2151, 0.25
    %v2155 = vadd.f32 %v2153, %v1610
    %v2156 = vadd.f32 %v2154, %v1611
    %v2157 = vsel %vm306, %v2155, -inf
    %2158 = vmax.xlane.f32.xlu0 %v2157
    %v2159 = vpop.xlane.xlu0 %2158
    %v2160 = vsel %vm306, %v2156, -inf
    %2161 = vmax.xlane.f32.xlu0 %v2160
    %v2162 = vpop.xlane.xlu0 %2161
    %v2163 = vsub.f32 %v2155, %v2159
    %v2164 = vsub.f32 %v2156, %v2162
    %v2165 = vmul.f32 %v2163, 1.442695
    %v2166 = vpow.pop %v2165
    %v2167 = vmul.f32 %v2164, 1.442695
    %v2168 = vpow.pop %v2167
    %v2169 = vsel %vm306, %v2166, 0.0
    %2170 = vadd.xlane.f32.xlu0 %v2169
    %v2171 = vpop.xlane.xlu0 %2170
    %v2172 = vsel %vm306, %v2168, 0.0
    %2173 = vadd.xlane.f32.xlu0 %v2172
    %v2174 = vpop.xlane.xlu0 %2173
    %v2175 = vrcp.pop %v2171
    %v2176 = vrcp.pop %v2174
    %v2177 = vmul.f32 %v2166, %v2175
    %v2178 = vmul.f32 %v2168, %v2176
    %2179 = vrot.lane.b32.xlu0 %v2013, 80
    %v2180 = vpop.permute.xlu0 %2179
    %2181 = vrot.lane.b32.xlu0 %v2016, 80
    %v2182 = vpop.permute.xlu0 %2181
    %v2186 = vsel %vm306, %v2177, 0
    %v2189 = vsel %vm306, %v2178, 0
    %2191 = vmatpush.msra.mxu0 0.0
    %2192 = vmatpush.msra.mxu0 0.0
    %2193 = vmatpush.msra.mxu0 0.0
    %2194 = vmatpush.msra.mxu0 0.0
    %2195 = vmatpush.msra.mxu0 0.0
    %2196 = vmatpush.msra.mxu0 0.0
    %2197 = vmatpush.msra.mxu0 0.0
    %2198 = vmatpush.msra.mxu0 0.0
    %2199 = vmatpush.msra.mxu0 0.0
    %2200 = vmatpush.msra.mxu0 0.0
    %2201 = vmatpush.msra.mxu0 0.0
    %2202 = vmatpush.msra.mxu0 0.0
    %2203 = vmatpush.msra.mxu0 0.0
    %2204 = vmatpush.msra.mxu0 0.0
    %2205 = vmatpush.msra.mxu0 %v2182
    %2206 = vmatpush.msra.mxu0 %v2180
    %2207 = vmatmul.f32.gmra.mxu0 %v2186
    %v2208 = vpop.f32.mrf.mxu0
    %v2209 = vadd.f32 0.0, %v2208
    %2210 = vmatmul.f32.gmra.mxu0 %v2189
    %v2211 = vpop.f32.mrf.mxu0
    %v2212 = vadd.f32 0.0, %v2211
    %2213 = vdwg.mxu0
    %2216 = vrot.lane.b32.xlu0 %v2209, 16
    %v2217 = vpop.permute.xlu0 %2216
    %2218 = vrot.lane.b32.xlu0 %v2212, 16
    %v2219 = vpop.permute.xlu0 %2218
    %v2222 = vsel %vm306, %v2109, %v2217
    %v2223 = vsel %vm306, %v2112, %v2219
    %v2224 = vld [vmem:[#allocation2 + $0x350] sm:$0xff]
    %v2225 = vld [vmem:[#allocation2 + $0x358] sm:$0xff]
    %v2226 = vld [vmem:[#allocation2 + $0x360] sm:$0xff]
    %v2227 = vld [vmem:[#allocation2 + $0x368] sm:$0xff]
    %v2228 = vld [vmem:[#allocation2 + $0x370] sm:$0x1]
    %v2229 = vperm.slane %v2228, 0
    %v2231 = vsel %vm56, %v2222, 0
    %v2234 = vsel %vm56, %v2223, 0
    %2236 = vmatpush.msra.mxu0 0.0
    %2237 = vmatpush.msra.mxu0 0.0
    %2238 = vmatpush.msra.mxu0 0.0
    %2239 = vmatpush.msra.mxu0 0.0
    %2240 = vmatpush.msra.mxu0 0.0
    %2241 = vmatpush.msra.mxu0 0.0
    %2242 = vmatpush.msra.mxu0 0.0
    %2243 = vmatpush.msra.mxu0 0.0
    %2244 = vmatpush.msra.mxu0 0.0
    %2245 = vmatpush.msra.mxu0 0.0
    %2246 = vmatpush.msra.mxu0 0.0
    %2247 = vmatpush.msra.mxu0 0.0
    %2248 = vmatpush.msra.mxu0 %v2227
    %2249 = vmatpush.msra.mxu0 %v2226
    %2250 = vmatpush.msra.mxu0 %v2225
    %2251 = vmatpush.msra.mxu0 %v2224
    %2252 = vmatmul.f32.gmra.mxu0 %v2231
    %v2253 = vpop.f32.mrf.mxu0
    %v2254 = vadd.f32 %v2229, %v2253
    %2255 = vmatmul.f32.gmra.mxu0 %v2234
    %v2256 = vpop.f32.mrf.mxu0
    %v2257 = vadd.f32 %v2229, %v2256
    %2258 = vdwg.mxu0
    %v2259 = vadd.f32 %v1946, %v2254
    %v2260 = vadd.f32 %v1947, %v2257
    %v2261 = vsel %vm56, %v2259, 0.0
    %2262 = vadd.xlane.f32.xlu0 %v2261
    %v2263 = vpop.xlane.xlu0 %2262
    %v2264 = vsel %vm56, %v2260, 0.0
    %2265 = vadd.xlane.f32.xlu0 %v2264
    %v2266 = vpop.xlane.xlu0 %2265
    %v2267 = vmul.f32 %v2263, %v249
    %v2268 = vmul.f32 %v2266, %v249
    %v2269 = vmul.f32 %v2259, %v2259
    %v2270 = vmul.f32 %v2260, %v2260
    %v2271 = vsel %vm56, %v2269, 0.0
    %2272 = vadd.xlane.f32.xlu0 %v2271
    %v2273 = vpop.xlane.xlu0 %2272
    %v2274 = vsel %vm56, %v2270, 0.0
    %2275 = vadd.xlane.f32.xlu0 %v2274
    %v2276 = vpop.xlane.xlu0 %2275
    %v2277 = vmul.f32 %v2273, %v249
    %v2278 = vmul.f32 %v2276, %v249
    %v2279 = vmul.f32 %v2267, %v2267
    %v2280 = vmul.f32 %v2268, %v2268
    %v2281 = vsub.f32 %v2277, %v2279
    %v2282 = vsub.f32 %v2278, %v2280
    %v2283 = vadd.f32 %v2281, 1e-05
    %v2284 = vadd.f32 %v2282, 1e-05
    %v2285 = vrsqrt.pop %v2283
    %v2286 = vmul.f32 %v2285, %v2283
    %v2287 = vmul.f32 %v2286, %v2285
    %v2288 = vmul.f32 0.5, %v2287
    %v2289 = vsub.f32 1.5, %v2288
    %v2290 = vmul.f32 %v2285, %v2289
    %vm2291 = vweird.f32 %v2283
    %vm2292 = vweird.f32 %v2285
    %vm2293 = vmor %vm2291, %vm2292
    %v2294 = vsel %vm2293, %v2285, %v2290
    %v2295 = vrsqrt.pop %v2284
    %v2296 = vmul.f32 %v2295, %v2284
    %v2297 = vmul.f32 %v2296, %v2295
    %v2298 = vmul.f32 0.5, %v2297
    %v2299 = vsub.f32 1.5, %v2298
    %v2300 = vmul.f32 %v2295, %v2299
    %vm2301 = vweird.f32 %v2284
    %vm2302 = vweird.f32 %v2295
    %vm2303 = vmor %vm2301, %vm2302
    %v2304 = vsel %vm2303, %v2295, %v2300
    %v2305 = vsub.f32 %v2259, %v2267
    %v2306 = vsub.f32 %v2260, %v2268
    %v2307 = vmul.f32 %v2305, %v2294
    %v2308 = vmul.f32 %v2306, %v2304
    %v2309 = vld [vmem:[#allocation2 + $0x371] sm:$0x1]
    %v2310 = vperm.slane %v2309, 0
    %v2311 = vmul.f32 %v2307, %v2310
    %v2312 = vmul.f32 %v2308, %v2310
    %v2313 = vld [vmem:[#allocation2 + $0x372] sm:$0x1]
    %v2314 = vperm.slane %v2313, 0
    %v2315 = vadd.f32 %v2311, %v2314
    %v2316 = vadd.f32 %v2312, %v2314
    %v2317 = vld [vmem:[#allocation2 + $0x378] sm:$0xff]
    %v2318 = vld [vmem:[#allocation2 + $0x380] sm:$0xff]
    %v2319 = vld [vmem:[#allocation2 + $0x388] sm:$0xff]
    %v2320 = vld [vmem:[#allocation2 + $0x390] sm:$0xff]
    %v2321 = vld [vmem:[#allocation2 + $0x398] sm:$0x1]
    %v2322 = vperm.slane %v2321, 0
    %v2324 = vsel %vm56, %v2315, 0
    %v2327 = vsel %vm56, %v2316, 0
    %2329 = vmatpush.msra.mxu0 0.0
    %2330 = vmatpush.msra.mxu0 0.0
    %2331 = vmatpush.msra.mxu0 0.0
    %2332 = vmatpush.msra.mxu0 0.0
    %2333 = vmatpush.msra.mxu0 0.0
    %2334 = vmatpush.msra.mxu0 0.0
    %2335 = vmatpush.msra.mxu0 0.0
    %2336 = vmatpush.msra.mxu0 0.0
    %2337 = vmatpush.msra.mxu0 0.0
    %2338 = vmatpush.msra.mxu0 0.0
    %2339 = vmatpush.msra.mxu0 0.0
    %2340 = vmatpush.msra.mxu0 0.0
    %2341 = vmatpush.msra.mxu0 %v2320
    %2342 = vmatpush.msra.mxu0 %v2319
    %2343 = vmatpush.msra.mxu0 %v2318
    %2344 = vmatpush.msra.mxu0 %v2317
    %2345 = vmatmul.f32.gmra.mxu0 %v2324
    %v2346 = vpop.f32.mrf.mxu0
    %v2347 = vadd.f32 %v2322, %v2346
    %2348 = vmatmul.f32.gmra.mxu0 %v2327
    %v2349 = vpop.f32.mrf.mxu0
    %v2350 = vadd.f32 %v2322, %v2349
    %2351 = vdwg.mxu0
    %v2352 = vmul.f32 %v2347, 0.5
    %v2353 = vmul.f32 %v2350, 0.5
    %v2354 = vmul.f32 %v2347, 0.70710677
    %v2355 = vmul.f32 %v2350, 0.70710677
    %v2356 = vmul.f32 %v2354, %v2354
    %v2357 = vmin.f32 16.0, %v2356
    %v2358 = vmul.f32 %v2357, 2.1237322e-06
    %v2359 = vadd.f32 %v2358, 0.00028619796
    %v2360 = vmul.f32 %v2357, %v2359
    %v2361 = vadd.f32 %v2360, 0.0036580483
    %v2362 = vmul.f32 %v2357, %v2361
    %v2363 = vadd.f32 %v2362, 0.05243302
    %v2364 = vmul.f32 %v2357, %v2363
    %v2365 = vadd.f32 %v2364, 0.18741608
    %v2366 = vmul.f32 %v2357, %v2365
    %v2367 = vadd.f32 %v2366, 1.1283791
    %v2368 = vmul.f32 %v2354, %v2367
    %v2369 = vmul.f32 %v2357, 3.8918573e-05
    %v2370 = vadd.f32 %v2369, 0.001143296
    %v2371 = vmul.f32 %v2357, %v2370
    %v2372 = vadd.f32 %v2371, 0.014752088
    %v2373 = vmul.f32 %v2357, %v2372
    %v2374 = vadd.f32 %v2373, 0.112945676
    %v2375 = vmul.f32 %v2357, %v2374
    %v2376 = vadd.f32 %v2375, 0.4994258
    %v2377 = vmul.f32 %v2357, %v2376
    %v2378 = vadd.f32 %v2377, 1.0
    %v2379 = vrcp.pop %v2378
    %v2380 = vmul.f32 %v2378, %v2379
    %v2381 = vsub.f32 1.0, %v2380
    %v2382 = vmul.f32 %v2379, %v2381
    %v2383 = vadd.f32 %v2379, %v2382
    %vm2384 = vweird.f32 %v2378
    %vm2385 = vweird.f32 %v2379
    %vm2386 = vmor %vm2384, %vm2385
    %v2387 = vsel %vm2386, %v2379, %v2383
    %v2388 = vand.u32 2147483647, %v2378
    %vm2389 = vcmp.eq.f32.partialorder %v2388, 8.507059e+37
    %v2390 = vand.u32 %v2378, 2147483648
    %v2391 = vor.u32 1.1754944e-38, %v2390
    %v2392 = vsel %vm2389, %v2391, %v2387
    %v2393 = vmul.f32 %v2368, %v2392
    %v2394 = vmin.f32 %v2393, 1.0
    %v2395 = vmax.f32 %v2394, -1.0
    %v2396 = vmul.f32 %v2355, %v2355
    %v2397 = vmin.f32 16.0, %v2396
    %v2398 = vmul.f32 %v2397, 2.1237322e-06
    %v2399 = vadd.f32 %v2398, 0.00028619796
    %v2400 = vmul.f32 %v2397, %v2399
    %v2401 = vadd.f32 %v2400, 0.0036580483
    %v2402 = vmul.f32 %v2397, %v2401
    %v2403 = vadd.f32 %v2402, 0.05243302
    %v2404 = vmul.f32 %v2397, %v2403
    %v2405 = vadd.f32 %v2404, 0.18741608
    %v2406 = vmul.f32 %v2397, %v2405
    %v2407 = vadd.f32 %v2406, 1.1283791
    %v2408 = vmul.f32 %v2355, %v2407
    %v2409 = vmul.f32 %v2397, 3.8918573e-05
    %v2410 = vadd.f32 %v2409, 0.001143296
    %v2411 = vmul.f32 %v2397, %v2410
    %v2412 = vadd.f32 %v2411, 0.014752088
    %v2413 = vmul.f32 %v2397, %v2412
    %v2414 = vadd.f32 %v2413, 0.112945676
    %v2415 = vmul.f32 %v2397, %v2414
    %v2416 = vadd.f32 %v2415, 0.4994258
    %v2417 = vmul.f32 %v2397, %v2416
    %v2418 = vadd.f32 %v2417, 1.0
    %v2419 = vrcp.pop %v2418
    %v2420 = vmul.f32 %v2418, %v2419
    %v2421 = vsub.f32 1.0, %v2420
    %v2422 = vmul.f32 %v2419, %v2421
    %v2423 = vadd.f32 %v2419, %v2422
    %vm2424 = vweird.f32 %v2418
    %vm2425 = vweird.f32 %v2419
    %vm2426 = vmor %vm2424, %vm2425
    %v2427 = vsel %vm2426, %v2419, %v2423
    %v2428 = vand.u32 2147483647, %v2418
    %vm2429 = vcmp.eq.f32.partialorder %v2428, 8.507059e+37
    %v2430 = vand.u32 %v2418, 2147483648
    %v2431 = vor.u32 1.1754944e-38, %v2430
    %v2432 = vsel %vm2429, %v2431, %v2427
    %v2433 = vmul.f32 %v2408, %v2432
    %v2434 = vmin.f32 %v2433, 1.0
    %v2435 = vmax.f32 %v2434, -1.0
    %v2436 = vadd.f32 %v2395, 1.0
    %v2437 = vadd.f32 %v2435, 1.0
    %v2438 = vmul.f32 %v2352, %v2436
    %v2439 = vmul.f32 %v2353, %v2437
    %v2440 = vld [vmem:[#allocation2 + $0x3a0] sm:$0xff]
    %v2441 = vld [vmem:[#allocation2 + $0x3a8] sm:$0xff]
    %v2442 = vld [vmem:[#allocation2 + $0x3b0] sm:$0xff]
    %v2443 = vld [vmem:[#allocation2 + $0x3b8] sm:$0xff]
    %v2444 = vld [vmem:[#allocation2 + $0x3c0] sm:$0xff]
    %v2445 = vld [vmem:[#allocation2 + $0x3c8] sm:$0xff]
    %v2446 = vld [vmem:[#allocation2 + $0x3d0] sm:$0xff]
    %v2447 = vld [vmem:[#allocation2 + $0x3d8] sm:$0xff]
    %v2448 = vld [vmem:[#allocation2 + $0x3e0] sm:$0x1]
    %v2449 = vperm.slane %v2448, 0
    %v2451 = vsel %vm904, %v2438, 0
    %v2454 = vsel %vm904, %v2439, 0
    %2456 = vmatpush.msra.mxu0 0.0
    %2457 = vmatpush.msra.mxu0 0.0
    %2458 = vmatpush.msra.mxu0 0.0
    %2459 = vmatpush.msra.mxu0 0.0
    %2460 = vmatpush.msra.mxu0 0.0
    %2461 = vmatpush.msra.mxu0 0.0
    %2462 = vmatpush.msra.mxu0 0.0
    %2463 = vmatpush.msra.mxu0 0.0
    %2464 = vmatpush.msra.mxu0 %v2447
    %2465 = vmatpush.msra.mxu0 %v2446
    %2466 = vmatpush.msra.mxu0 %v2445
    %2467 = vmatpush.msra.mxu0 %v2444
    %2468 = vmatpush.msra.mxu0 %v2443
    %2469 = vmatpush.msra.mxu0 %v2442
    %2470 = vmatpush.msra.mxu0 %v2441
    %2471 = vmatpush.msra.mxu0 %v2440
    %2472 = vmatmul.f32.gmra.mxu0 %v2451
    %v2473 = vpop.f32.mrf.mxu0
    %v2474 = vadd.f32 %v2449, %v2473
    %2475 = vmatmul.f32.gmra.mxu0 %v2454
    %v2476 = vpop.f32.mrf.mxu0
    %v2477 = vadd.f32 %v2449, %v2476
    %2478 = vdwg.mxu0
    %v2479 = vadd.f32 %v2315, %v2474
    %v2480 = vadd.f32 %v2316, %v2477
    %v2481 = vsel %vm56, %v2479, 0.0
    %2482 = vadd.xlane.f32.xlu0 %v2481
    %v2483 = vpop.xlane.xlu0 %2482
    %v2484 = vsel %vm56, %v2480, 0.0
    %2485 = vadd.xlane.f32.xlu0 %v2484
    %v2486 = vpop.xlane.xlu0 %2485
    %v2487 = vmul.f32 %v2483, %v249
    %v2488 = vmul.f32 %v2486, %v249
    %v2489 = vmul.f32 %v2479, %v2479
    %v2490 = vmul.f32 %v2480, %v2480
    %v2491 = vsel %vm56, %v2489, 0.0
    %2492 = vadd.xlane.f32.xlu0 %v2491
    %v2493 = vpop.xlane.xlu0 %2492
    %v2494 = vsel %vm56, %v2490, 0.0
    %2495 = vadd.xlane.f32.xlu0 %v2494
    %v2496 = vpop.xlane.xlu0 %2495
    %v2497 = vmul.f32 %v2493, %v249
    %v2498 = vmul.f32 %v2496, %v249
    %v2499 = vmul.f32 %v2487, %v2487
    %v2500 = vmul.f32 %v2488, %v2488
    %v2501 = vsub.f32 %v2497, %v2499
    %v2502 = vsub.f32 %v2498, %v2500
    %v2503 = vadd.f32 %v2501, 1e-05
    %v2504 = vadd.f32 %v2502, 1e-05
    %v2505 = vrsqrt.pop %v2503
    %v2506 = vmul.f32 %v2505, %v2503
    %v2507 = vmul.f32 %v2506, %v2505
    %v2508 = vmul.f32 0.5, %v2507
    %v2509 = vsub.f32 1.5, %v2508
    %v2510 = vmul.f32 %v2505, %v2509
    %vm2511 = vweird.f32 %v2503
    %vm2512 = vweird.f32 %v2505
    %vm2513 = vmor %vm2511, %vm2512
    %v2514 = vsel %vm2513, %v2505, %v2510
    %v2515 = vrsqrt.pop %v2504
    %v2516 = vmul.f32 %v2515, %v2504
    %v2517 = vmul.f32 %v2516, %v2515
    %v2518 = vmul.f32 0.5, %v2517
    %v2519 = vsub.f32 1.5, %v2518
    %v2520 = vmul.f32 %v2515, %v2519
    %vm2521 = vweird.f32 %v2504
    %vm2522 = vweird.f32 %v2515
    %vm2523 = vmor %vm2521, %vm2522
    %v2524 = vsel %vm2523, %v2515, %v2520
    %v2525 = vsub.f32 %v2479, %v2487
    %v2526 = vsub.f32 %v2480, %v2488
    %v2527 = vmul.f32 %v2525, %v2514
    %v2528 = vmul.f32 %v2526, %v2524
    %v2529 = vld [vmem:[#allocation2 + $0x3e1] sm:$0x1]
    %v2530 = vperm.slane %v2529, 0
    %v2531 = vmul.f32 %v2527, %v2530
    %v2532 = vmul.f32 %v2528, %v2530
    %v2533 = vld [vmem:[#allocation2 + $0x3e2] sm:$0x1]
    %v2534 = vperm.slane %v2533, 0
    %v2535 = vadd.f32 %v2531, %v2534
    %v2536 = vadd.f32 %v2532, %v2534
    %v2537 = vld [vmem:[#allocation2 + $0x3e8] sm:$0xff]
    %v2538 = vld [vmem:[#allocation2 + $0x3f0] sm:$0xff]
    %v2539 = vld [vmem:[#allocation2 + $0x3f8] sm:$0xff]
    %v2540 = vld [vmem:[#allocation2 + $0x400] sm:$0xff]
    %v2541 = vld [vmem:[#allocation2 + $0x408] sm:$0x1]
    %v2542 = vperm.slane %v2541, 0
    %v2544 = vsel %vm56, %v2535, 0
    %v2547 = vsel %vm56, %v2536, 0
    %2549 = vmatpush.msra.mxu0 0.0
    %2550 = vmatpush.msra.mxu0 0.0
    %2551 = vmatpush.msra.mxu0 0.0
    %2552 = vmatpush.msra.mxu0 0.0
    %2553 = vmatpush.msra.mxu0 0.0
    %2554 = vmatpush.msra.mxu0 0.0
    %2555 = vmatpush.msra.mxu0 0.0
    %2556 = vmatpush.msra.mxu0 0.0
    %2557 = vmatpush.msra.mxu0 0.0
    %2558 = vmatpush.msra.mxu0 0.0
    %2559 = vmatpush.msra.mxu0 0.0
    %2560 = vmatpush.msra.mxu0 0.0
    %2561 = vmatpush.msra.mxu0 %v2540
    %2562 = vmatpush.msra.mxu0 %v2539
    %2563 = vmatpush.msra.mxu0 %v2538
    %2564 = vmatpush.msra.mxu0 %v2537
    %2565 = vmatmul.f32.gmra.mxu0 %v2544
    %v2566 = vpop.f32.mrf.mxu0
    %v2567 = vadd.f32 %v2542, %v2566
    %2568 = vmatmul.f32.gmra.mxu0 %v2547
    %v2569 = vpop.f32.mrf.mxu0
    %v2570 = vadd.f32 %v2542, %v2569
    %2571 = vdwg.mxu0
    %2574 = vrot.lane.b32.xlu0 %v2567, 96
    %v2575 = vpop.permute.xlu0 %2574
    %2576 = vrot.lane.b32.xlu0 %v2570, 96
    %v2577 = vpop.permute.xlu0 %2576
    %v2578 = vsel %vm306, %v2567, 0
    %v2580 = vsel %vm306, %v2570, 0
    %v2582 = vsel %vm306, %v2575, 0
    %v2584 = vsel %vm306, %v2577, 0
    %2586 = vmatpush.xpose.msra.mxu0 0.0
    %2587 = vmatpush.xpose.msra.mxu0 0.0
    %2588 = vmatpush.xpose.msra.mxu0 0.0
    %2589 = vmatpush.xpose.msra.mxu0 0.0
    %2590 = vmatpush.xpose.msra.mxu0 0.0
    %2591 = vmatpush.xpose.msra.mxu0 0.0
    %2592 = vmatpush.xpose.msra.mxu0 0.0
    %2593 = vmatpush.xpose.msra.mxu0 0.0
    %2594 = vmatpush.xpose.msra.mxu0 0.0
    %2595 = vmatpush.xpose.msra.mxu0 0.0
    %2596 = vmatpush.xpose.msra.mxu0 0.0
    %2597 = vmatpush.xpose.msra.mxu0 0.0
    %2598 = vmatpush.xpose.msra.mxu0 0.0
    %2599 = vmatpush.xpose.msra.mxu0 0.0
    %2600 = vmatpush.xpose.msra.mxu0 %v2584
    %2601 = vmatpush.xpose.msra.mxu0 %v2582
    %2602 = vmatmul.f32.gmra.mxu0 %v2578
    %v2603 = vpop.f32.mrf.mxu0
    %v2604 = vadd.f32 0.0, %v2603
    %2605 = vmatmul.f32.gmra.mxu0 %v2580
    %v2606 = vpop.f32.mrf.mxu0
    %v2607 = vadd.f32 0.0, %v2606
    %2608 = vdwg.mxu0
    %v2609 = vmul.f32 %v2604, 0.25
    %v2610 = vmul.f32 %v2607, 0.25
    %v2611 = vadd.f32 %v2609, %v1608
    %v2612 = vadd.f32 %v2610, %v1609
    %v2613 = vsel %vm306, %v2611, -inf
    %2614 = vmax.xlane.f32.xlu0 %v2613
    %v2615 = vpop.xlane.xlu0 %2614
    %v2616 = vsel %vm306, %v2612, -inf
    %2617 = vmax.xlane.f32.xlu0 %v2616
    %v2618 = vpop.xlane.xlu0 %2617
    %v2619 = vsub.f32 %v2611, %v2615
    %v2620 = vsub.f32 %v2612, %v2618
    %v2621 = vmul.f32 %v2619, 1.442695
    %v2622 = vpow.pop %v2621
    %v2623 = vmul.f32 %v2620, 1.442695
    %v2624 = vpow.pop %v2623
    %v2625 = vsel %vm306, %v2622, 0.0
    %2626 = vadd.xlane.f32.xlu0 %v2625
    %v2627 = vpop.xlane.xlu0 %2626
    %v2628 = vsel %vm306, %v2624, 0.0
    %2629 = vadd.xlane.f32.xlu0 %v2628
    %v2630 = vpop.xlane.xlu0 %2629
    %v2631 = vrcp.pop %v2627
    %v2632 = vrcp.pop %v2630
    %v2633 = vmul.f32 %v2622, %v2631
    %v2634 = vmul.f32 %v2624, %v2632
    %2635 = vrot.lane.b32.xlu0 %v2567, 64
    %v2636 = vpop.permute.xlu0 %2635
    %2637 = vrot.lane.b32.xlu0 %v2570, 64
    %v2638 = vpop.permute.xlu0 %2637
    %v2642 = vsel %vm306, %v2633, 0
    %v2645 = vsel %vm306, %v2634, 0
    %2647 = vmatpush.msra.mxu0 0.0
    %2648 = vmatpush.msra.mxu0 0.0
    %2649 = vmatpush.msra.mxu0 0.0
    %2650 = vmatpush.msra.mxu0 0.0
    %2651 = vmatpush.msra.mxu0 0.0
    %2652 = vmatpush.msra.mxu0 0.0
    %2653 = vmatpush.msra.mxu0 0.0
    %2654 = vmatpush.msra.mxu0 0.0
    %2655 = vmatpush.msra.mxu0 0.0
    %2656 = vmatpush.msra.mxu0 0.0
    %2657 = vmatpush.msra.mxu0 0.0
    %2658 = vmatpush.msra.mxu0 0.0
    %2659 = vmatpush.msra.mxu0 0.0
    %2660 = vmatpush.msra.mxu0 0.0
    %2661 = vmatpush.msra.mxu0 %v2638
    %2662 = vmatpush.msra.mxu0 %v2636
    %2663 = vmatmul.f32.gmra.mxu0 %v2642
    %v2664 = vpop.f32.mrf.mxu0
    %v2665 = vadd.f32 0.0, %v2664
    %2666 = vmatmul.f32.gmra.mxu0 %v2645
    %v2667 = vpop.f32.mrf.mxu0
    %v2668 = vadd.f32 0.0, %v2667
    %2669 = vdwg.mxu0
    %2670 = vrot.lane.b32.xlu0 %v2567, 112
    %v2671 = vpop.permute.xlu0 %2670
    %2672 = vrot.lane.b32.xlu0 %v2570, 112
    %v2673 = vpop.permute.xlu0 %2672
    %2674 = vrot.lane.b32.xlu0 %v2567, 80
    %v2675 = vpop.permute.xlu0 %2674
    %2676 = vrot.lane.b32.xlu0 %v2570, 80
    %v2677 = vpop.permute.xlu0 %2676
    %v2678 = vsel %vm306, %v2671, 0
    %v2680 = vsel %vm306, %v2673, 0
    %v2682 = vsel %vm306, %v2675, 0
    %v2684 = vsel %vm306, %v2677, 0
    %2686 = vmatpush.xpose.msra.mxu0 0.0
    %2687 = vmatpush.xpose.msra.mxu0 0.0
    %2688 = vmatpush.xpose.msra.mxu0 0.0
    %2689 = vmatpush.xpose.msra.mxu0 0.0
    %2690 = vmatpush.xpose.msra.mxu0 0.0
    %2691 = vmatpush.xpose.msra.mxu0 0.0
    %2692 = vmatpush.xpose.msra.mxu0 0.0
    %2693 = vmatpush.xpose.msra.mxu0 0.0
    %2694 = vmatpush.xpose.msra.mxu0 0.0
    %2695 = vmatpush.xpose.msra.mxu0 0.0
    %2696 = vmatpush.xpose.msra.mxu0 0.0
    %2697 = vmatpush.xpose.msra.mxu0 0.0
    %2698 = vmatpush.xpose.msra.mxu0 0.0
    %2699 = vmatpush.xpose.msra.mxu0 0.0
    %2700 = vmatpush.xpose.msra.mxu0 %v2684
    %2701 = vmatpush.xpose.msra.mxu0 %v2682
    %2702 = vmatmul.f32.gmra.mxu0 %v2678
    %v2703 = vpop.f32.mrf.mxu0
    %v2704 = vadd.f32 0.0, %v2703
    %2705 = vmatmul.f32.gmra.mxu0 %v2680
    %v2706 = vpop.f32.mrf.mxu0
    %v2707 = vadd.f32 0.0, %v2706
    %2708 = vdwg.mxu0
    %v2709 = vmul.f32 %v2704, 0.25
    %v2710 = vmul.f32 %v2707, 0.25
    %v2711 = vadd.f32 %v2709, %v1608
    %v2712 = vadd.f32 %v2710, %v1609
    %v2713 = vsel %vm306, %v2711, -inf
    %2714 = vmax.xlane.f32.xlu0 %v2713
    %v2715 = vpop.xlane.xlu0 %2714
    %v2716 = vsel %vm306, %v2712, -inf
    %2717 = vmax.xlane.f32.xlu0 %v2716
    %v2718 = vpop.xlane.xlu0 %2717
    %v2719 = vsub.f32 %v2711, %v2715
    %v2720 = vsub.f32 %v2712, %v2718
    %v2721 = vmul.f32 %v2719, 1.442695
    %v2722 = vpow.pop %v2721
    %v2723 = vmul.f32 %v2720, 1.442695
    %v2724 = vpow.pop %v2723
    %v2725 = vsel %vm306, %v2722, 0.0
    %2726 = vadd.xlane.f32.xlu0 %v2725
    %v2727 = vpop.xlane.xlu0 %2726
    %v2728 = vsel %vm306, %v2724, 0.0
    %2729 = vadd.xlane.f32.xlu0 %v2728
    %v2730 = vpop.xlane.xlu0 %2729
    %v2731 = vrcp.pop %v2727
    %v2732 = vrcp.pop %v2730
    %v2733 = vmul.f32 %v2722, %v2731
    %v2734 = vmul.f32 %v2724, %v2732
    %2735 = vrot.lane.b32.xlu0 %v2567, 48
    %v2736 = vpop.permute.xlu0 %2735
    %2737 = vrot.lane.b32.xlu0 %v2570, 48
    %v2738 = vpop.permute.xlu0 %2737
    %v2742 = vsel %vm306, %v2733, 0
    %v2745 = vsel %vm306, %v2734, 0
    %2747 = vmatpush.msra.mxu0 0.0
    %2748 = vmatpush.msra.mxu0 0.0
    %2749 = vmatpush.msra.mxu0 0.0
    %2750 = vmatpush.msra.mxu0 0.0
    %2751 = vmatpush.msra.mxu0 0.0
    %2752 = vmatpush.msra.mxu0 0.0
    %2753 = vmatpush.msra.mxu0 0.0
    %2754 = vmatpush.msra.mxu0 0.0
    %2755 = vmatpush.msra.mxu0 0.0
    %2756 = vmatpush.msra.mxu0 0.0
    %2757 = vmatpush.msra.mxu0 0.0
    %2758 = vmatpush.msra.mxu0 0.0
    %2759 = vmatpush.msra.mxu0 0.0
    %2760 = vmatpush.msra.mxu0 0.0
    %2761 = vmatpush.msra.mxu0 %v2738
    %2762 = vmatpush.msra.mxu0 %v2736
    %2763 = vmatmul.f32.gmra.mxu0 %v2742
    %v2764 = vpop.f32.mrf.mxu0
    %v2765 = vadd.f32 0.0, %v2764
    %2766 = vmatmul.f32.gmra.mxu0 %v2745
    %v2767 = vpop.f32.mrf.mxu0
    %v2768 = vadd.f32 0.0, %v2767
    %2769 = vdwg.mxu0
    %2772 = vrot.lane.b32.xlu0 %v2765, 16
    %v2773 = vpop.permute.xlu0 %2772
    %2774 = vrot.lane.b32.xlu0 %v2768, 16
    %v2775 = vpop.permute.xlu0 %2774
    %v2778 = vsel %vm306, %v2665, %v2773
    %v2779 = vsel %vm306, %v2668, %v2775
    %v2780 = vld [vmem:[#allocation2 + $0x410] sm:$0xff]
    %v2781 = vld [vmem:[#allocation2 + $0x418] sm:$0xff]
    %v2782 = vld [vmem:[#allocation2 + $0x420] sm:$0xff]
    %v2783 = vld [vmem:[#allocation2 + $0x428] sm:$0xff]
    %v2784 = vld [vmem:[#allocation2 + $0x430] sm:$0x1]
    %v2785 = vperm.slane %v2784, 0
    %v2787 = vsel %vm56, %v2778, 0
    %v2790 = vsel %vm56, %v2779, 0
    %2792 = vmatpush.msra.mxu0 0.0
    %2793 = vmatpush.msra.mxu0 0.0
    %2794 = vmatpush.msra.mxu0 0.0
    %2795 = vmatpush.msra.mxu0 0.0
    %2796 = vmatpush.msra.mxu0 0.0
    %2797 = vmatpush.msra.mxu0 0.0
    %2798 = vmatpush.msra.mxu0 0.0
    %2799 = vmatpush.msra.mxu0 0.0
    %2800 = vmatpush.msra.mxu0 0.0
    %2801 = vmatpush.msra.mxu0 0.0
    %2802 = vmatpush.msra.mxu0 0.0
    %2803 = vmatpush.msra.mxu0 0.0
    %2804 = vmatpush.msra.mxu0 %v2783
    %2805 = vmatpush.msra.mxu0 %v2782
    %2806 = vmatpush.msra.mxu0 %v2781
    %2807 = vmatpush.msra.mxu0 %v2780
    %2808 = vmatmul.f32.gmra.mxu0 %v2787
    %v2809 = vpop.f32.mrf.mxu0
    %v2810 = vadd.f32 %v2785, %v2809
    %2811 = vmatmul.f32.gmra.mxu0 %v2790
    %v2812 = vpop.f32.mrf.mxu0
    %v2813 = vadd.f32 %v2785, %v2812
    %2814 = vdwg.mxu0
    %v2815 = vadd.f32 %v2535, %v2810
    %v2816 = vadd.f32 %v2536, %v2813
    %v2817 = vsel %vm56, %v2815, 0.0
    %2818 = vadd.xlane.f32.xlu0 %v2817
    %v2819 = vpop.xlane.xlu0 %2818
    %v2820 = vsel %vm56, %v2816, 0.0
    %2821 = vadd.xlane.f32.xlu0 %v2820
    %v2822 = vpop.xlane.xlu0 %2821
    %v2823 = vmul.f32 %v2819, %v249
    %v2824 = vmul.f32 %v2822, %v249
    %v2825 = vmul.f32 %v2815, %v2815
    %v2826 = vmul.f32 %v2816, %v2816
    %v2827 = vsel %vm56, %v2825, 0.0
    %2828 = vadd.xlane.f32.xlu0 %v2827
    %v2829 = vpop.xlane.xlu0 %2828
    %v2830 = vsel %vm56, %v2826, 0.0
    %2831 = vadd.xlane.f32.xlu0 %v2830
    %v2832 = vpop.xlane.xlu0 %2831
    %v2833 = vmul.f32 %v2829, %v249
    %v2834 = vmul.f32 %v2832, %v249
    %v2835 = vmul.f32 %v2823, %v2823
    %v2836 = vmul.f32 %v2824, %v2824
    %v2837 = vsub.f32 %v2833, %v2835
    %v2838 = vsub.f32 %v2834, %v2836
    %v2839 = vadd.f32 %v2837, 1e-05
    %v2840 = vadd.f32 %v2838, 1e-05
    %v2841 = vrsqrt.pop %v2839
    %v2842 = vmul.f32 %v2841, %v2839
    %v2843 = vmul.f32 %v2842, %v2841
    %v2844 = vmul.f32 0.5, %v2843
    %v2845 = vsub.f32 1.5, %v2844
    %v2846 = vmul.f32 %v2841, %v2845
    %vm2847 = vweird.f32 %v2839
    %vm2848 = vweird.f32 %v2841
    %vm2849 = vmor %vm2847, %vm2848
    %v2850 = vsel %vm2849, %v2841, %v2846
    %v2851 = vrsqrt.pop %v2840
    %v2852 = vmul.f32 %v2851, %v2840
    %v2853 = vmul.f32 %v2852, %v2851
    %v2854 = vmul.f32 0.5, %v2853
    %v2855 = vsub.f32 1.5, %v2854
    %v2856 = vmul.f32 %v2851, %v2855
    %vm2857 = vweird.f32 %v2840
    %vm2858 = vweird.f32 %v2851
    %vm2859 = vmor %vm2857, %vm2858
    %v2860 = vsel %vm2859, %v2851, %v2856
    %v2861 = vsub.f32 %v2815, %v2823
    %v2862 = vsub.f32 %v2816, %v2824
    %v2863 = vmul.f32 %v2861, %v2850
    %v2864 = vmul.f32 %v2862, %v2860
    %v2865 = vld [vmem:[#allocation2 + $0x431] sm:$0x1]
    %v2866 = vperm.slane %v2865, 0
    %v2867 = vmul.f32 %v2863, %v2866
    %v2868 = vmul.f32 %v2864, %v2866
    %v2869 = vld [vmem:[#allocation2 + $0x432] sm:$0x1]
    %v2870 = vperm.slane %v2869, 0
    %v2871 = vadd.f32 %v2867, %v2870
    %v2872 = vadd.f32 %v2868, %v2870
    %v2873 = vld [vmem:[#allocation2 + $0x438] sm:$0xff]
    %v2874 = vld [vmem:[#allocation2 + $0x440] sm:$0xff]
    %v2875 = vld [vmem:[#allocation2 + $0x448] sm:$0xff]
    %v2876 = vld [vmem:[#allocation2 + $0x450] sm:$0xff]
    %v2877 = vld [vmem:[#allocation2 + $0x458] sm:$0x1]
    %v2878 = vperm.slane %v2877, 0
    %v2880 = vsel %vm56, %v2871, 0
    %v2883 = vsel %vm56, %v2872, 0
    %2885 = vmatpush.msra.mxu0 0.0
    %2886 = vmatpush.msra.mxu0 0.0
    %2887 = vmatpush.msra.mxu0 0.0
    %2888 = vmatpush.msra.mxu0 0.0
    %2889 = vmatpush.msra.mxu0 0.0
    %2890 = vmatpush.msra.mxu0 0.0
    %2891 = vmatpush.msra.mxu0 0.0
    %2892 = vmatpush.msra.mxu0 0.0
    %2893 = vmatpush.msra.mxu0 0.0
    %2894 = vmatpush.msra.mxu0 0.0
    %2895 = vmatpush.msra.mxu0 0.0
    %2896 = vmatpush.msra.mxu0 0.0
    %2897 = vmatpush.msra.mxu0 %v2876
    %2898 = vmatpush.msra.mxu0 %v2875
    %2899 = vmatpush.msra.mxu0 %v2874
    %2900 = vmatpush.msra.mxu0 %v2873
    %2901 = vmatmul.f32.gmra.mxu0 %v2880
    %v2902 = vpop.f32.mrf.mxu0
    %v2903 = vadd.f32 %v2878, %v2902
    %2904 = vmatmul.f32.gmra.mxu0 %v2883
    %v2905 = vpop.f32.mrf.mxu0
    %v2906 = vadd.f32 %v2878, %v2905
    %2907 = vdwg.mxu0
    %v2908 = vld [vmem:[#allocation2 + $0x460] sm:$0xff]
    %v2909 = vld [vmem:[#allocation2 + $0x468] sm:$0xff]
    %v2910 = vld [vmem:[#allocation2 + $0x470] sm:$0xff]
    %v2911 = vld [vmem:[#allocation2 + $0x478] sm:$0xff]
    %v2912 = vld [vmem:[#allocation2 + $0x480] sm:$0x1]
    %v2913 = vperm.slane %v2912, 0
    %2914 = vmatpush.msra.mxu0 0.0
    %2915 = vmatpush.msra.mxu0 0.0
    %2916 = vmatpush.msra.mxu0 0.0
    %2917 = vmatpush.msra.mxu0 0.0
    %2918 = vmatpush.msra.mxu0 0.0
    %2919 = vmatpush.msra.mxu0 0.0
    %2920 = vmatpush.msra.mxu0 0.0
    %2921 = vmatpush.msra.mxu0 0.0
    %2922 = vmatpush.msra.mxu0 0.0
    %2923 = vmatpush.msra.mxu0 0.0
    %2924 = vmatpush.msra.mxu0 0.0
    %2925 = vmatpush.msra.mxu0 0.0
    %2926 = vmatpush.msra.mxu0 %v2911
    %2927 = vmatpush.msra.mxu0 %v2910
    %2928 = vmatpush.msra.mxu0 %v2909
    %2929 = vmatpush.msra.mxu0 %v2908
    %2930 = vmatmul.f32.gmra.mxu0 %v1990
    %v2931 = vpop.f32.mrf.mxu0
    %v2932 = vadd.f32 %v2913, %v2931
    %2933 = vmatmul.f32.gmra.mxu0 %v1993
    %v2934 = vpop.f32.mrf.mxu0
    %v2935 = vadd.f32 %v2913, %v2934
    %2936 = vdwg.mxu0
    %v2938 = vsel %vm306, %v2903, 0
    %v2941 = vsel %vm306, %v2906, 0
    %v2944 = vsel %vm306, %v2932, 0
    %v2947 = vsel %vm306, %v2935, 0
    %2949 = vmatpush.xpose.msra.mxu0 0.0
    %2950 = vmatpush.xpose.msra.mxu0 0.0
    %2951 = vmatpush.xpose.msra.mxu0 0.0
    %2952 = vmatpush.xpose.msra.mxu0 0.0
    %2953 = vmatpush.xpose.msra.mxu0 0.0
    %2954 = vmatpush.xpose.msra.mxu0 0.0
    %2955 = vmatpush.xpose.msra.mxu0 0.0
    %2956 = vmatpush.xpose.msra.mxu0 0.0
    %2957 = vmatpush.xpose.msra.mxu0 0.0
    %2958 = vmatpush.xpose.msra.mxu0 0.0
    %2959 = vmatpush.xpose.msra.mxu0 0.0
    %2960 = vmatpush.xpose.msra.mxu0 0.0
    %2961 = vmatpush.xpose.msra.mxu0 0.0
    %2962 = vmatpush.xpose.msra.mxu0 0.0
    %2963 = vmatpush.xpose.msra.mxu0 %v2947
    %2964 = vmatpush.xpose.msra.mxu0 %v2944
    %2965 = vmatmul.f32.gmra.mxu0 %v2938
    %v2966 = vpop.f32.mrf.mxu0
    %v2967 = vadd.f32 0.0, %v2966
    %2968 = vmatmul.f32.gmra.mxu0 %v2941
    %v2969 = vpop.f32.mrf.mxu0
    %v2970 = vadd.f32 0.0, %v2969
    %2971 = vdwg.mxu0
    %v2972 = vmul.f32 %v2967, 0.25
    %v2973 = vmul.f32 %v2970, 0.25
    %v2974 = vadd.f32 %v2972, %v1610
    %v2975 = vadd.f32 %v2973, %v1611
    %v2976 = vsel %vm306, %v2974, -inf
    %2977 = vmax.xlane.f32.xlu0 %v2976
    %v2978 = vpop.xlane.xlu0 %2977
    %v2979 = vsel %vm306, %v2975, -inf
    %2980 = vmax.xlane.f32.xlu0 %v2979
    %v2981 = vpop.xlane.xlu0 %2980
    %v2982 = vsub.f32 %v2974, %v2978
    %v2983 = vsub.f32 %v2975, %v2981
    %v2984 = vmul.f32 %v2982, 1.442695
    %v2985 = vpow.pop %v2984
    %v2986 = vmul.f32 %v2983, 1.442695
    %v2987 = vpow.pop %v2986
    %v2988 = vsel %vm306, %v2985, 0.0
    %2989 = vadd.xlane.f32.xlu0 %v2988
    %v2990 = vpop.xlane.xlu0 %2989
    %v2991 = vsel %vm306, %v2987, 0.0
    %2992 = vadd.xlane.f32.xlu0 %v2991
    %v2993 = vpop.xlane.xlu0 %2992
    %v2994 = vrcp.pop %v2990
    %v2995 = vrcp.pop %v2993
    %v2996 = vmul.f32 %v2985, %v2994
    %v2997 = vmul.f32 %v2987, %v2995
    %2998 = vrot.lane.b32.xlu0 %v2932, 96
    %v2999 = vpop.permute.xlu0 %2998
    %3000 = vrot.lane.b32.xlu0 %v2935, 96
    %v3001 = vpop.permute.xlu0 %3000
    %v3005 = vsel %vm306, %v2996, 0
    %v3008 = vsel %vm306, %v2997, 0
    %3010 = vmatpush.msra.mxu0 0.0
    %3011 = vmatpush.msra.mxu0 0.0
    %3012 = vmatpush.msra.mxu0 0.0
    %3013 = vmatpush.msra.mxu0 0.0
    %3014 = vmatpush.msra.mxu0 0.0
    %3015 = vmatpush.msra.mxu0 0.0
    %3016 = vmatpush.msra.mxu0 0.0
    %3017 = vmatpush.msra.mxu0 0.0
    %3018 = vmatpush.msra.mxu0 0.0
    %3019 = vmatpush.msra.mxu0 0.0
    %3020 = vmatpush.msra.mxu0 0.0
    %3021 = vmatpush.msra.mxu0 0.0
    %3022 = vmatpush.msra.mxu0 0.0
    %3023 = vmatpush.msra.mxu0 0.0
    %3024 = vmatpush.msra.mxu0 %v3001
    %3025 = vmatpush.msra.mxu0 %v2999
    %3026 = vmatmul.f32.gmra.mxu0 %v3005
    %v3027 = vpop.f32.mrf.mxu0
    %v3028 = vadd.f32 0.0, %v3027
    %3029 = vmatmul.f32.gmra.mxu0 %v3008
    %v3030 = vpop.f32.mrf.mxu0
    %v3031 = vadd.f32 0.0, %v3030
    %3032 = vdwg.mxu0
    %3033 = vrot.lane.b32.xlu0 %v2903, 112
    %v3034 = vpop.permute.xlu0 %3033
    %3035 = vrot.lane.b32.xlu0 %v2906, 112
    %v3036 = vpop.permute.xlu0 %3035
    %3037 = vrot.lane.b32.xlu0 %v2932, 112
    %v3038 = vpop.permute.xlu0 %3037
    %3039 = vrot.lane.b32.xlu0 %v2935, 112
    %v3040 = vpop.permute.xlu0 %3039
    %v3041 = vsel %vm306, %v3034, 0
    %v3043 = vsel %vm306, %v3036, 0
    %v3045 = vsel %vm306, %v3038, 0
    %v3047 = vsel %vm306, %v3040, 0
    %3049 = vmatpush.xpose.msra.mxu0 0.0
    %3050 = vmatpush.xpose.msra.mxu0 0.0
    %3051 = vmatpush.xpose.msra.mxu0 0.0
    %3052 = vmatpush.xpose.msra.mxu0 0.0
    %3053 = vmatpush.xpose.msra.mxu0 0.0
    %3054 = vmatpush.xpose.msra.mxu0 0.0
    %3055 = vmatpush.xpose.msra.mxu0 0.0
    %3056 = vmatpush.xpose.msra.mxu0 0.0
    %3057 = vmatpush.xpose.msra.mxu0 0.0
    %3058 = vmatpush.xpose.msra.mxu0 0.0
    %3059 = vmatpush.xpose.msra.mxu0 0.0
    %3060 = vmatpush.xpose.msra.mxu0 0.0
    %3061 = vmatpush.xpose.msra.mxu0 0.0
    %3062 = vmatpush.xpose.msra.mxu0 0.0
    %3063 = vmatpush.xpose.msra.mxu0 %v3047
    %3064 = vmatpush.xpose.msra.mxu0 %v3045
    %3065 = vmatmul.f32.gmra.mxu0 %v3041
    %v3066 = vpop.f32.mrf.mxu0
    %v3067 = vadd.f32 0.0, %v3066
    %3068 = vmatmul.f32.gmra.mxu0 %v3043
    %v3069 = vpop.f32.mrf.mxu0
    %v3070 = vadd.f32 0.0, %v3069
    %3071 = vdwg.mxu0
    %v3072 = vmul.f32 %v3067, 0.25
    %v3073 = vmul.f32 %v3070, 0.25
    %v3074 = vadd.f32 %v3072, %v1610
    %v3075 = vadd.f32 %v3073, %v1611
    %v3076 = vsel %vm306, %v3074, -inf
    %3077 = vmax.xlane.f32.xlu0 %v3076
    %v3078 = vpop.xlane.xlu0 %3077
    %v3079 = vsel %vm306, %v3075, -inf
    %3080 = vmax.xlane.f32.xlu0 %v3079
    %v3081 = vpop.xlane.xlu0 %3080
    %v3082 = vsub.f32 %v3074, %v3078
    %v3083 = vsub.f32 %v3075, %v3081
    %v3084 = vmul.f32 %v3082, 1.442695
    %v3085 = vpow.pop %v3084
    %v3086 = vmul.f32 %v3083, 1.442695
    %v3087 = vpow.pop %v3086
    %v3088 = vsel %vm306, %v3085, 0.0
    %3089 = vadd.xlane.f32.xlu0 %v3088
    %v3090 = vpop.xlane.xlu0 %3089
    %v3091 = vsel %vm306, %v3087, 0.0
    %3092 = vadd.xlane.f32.xlu0 %v3091
    %v3093 = vpop.xlane.xlu0 %3092
    %v3094 = vrcp.pop %v3090
    %v3095 = vrcp.pop %v3093
    %v3096 = vmul.f32 %v3085, %v3094
    %v3097 = vmul.f32 %v3087, %v3095
    %3098 = vrot.lane.b32.xlu0 %v2932, 80
    %v3099 = vpop.permute.xlu0 %3098
    %3100 = vrot.lane.b32.xlu0 %v2935, 80
    %v3101 = vpop.permute.xlu0 %3100
    %v3105 = vsel %vm306, %v3096, 0
    %v3108 = vsel %vm306, %v3097, 0
    %3110 = vmatpush.msra.mxu0 0.0
    %3111 = vmatpush.msra.mxu0 0.0
    %3112 = vmatpush.msra.mxu0 0.0
    %3113 = vmatpush.msra.mxu0 0.0
    %3114 = vmatpush.msra.mxu0 0.0
    %3115 = vmatpush.msra.mxu0 0.0
    %3116 = vmatpush.msra.mxu0 0.0
    %3117 = vmatpush.msra.mxu0 0.0
    %3118 = vmatpush.msra.mxu0 0.0
    %3119 = vmatpush.msra.mxu0 0.0
    %3120 = vmatpush.msra.mxu0 0.0
    %3121 = vmatpush.msra.mxu0 0.0
    %3122 = vmatpush.msra.mxu0 0.0
    %3123 = vmatpush.msra.mxu0 0.0
    %3124 = vmatpush.msra.mxu0 %v3101
    %3125 = vmatpush.msra.mxu0 %v3099
    %3126 = vmatmul.f32.gmra.mxu0 %v3105
    %v3127 = vpop.f32.mrf.mxu0
    %v3128 = vadd.f32 0.0, %v3127
    %3129 = vmatmul.f32.gmra.mxu0 %v3108
    %v3130 = vpop.f32.mrf.mxu0
    %v3131 = vadd.f32 0.0, %v3130
    %3132 = vdwg.mxu0
    %3135 = vrot.lane.b32.xlu0 %v3128, 16
    %v3136 = vpop.permute.xlu0 %3135
    %3137 = vrot.lane.b32.xlu0 %v3131, 16
    %v3138 = vpop.permute.xlu0 %3137
    %v3141 = vsel %vm306, %v3028, %v3136
    %v3142 = vsel %vm306, %v3031, %v3138
    %v3143 = vld [vmem:[#allocation2 + $0x488] sm:$0xff]
    %v3144 = vld [vmem:[#allocation2 + $0x490] sm:$0xff]
    %v3145 = vld [vmem:[#allocation2 + $0x498] sm:$0xff]
    %v3146 = vld [vmem:[#allocation2 + $0x4a0] sm:$0xff]
    %v3147 = vld [vmem:[#allocation2 + $0x4a8] sm:$0x1]
    %v3148 = vperm.slane %v3147, 0
    %v3150 = vsel %vm56, %v3141, 0
    %v3153 = vsel %vm56, %v3142, 0
    %3155 = vmatpush.msra.mxu0 0.0
    %3156 = vmatpush.msra.mxu0 0.0
    %3157 = vmatpush.msra.mxu0 0.0
    %3158 = vmatpush.msra.mxu0 0.0
    %3159 = vmatpush.msra.mxu0 0.0
    %3160 = vmatpush.msra.mxu0 0.0
    %3161 = vmatpush.msra.mxu0 0.0
    %3162 = vmatpush.msra.mxu0 0.0
    %3163 = vmatpush.msra.mxu0 0.0
    %3164 = vmatpush.msra.mxu0 0.0
    %3165 = vmatpush.msra.mxu0 0.0
    %3166 = vmatpush.msra.mxu0 0.0
    %3167 = vmatpush.msra.mxu0 %v3146
    %3168 = vmatpush.msra.mxu0 %v3145
    %3169 = vmatpush.msra.mxu0 %v3144
    %3170 = vmatpush.msra.mxu0 %v3143
    %3171 = vmatmul.f32.gmra.mxu0 %v3150
    %v3172 = vpop.f32.mrf.mxu0
    %v3173 = vadd.f32 %v3148, %v3172
    %3174 = vmatmul.f32.gmra.mxu0 %v3153
    %v3175 = vpop.f32.mrf.mxu0
    %v3176 = vadd.f32 %v3148, %v3175
    %3177 = vdwg.mxu0
    %v3178 = vadd.f32 %v2871, %v3173
    %v3179 = vadd.f32 %v2872, %v3176
    %v3180 = vsel %vm56, %v3178, 0.0
    %3181 = vadd.xlane.f32.xlu0 %v3180
    %v3182 = vpop.xlane.xlu0 %3181
    %v3183 = vsel %vm56, %v3179, 0.0
    %3184 = vadd.xlane.f32.xlu0 %v3183
    %v3185 = vpop.xlane.xlu0 %3184
    %v3186 = vmul.f32 %v3182, %v249
    %v3187 = vmul.f32 %v3185, %v249
    %v3188 = vmul.f32 %v3178, %v3178
    %v3189 = vmul.f32 %v3179, %v3179
    %v3190 = vsel %vm56, %v3188, 0.0
    %3191 = vadd.xlane.f32.xlu0 %v3190
    %v3192 = vpop.xlane.xlu0 %3191
    %v3193 = vsel %vm56, %v3189, 0.0
    %3194 = vadd.xlane.f32.xlu0 %v3193
    %v3195 = vpop.xlane.xlu0 %3194
    %v3196 = vmul.f32 %v3192, %v249
    %v3197 = vmul.f32 %v3195, %v249
    %v3198 = vmul.f32 %v3186, %v3186
    %v3199 = vmul.f32 %v3187, %v3187
    %v3200 = vsub.f32 %v3196, %v3198
    %v3201 = vsub.f32 %v3197, %v3199
    %v3202 = vadd.f32 %v3200, 1e-05
    %v3203 = vadd.f32 %v3201, 1e-05
    %v3204 = vrsqrt.pop %v3202
    %v3205 = vmul.f32 %v3204, %v3202
    %v3206 = vmul.f32 %v3205, %v3204
    %v3207 = vmul.f32 0.5, %v3206
    %v3208 = vsub.f32 1.5, %v3207
    %v3209 = vmul.f32 %v3204, %v3208
    %vm3210 = vweird.f32 %v3202
    %vm3211 = vweird.f32 %v3204
    %vm3212 = vmor %vm3210, %vm3211
    %v3213 = vsel %vm3212, %v3204, %v3209
    %v3214 = vrsqrt.pop %v3203
    %v3215 = vmul.f32 %v3214, %v3203
    %v3216 = vmul.f32 %v3215, %v3214
    %v3217 = vmul.f32 0.5, %v3216
    %v3218 = vsub.f32 1.5, %v3217
    %v3219 = vmul.f32 %v3214, %v3218
    %vm3220 = vweird.f32 %v3203
    %vm3221 = vweird.f32 %v3214
    %vm3222 = vmor %vm3220, %vm3221
    %v3223 = vsel %vm3222, %v3214, %v3219
    %v3224 = vsub.f32 %v3178, %v3186
    %v3225 = vsub.f32 %v3179, %v3187
    %v3226 = vmul.f32 %v3224, %v3213
    %v3227 = vmul.f32 %v3225, %v3223
    %v3228 = vld [vmem:[#allocation2 + $0x4a9] sm:$0x1]
    %v3229 = vperm.slane %v3228, 0
    %v3230 = vmul.f32 %v3226, %v3229
    %v3231 = vmul.f32 %v3227, %v3229
    %v3232 = vld [vmem:[#allocation2 + $0x4aa] sm:$0x1]
    %v3233 = vperm.slane %v3232, 0
    %v3234 = vadd.f32 %v3230, %v3233
    %v3235 = vadd.f32 %v3231, %v3233
    %v3236 = vld [vmem:[#allocation2 + $0x4b0] sm:$0xff]
    %v3237 = vld [vmem:[#allocation2 + $0x4b8] sm:$0xff]
    %v3238 = vld [vmem:[#allocation2 + $0x4c0] sm:$0xff]
    %v3239 = vld [vmem:[#allocation2 + $0x4c8] sm:$0xff]
    %v3240 = vld [vmem:[#allocation2 + $0x4d0] sm:$0x1]
    %v3241 = vperm.slane %v3240, 0
    %v3243 = vsel %vm56, %v3234, 0
    %v3246 = vsel %vm56, %v3235, 0
    %3248 = vmatpush.msra.mxu0 0.0
    %3249 = vmatpush.msra.mxu0 0.0
    %3250 = vmatpush.msra.mxu0 0.0
    %3251 = vmatpush.msra.mxu0 0.0
    %3252 = vmatpush.msra.mxu0 0.0
    %3253 = vmatpush.msra.mxu0 0.0
    %3254 = vmatpush.msra.mxu0 0.0
    %3255 = vmatpush.msra.mxu0 0.0
    %3256 = vmatpush.msra.mxu0 0.0
    %3257 = vmatpush.msra.mxu0 0.0
    %3258 = vmatpush.msra.mxu0 0.0
    %3259 = vmatpush.msra.mxu0 0.0
    %3260 = vmatpush.msra.mxu0 %v3239
    %3261 = vmatpush.msra.mxu0 %v3238
    %3262 = vmatpush.msra.mxu0 %v3237
    %3263 = vmatpush.msra.mxu0 %v3236
    %3264 = vmatmul.f32.gmra.mxu0 %v3243
    %v3265 = vpop.f32.mrf.mxu0
    %v3266 = vadd.f32 %v3241, %v3265
    %3267 = vmatmul.f32.gmra.mxu0 %v3246
    %v3268 = vpop.f32.mrf.mxu0
    %v3269 = vadd.f32 %v3241, %v3268
    %3270 = vdwg.mxu0
    %v3271 = vmul.f32 %v3266, 0.5
    %v3272 = vmul.f32 %v3269, 0.5
    %v3273 = vmul.f32 %v3266, 0.70710677
    %v3274 = vmul.f32 %v3269, 0.70710677
    %v3275 = vmul.f32 %v3273, %v3273
    %v3276 = vmin.f32 16.0, %v3275
    %v3277 = vmul.f32 %v3276, 2.1237322e-06
    %v3278 = vadd.f32 %v3277, 0.00028619796
    %v3279 = vmul.f32 %v3276, %v3278
    %v3280 = vadd.f32 %v3279, 0.0036580483
    %v3281 = vmul.f32 %v3276, %v3280
    %v3282 = vadd.f32 %v3281, 0.05243302
    %v3283 = vmul.f32 %v3276, %v3282
    %v3284 = vadd.f32 %v3283, 0.18741608
    %v3285 = vmul.f32 %v3276, %v3284
    %v3286 = vadd.f32 %v3285, 1.1283791
    %v3287 = vmul.f32 %v3273, %v3286
    %v3288 = vmul.f32 %v3276, 3.8918573e-05
    %v3289 = vadd.f32 %v3288, 0.001143296
    %v3290 = vmul.f32 %v3276, %v3289
    %v3291 = vadd.f32 %v3290, 0.014752088
    %v3292 = vmul.f32 %v3276, %v3291
    %v3293 = vadd.f32 %v3292, 0.112945676
    %v3294 = vmul.f32 %v3276, %v3293
    %v3295 = vadd.f32 %v3294, 0.4994258
    %v3296 = vmul.f32 %v3276, %v3295
    %v3297 = vadd.f32 %v3296, 1.0
    %v3298 = vrcp.pop %v3297
    %v3299 = vmul.f32 %v3297, %v3298
    %v3300 = vsub.f32 1.0, %v3299
    %v3301 = vmul.f32 %v3298, %v3300
    %v3302 = vadd.f32 %v3298, %v3301
    %vm3303 = vweird.f32 %v3297
    %vm3304 = vweird.f32 %v3298
    %vm3305 = vmor %vm3303, %vm3304
    %v3306 = vsel %vm3305, %v3298, %v3302
    %v3307 = vand.u32 2147483647, %v3297
    %vm3308 = vcmp.eq.f32.partialorder %v3307, 8.507059e+37
    %v3309 = vand.u32 %v3297, 2147483648
    %v3310 = vor.u32 1.1754944e-38, %v3309
    %v3311 = vsel %vm3308, %v3310, %v3306
    %v3312 = vmul.f32 %v3287, %v3311
    %v3313 = vmin.f32 %v3312, 1.0
    %v3314 = vmax.f32 %v3313, -1.0
    %v3315 = vmul.f32 %v3274, %v3274
    %v3316 = vmin.f32 16.0, %v3315
    %v3317 = vmul.f32 %v3316, 2.1237322e-06
    %v3318 = vadd.f32 %v3317, 0.00028619796
    %v3319 = vmul.f32 %v3316, %v3318
    %v3320 = vadd.f32 %v3319, 0.0036580483
    %v3321 = vmul.f32 %v3316, %v3320
    %v3322 = vadd.f32 %v3321, 0.05243302
    %v3323 = vmul.f32 %v3316, %v3322
    %v3324 = vadd.f32 %v3323, 0.18741608
    %v3325 = vmul.f32 %v3316, %v3324
    %v3326 = vadd.f32 %v3325, 1.1283791
    %v3327 = vmul.f32 %v3274, %v3326
    %v3328 = vmul.f32 %v3316, 3.8918573e-05
    %v3329 = vadd.f32 %v3328, 0.001143296
    %v3330 = vmul.f32 %v3316, %v3329
    %v3331 = vadd.f32 %v3330, 0.014752088
    %v3332 = vmul.f32 %v3316, %v3331
    %v3333 = vadd.f32 %v3332, 0.112945676
    %v3334 = vmul.f32 %v3316, %v3333
    %v3335 = vadd.f32 %v3334, 0.4994258
    %v3336 = vmul.f32 %v3316, %v3335
    %v3337 = vadd.f32 %v3336, 1.0
    %v3338 = vrcp.pop %v3337
    %v3339 = vmul.f32 %v3337, %v3338
    %v3340 = vsub.f32 1.0, %v3339
    %v3341 = vmul.f32 %v3338, %v3340
    %v3342 = vadd.f32 %v3338, %v3341
    %vm3343 = vweird.f32 %v3337
    %vm3344 = vweird.f32 %v3338
    %vm3345 = vmor %vm3343, %vm3344
    %v3346 = vsel %vm3345, %v3338, %v3342
    %v3347 = vand.u32 2147483647, %v3337
    %vm3348 = vcmp.eq.f32.partialorder %v3347, 8.507059e+37
    %v3349 = vand.u32 %v3337, 2147483648
    %v3350 = vor.u32 1.1754944e-38, %v3349
    %v3351 = vsel %vm3348, %v3350, %v3346
    %v3352 = vmul.f32 %v3327, %v3351
    %v3353 = vmin.f32 %v3352, 1.0
    %v3354 = vmax.f32 %v3353, -1.0
    %v3355 = vadd.f32 %v3314, 1.0
    %v3356 = vadd.f32 %v3354, 1.0
    %v3357 = vmul.f32 %v3271, %v3355
    %v3358 = vmul.f32 %v3272, %v3356
    %v3359 = vld [vmem:[#allocation2 + $0x4d8] sm:$0xff]
    %v3360 = vld [vmem:[#allocation2 + $0x4e0] sm:$0xff]
    %v3361 = vld [vmem:[#allocation2 + $0x4e8] sm:$0xff]
    %v3362 = vld [vmem:[#allocation2 + $0x4f0] sm:$0xff]
    %v3363 = vld [vmem:[#allocation2 + $0x4f8] sm:$0xff]
    %v3364 = vld [vmem:[#allocation2 + $0x500] sm:$0xff]
    %v3365 = vld [vmem:[#allocation2 + $0x508] sm:$0xff]
    %v3366 = vld [vmem:[#allocation2 + $0x510] sm:$0xff]
    %v3367 = vld [vmem:[#allocation2 + $0x518] sm:$0x1]
    %v3368 = vperm.slane %v3367, 0
    %v3370 = vsel %vm904, %v3357, 0
    %v3373 = vsel %vm904, %v3358, 0
    %3375 = vmatpush.msra.mxu0 0.0
    %3376 = vmatpush.msra.mxu0 0.0
    %3377 = vmatpush.msra.mxu0 0.0
    %3378 = vmatpush.msra.mxu0 0.0
    %3379 = vmatpush.msra.mxu0 0.0
    %3380 = vmatpush.msra.mxu0 0.0
    %3381 = vmatpush.msra.mxu0 0.0
    %3382 = vmatpush.msra.mxu0 0.0
    %3383 = vmatpush.msra.mxu0 %v3366
    %3384 = vmatpush.msra.mxu0 %v3365
    %3385 = vmatpush.msra.mxu0 %v3364
    %3386 = vmatpush.msra.mxu0 %v3363
    %3387 = vmatpush.msra.mxu0 %v3362
    %3388 = vmatpush.msra.mxu0 %v3361
    %3389 = vmatpush.msra.mxu0 %v3360
    %3390 = vmatpush.msra.mxu0 %v3359
    %3391 = vmatmul.f32.gmra.mxu0 %v3370
    %v3392 = vpop.f32.mrf.mxu0
    %v3393 = vadd.f32 %v3368, %v3392
    %3394 = vmatmul.f32.gmra.mxu0 %v3373
    %v3395 = vpop.f32.mrf.mxu0
    %v3396 = vadd.f32 %v3368, %v3395
    %3397 = vdwg.mxu0
    %v3398 = vadd.f32 %v3234, %v3393
    %v3399 = vadd.f32 %v3235, %v3396
    %v3400 = vsel %vm56, %v3398, 0.0
    %3401 = vadd.xlane.f32.xlu0 %v3400
    %v3402 = vpop.xlane.xlu0 %3401
    %v3403 = vsel %vm56, %v3399, 0.0
    %3404 = vadd.xlane.f32.xlu0 %v3403
    %v3405 = vpop.xlane.xlu0 %3404
    %v3406 = vmul.f32 %v3402, %v249
    %v3407 = vmul.f32 %v3405, %v249
    %v3408 = vmul.f32 %v3398, %v3398
    %v3409 = vmul.f32 %v3399, %v3399
    %v3410 = vsel %vm56, %v3408, 0.0
    %3411 = vadd.xlane.f32.xlu0 %v3410
    %v3412 = vpop.xlane.xlu0 %3411
    %v3413 = vsel %vm56, %v3409, 0.0
    %3414 = vadd.xlane.f32.xlu0 %v3413
    %v3415 = vpop.xlane.xlu0 %3414
    %v3416 = vmul.f32 %v3412, %v249
    %v3417 = vmul.f32 %v3415, %v249
    %v3418 = vmul.f32 %v3406, %v3406
    %v3419 = vmul.f32 %v3407, %v3407
    %v3420 = vsub.f32 %v3416, %v3418
    %v3421 = vsub.f32 %v3417, %v3419
    %v3422 = vadd.f32 %v3420, 1e-05
    %v3423 = vadd.f32 %v3421, 1e-05
    %v3424 = vrsqrt.pop %v3422
    %v3425 = vmul.f32 %v3424, %v3422
    %v3426 = vmul.f32 %v3425, %v3424
    %v3427 = vmul.f32 0.5, %v3426
    %v3428 = vsub.f32 1.5, %v3427
    %v3429 = vmul.f32 %v3424, %v3428
    %vm3430 = vweird.f32 %v3422
    %vm3431 = vweird.f32 %v3424
    %vm3432 = vmor %vm3430, %vm3431
    %v3433 = vsel %vm3432, %v3424, %v3429
    %v3434 = vrsqrt.pop %v3423
    %v3435 = vmul.f32 %v3434, %v3423
    %v3436 = vmul.f32 %v3435, %v3434
    %v3437 = vmul.f32 0.5, %v3436
    %v3438 = vsub.f32 1.5, %v3437
    %v3439 = vmul.f32 %v3434, %v3438
    %vm3440 = vweird.f32 %v3423
    %vm3441 = vweird.f32 %v3434
    %vm3442 = vmor %vm3440, %vm3441
    %v3443 = vsel %vm3442, %v3434, %v3439
    %v3444 = vsub.f32 %v3398, %v3406
    %v3445 = vsub.f32 %v3399, %v3407
    %v3446 = vmul.f32 %v3444, %v3433
    %v3447 = vmul.f32 %v3445, %v3443
    %v3448 = vld [vmem:[#allocation2 + $0x519] sm:$0x1]
    %v3449 = vperm.slane %v3448, 0
    %v3450 = vmul.f32 %v3446, %v3449
    %v3451 = vmul.f32 %v3447, %v3449
    %v3452 = vld [vmem:[#allocation2 + $0x51a] sm:$0x1]
    %v3453 = vperm.slane %v3452, 0
    %v3454 = vadd.f32 %v3450, %v3453
    %v3455 = vadd.f32 %v3451, %v3453
    %v3456 = vld [vmem:[#allocation2 + $0xe0] sm:$0xff]
    %v3457 = vld [vmem:[#allocation2 + $0xe8] sm:$0xff]
    %v3458 = vld [vmem:[#allocation2 + $0xf0] sm:$0xff]
    %v3459 = vld [vmem:[#allocation2 + $0xf8] sm:$0xff]
    %v3460 = vld [vmem:[#allocation2 + $0x100] sm:$0x1]
    %v3461 = vperm.slane %v3460, 0
    %v3463 = vsel %vm56, %v3454, 0
    %v3466 = vsel %vm56, %v3455, 0
    %3468 = vmatpush.msra.mxu0 0.0
    %3469 = vmatpush.msra.mxu0 0.0
    %3470 = vmatpush.msra.mxu0 0.0
    %3471 = vmatpush.msra.mxu0 0.0
    %3472 = vmatpush.msra.mxu0 0.0
    %3473 = vmatpush.msra.mxu0 0.0
    %3474 = vmatpush.msra.mxu0 0.0
    %3475 = vmatpush.msra.mxu0 0.0
    %3476 = vmatpush.msra.mxu0 0.0
    %3477 = vmatpush.msra.mxu0 0.0
    %3478 = vmatpush.msra.mxu0 0.0
    %3479 = vmatpush.msra.mxu0 0.0
    %3480 = vmatpush.msra.mxu0 %v3459
    %3481 = vmatpush.msra.mxu0 %v3458
    %3482 = vmatpush.msra.mxu0 %v3457
    %3483 = vmatpush.msra.mxu0 %v3456
    %3484 = vmatmul.f32.gmra.mxu0 %v3463
    %v3485 = vpop.f32.mrf.mxu0
    %v3486 = vadd.f32 %v3461, %v3485
    %3487 = vmatmul.f32.gmra.mxu0 %v3466
    %v3488 = vpop.f32.mrf.mxu0
    %v3489 = vadd.f32 %v3461, %v3488
    %3490 = vdwg.mxu0
    %v3491 = vtanh.pop %v3486
    %v3492 = vtanh.pop %v3489
    %v3493 = vld [vmem:[#allocation2 + $0x108] sm:$0xff]
    %v3494 = vld [vmem:[#allocation2 + $0x110] sm:$0xff]
    %v3495 = vld [vmem:[#allocation2 + $0x118] sm:$0xff]
    %v3496 = vld [vmem:[#allocation2 + $0x120] sm:$0xff]
    %v3497 = vld [vmem:[#allocation2 + $0x128] sm:$0x1]
    %v3498 = vperm.slane %v3497, 0
    %v3500 = vsel %vm56, %v3491, 0
    %v3503 = vsel %vm56, %v3492, 0
    %3505 = vmatpush.msra.mxu0 0.0
    %3506 = vmatpush.msra.mxu0 0.0
    %3507 = vmatpush.msra.mxu0 0.0
    %3508 = vmatpush.msra.mxu0 0.0
    %3509 = vmatpush.msra.mxu0 0.0
    %3510 = vmatpush.msra.mxu0 0.0
    %3511 = vmatpush.msra.mxu0 0.0
    %3512 = vmatpush.msra.mxu0 0.0
    %3513 = vmatpush.msra.mxu0 0.0
    %3514 = vmatpush.msra.mxu0 0.0
    %3515 = vmatpush.msra.mxu0 0.0
    %3516 = vmatpush.msra.mxu0 0.0
    %3517 = vmatpush.msra.mxu0 %v3496
    %3518 = vmatpush.msra.mxu0 %v3495
    %3519 = vmatpush.msra.mxu0 %v3494
    %3520 = vmatpush.msra.mxu0 %v3493
    %3521 = vmatmul.f32.gmra.mxu0 %v3500
    %v3522 = vpop.f32.mrf.mxu0
    %v3523 = vadd.f32 %v3498, %v3522
    %3524 = vmatmul.f32.gmra.mxu0 %v3503
    %v3525 = vpop.f32.mrf.mxu0
    %v3526 = vadd.f32 %v3498, %v3525
    %3527 = vdwg.mxu0
    %3528 = vst [vmem:[%s9] sm:$0xff] %v3523
    %3529 = vst [vmem:[%s9 + $0x8] sm:$0xff] %v3526
    // Predicated region
    $region42: #{forward.1} parent=1 // pred_check
      _
    $region43: #{forward.1} parent=1 // pred_check_branch
      %3531 = sbr.rel (0) target = $region45
    $region44: #{forward.1} parent=1 // pred_region
      _
    $region45: #{forward.1} parent=1 // pred_fallthru
      _
    // Predicated region
    $region46: #{forward.1} parent=1 // pred_check
      _
    $region47: #{forward.1} parent=1 // pred_check_branch
      %3533 = sbr.rel (0) target = $region49
    $region48: #{forward.1} parent=1 // pred_region
      _
    $region49: #{forward.1} parent=1 // pred_fallthru
      _
    %3534 = vsyncpa [#allocation3], 1

</llo_original>
